<compile_context>
chip_gen: v7x
topology: tpu7x:2x2x1
jax: 0.10.0
libtpu: 0.0.40
codegen_flags: <defaults>
</compile_context>

<pallas_src>
import functools

import numpy as np
import jax
import jax.numpy as jnp
from jax.experimental import pallas as pl
from jax.experimental.pallas import tpu as pltpu


def _round_up(x, m):
    return ((x + m - 1) // m) * m


_VMEM_LIMIT = 48 * 1024 * 1024  # leave headroom under v7x's 64 MiB physical VMEM


# --------------------------------------------------------------------------------------
# Pallas kernels
# --------------------------------------------------------------------------------------

def _conv3x3_kernel(a_ref, halo_ref, w_ref, b_ref, o_ref, *, w_row, cp, tm,
                    relu_in, relu_out):
    """Direct 3x3 conv on a flattened padded-row slab; 9 taps accumulated in-kernel."""
    # (tm + halo, cp): main slab + halo rows from the next block (for shifted taps).
    a = jnp.concatenate([a_ref[...], halo_ref[...]], axis=0).astype(jnp.float32)
    if relu_in:
        a = jnp.maximum(a, 0.0)
    acc = jnp.zeros(o_ref.shape, jnp.float32)
    for t in range(9):
        off = (t // 3) * w_row + (t % 3)          # static row shift for tap (di, dj)
        a_t = a[off:off + tm, :].astype(jnp.bfloat16)
        w_t = w_ref[pl.ds(t * cp, cp), :]
        acc = acc + jnp.dot(a_t, w_t, preferred_element_type=jnp.float32)
    acc = acc + b_ref[...]
    if relu_out:
        acc = jnp.maximum(acc, 0.0)
    o_ref[...] = acc.astype(o_ref.dtype)


def _matmul_kernel(*refs, has_shortcut, relu_out):
    """Tiled GEMM with fused bias + optional residual add + optional ReLU epilogue."""
    if has_shortcut:
        a_ref, b_ref, bias_ref, s_ref, o_ref = refs
    else:
        a_ref, b_ref, bias_ref, o_ref = refs
    acc = jnp.dot(a_ref[...], b_ref[...], preferred_element_type=jnp.float32)
    acc = acc + bias_ref[...]
    if has_shortcut:
        acc = acc + s_ref[...].astype(jnp.float32)
    if relu_out:
        acc = jnp.maximum(acc, 0.0)
    o_ref[...] = acc.astype(o_ref.dtype)


def _avg_pool_kernel(x_ref, o_ref, *, relu):
    """2x2 avg-pool of one (2, W, C) row pair via a pooling-matrix MXU dot."""
    top = x_ref[0, 0].astype(jnp.float32)          # (W, C)
    bot = x_ref[0, 1].astype(jnp.float32)
    s = top + bot
    w = s.shape[0]
    wo = o_ref.shape[2]
    rows = jax.lax.broadcasted_iota(jnp.int32, (wo, w), 0)
    cols = jax.lax.broadcasted_iota(jnp.int32, (wo, w), 1)
    pmat = jnp.where(cols // 2 == rows, 0.25, 0.0).astype(jnp.float32)
    out = jnp.dot(pmat, s, preferred_element_type=jnp.float32)   # (Wo, C)
    if relu:
        out = jnp.maximum(out, 0.0)
    o_ref[0, 0] = out.astype(o_ref.dtype)


def _add_act_kernel(a_ref, b_ref, o_ref, *, relu):
    out = a_ref[...].astype(jnp.float32) + b_ref[...].astype(jnp.float32)
    if relu:
        out = jnp.maximum(out, 0.0)
    o_ref[...] = out.astype(o_ref.dtype)


def _spatial_sum_kernel(x_ref, o_ref):
    @pl.when(pl.program_id(0) == 0)
    def _():
        o_ref[...] = jnp.zeros_like(o_ref)
    o_ref[...] += jnp.sum(x_ref[...].astype(jnp.float32), axis=1)


def _obj_head_kernel(f_ref, e_ref, w_ref, b_ref, o_ref):
    f = f_ref[...]
    lin = jnp.dot(f.astype(jnp.bfloat16), w_ref[...],
                  preferred_element_type=jnp.float32) + b_ref[...]
    o_ref[...] = lin + jnp.sum(e_ref[...] * f, axis=1, keepdims=True)


# --------------------------------------------------------------------------------------
# Kernel wrappers
# --------------------------------------------------------------------------------------

def conv3x3_pallas(x, p, relu_in=False, relu_out=False):
    """3x3 stride-1 pad-1 conv, NHWC in / NHWC out (channels padded to 128)."""
    N, H, W, cin_act = x.shape
    cp, coutp = p['cp'], p['coutp']
    assert cin_act <= cp
    Hp = H + 2
    w_row = _round_up(W + 2, 8)
    dmax = 2 * w_row + 2
    halo = _round_up(dmax, 128)
    M = N * Hp * w_row
    tm = max(halo, min(256, _round_up(M, 128)))
    if tm % halo:
        tm = _round_up(tm, halo)
    tn = 256 if coutp % 256 == 0 else 128
    Mp = _round_up(M, tm)

    xpad = jnp.pad(x.astype(jnp.bfloat16),
                   ((0, 0), (1, 1), (1, w_row - W - 1), (0, 0)))
    xf = xpad.reshape(M, cin_act)
    xf = jnp.pad(xf, ((0, Mp + tm - M), (0, cp - cin_act)))

    halo_ratio = tm // halo
    out = pl.pallas_call(
        functools.partial(_conv3x3_kernel, w_row=w_row, cp=cp, tm=tm,
                          relu_in=relu_in, relu_out=relu_out),
        out_shape=jax.ShapeDtypeStruct((Mp, coutp), jnp.bfloat16),
        grid_spec=pltpu.PrefetchScalarGridSpec(
            num_scalar_prefetch=0,
            grid=(Mp // tm, coutp // tn),
            in_specs=[
                pl.BlockSpec((tm, cp), lambda i, j: (i, 0)),
                pl.BlockSpec((halo, cp), lambda i, j: ((i + 1) * halo_ratio, 0)),
                pl.BlockSpec((9 * cp, tn), lambda i, j: (0, j)),
                pl.BlockSpec((1, tn), lambda i, j: (0, j)),
            ],
            out_specs=pl.BlockSpec((tm, tn), lambda i, j: (i, j)),
        ),
        compiler_params=pltpu.CompilerParams(
            dimension_semantics=("parallel", "parallel"),
            vmem_limit_bytes=_VMEM_LIMIT),
    )(xf, xf, p['w'], p['b'])
    out = out[:M].reshape(N, Hp, w_row, coutp)[:, :H, :W, :]
    return out


def matmul_pallas(a, b_p, bias_p, shortcut=None, relu_out=False,
                  out_dtype=jnp.bfloat16):
    """out = act(a @ b + bias [+ shortcut]); a cast to bf16, K resident per step."""
    M, K = a.shape
    Kp, Np = b_p.shape
    assert K <= Kp
    tm = 256 if M >= 256 else _round_up(M, 8)
    Mp = _round_up(M, tm)
    tn = 256 if Np % 256 == 0 else 128
    a_p = jnp.pad(a.astype(jnp.bfloat16), ((0, Mp - M), (0, Kp - K)))

    in_specs = [
        pl.BlockSpec((tm, Kp), lambda i, j: (i, 0)),
        pl.BlockSpec((Kp, tn), lambda i, j: (0, j)),
        pl.BlockSpec((1, tn), lambda i, j: (0, j)),
    ]
    args = [a_p, b_p, bias_p]
    if shortcut is not None:
        s_p = jnp.pad(shortcut.astype(jnp.bfloat16),
                      ((0, Mp - shortcut.shape[0]), (0, Np - shortcut.shape[1])))
        in_specs.append(pl.BlockSpec((tm, tn), lambda i, j: (i, j)))
        args.append(s_p)

    out = pl.pallas_call(
        functools.partial(_matmul_kernel, has_shortcut=shortcut is not None,
                          relu_out=relu_out),
        out_shape=jax.ShapeDtypeStruct((Mp, Np), out_dtype),
        grid_spec=pltpu.PrefetchScalarGridSpec(
            num_scalar_prefetch=0,
            grid=(Mp // tm, Np // tn),
            in_specs=in_specs,
            out_specs=pl.BlockSpec((tm, tn), lambda i, j: (i, j)),
        ),
        compiler_params=pltpu.CompilerParams(
            dimension_semantics=("parallel", "parallel"),
            vmem_limit_bytes=_VMEM_LIMIT),
    )(*args)
    return out[:M]


def avg_pool2_pallas(x, relu=False):
    N, H, W, C = x.shape
    Ho, Wo = H // 2, W // 2
    return pl.pallas_call(
        functools.partial(_avg_pool_kernel, relu=relu),
        out_shape=jax.ShapeDtypeStruct((N, Ho, Wo, C), x.dtype),
        grid_spec=pltpu.PrefetchScalarGridSpec(
            num_scalar_prefetch=0,
            grid=(N, Ho),
            in_specs=[pl.BlockSpec((1, 2, W, C), lambda n, i: (n, i, 0, 0))],
            out_specs=pl.BlockSpec((1, 1, Wo, C), lambda n, i: (n, i, 0, 0)),
        ),
        compiler_params=pltpu.CompilerParams(
            dimension_semantics=("parallel", "parallel")),
    )(x)


def add_act_pallas(a, b, relu=False):
    shape = a.shape
    C = shape[-1]
    R = int(np.prod(shape[:-1]))
    tr = 256 if R >= 256 else _round_up(R, 8)
    Rp = _round_up(R, tr)
    ap = jnp.pad(a.reshape(R, C).astype(jnp.bfloat16), ((0, Rp - R), (0, 0)))
    bp = jnp.pad(b.reshape(R, C).astype(jnp.bfloat16), ((0, Rp - R), (0, 0)))
    out = pl.pallas_call(
        functools.partial(_add_act_kernel, relu=relu),
        out_shape=jax.ShapeDtypeStruct((Rp, C), jnp.bfloat16),
        grid_spec=pltpu.PrefetchScalarGridSpec(
            num_scalar_prefetch=0,
            grid=(Rp // tr,),
            in_specs=[pl.BlockSpec((tr, C), lambda i: (i, 0)),
                      pl.BlockSpec((tr, C), lambda i: (i, 0))],
            out_specs=pl.BlockSpec((tr, C), lambda i: (i, 0)),
        ),
        compiler_params=pltpu.CompilerParams(dimension_semantics=("parallel",)),
    )(ap, bp)
    return out[:R].reshape(shape)


def spatial_sum_pallas(x):
    """x: (N, H, W, C) -> (N, C) float32 (sum over spatial dims)."""
    N, H, W, C = x.shape
    HW = H * W
    thw = min(512, _round_up(HW, 8))
    HWp = _round_up(HW, thw)
    xp = jnp.pad(x.reshape(N, HW, C), ((0, 0), (0, HWp - HW), (0, 0)))
    return pl.pallas_call(
        _spatial_sum_kernel,
        out_shape=jax.ShapeDtypeStruct((N, C), jnp.float32),
        grid_spec=pltpu.PrefetchScalarGridSpec(
            num_scalar_prefetch=0,
            grid=(HWp // thw,),
            in_specs=[pl.BlockSpec((N, thw, C), lambda k: (0, k, 0))],
            out_specs=pl.BlockSpec((N, C), lambda k: (0, 0)),
        ),
        compiler_params=pltpu.CompilerParams(dimension_semantics=("arbitrary",)),
    )(xp)


def obj_head_pallas(obj_vec, emb, w_p, b_p):
    """out_obj = obj_vec @ w + b + rowsum(emb * obj_vec)."""
    B, C = obj_vec.shape
    Bp = _round_up(B, 8)
    fp = jnp.pad(obj_vec.astype(jnp.float32), ((0, Bp - B), (0, 0)))
    ep = jnp.pad(emb.astype(jnp.float32),
                 ((0, Bp - B), (0, C - emb.shape[1])))
    out = pl.pallas_call(
        _obj_head_kernel,
        out_shape=jax.ShapeDtypeStruct((Bp, w_p.shape[1]), jnp.float32),
    )(fp, ep, w_p, b_p)
    return out[:B, :1]


# --------------------------------------------------------------------------------------
# ROIAlign (sampling_ratio=0, torchvision legacy non-aligned semantics)
# --------------------------------------------------------------------------------------

def _roi_coeff_matrix(rois, out_size, spatial_scale, N, H, W):
    # TODO(synk): the data-dependent bilinear coefficient construction + dynamic
    # small/large bbox partition stay host-side (dynamic shapes); the sampling arithmetic
    # itself runs on TPU as a Pallas GEMM against this coefficient matrix.
    K = rois.shape[0]
    A = np.zeros((K * out_size * out_size, N * H * W), np.float32)
    for r in range(K):
        b_idx = int(rois[r, 0])
        x1 = float(rois[r, 1]) * spatial_scale
        y1 = float(rois[r, 2]) * spatial_scale
        x2 = float(rois[r, 3]) * spatial_scale
        y2 = float(rois[r, 4]) * spatial_scale
        roi_w = max(x2 - x1, 1.0)
        roi_h = max(y2 - y1, 1.0)
        bin_w = roi_w / out_size
        bin_h = roi_h / out_size
        sgh = int(np.ceil(roi_h / out_size))
        sgw = int(np.ceil(roi_w / out_size))
        cnt = sgh * sgw
        base = b_idx * H * W
        for i in range(out_size):
            for j in range(out_size):
                row = r * out_size * out_size + i * out_size + j
                for iy in range(sgh):
                    yy = y1 + i * bin_h + (iy + 0.5) * bin_h / sgh
                    for ix in range(sgw):
                        xx = x1 + j * bin_w + (ix + 0.5) * bin_w / sgw
                        if not (-1.0 < yy < H and -1.0 < xx < W):
                            continue
                        yc = min(max(yy, 0.0), H - 1)
                        xc = min(max(xx, 0.0), W - 1)
                        y0 = int(np.floor(yc))
                        x0 = int(np.floor(xc))
                        y1i = min(y0 + 1, H - 1)
                        x1i = min(x0 + 1, W - 1)
                        ly = yc - y0
                        lx = xc - x0
                        hy = 1.0 - ly
                        hx = 1.0 - lx
                        A[row, base + y0 * W + x0] += hy * hx / cnt
                        A[row, base + y0 * W + x1i] += hy * lx / cnt
                        A[row, base + y1i * W + x0] += ly * hx / cnt
                        A[row, base + y1i * W + x1i] += ly * lx / cnt
    return A


def roi_align_pallas(feat, rois_np, out_size, spatial_scale):
    N, H, W, C = feat.shape
    K = rois_np.shape[0]
    if K == 0:
        return jnp.zeros((0, out_size, out_size, C), jnp.bfloat16)
    A = _roi_coeff_matrix(rois_np, out_size, spatial_scale, N, H, W)
    a = jnp.asarray(A, jnp.float32)
    featflat = feat.reshape(N * H * W, C)
    zero_bias = jnp.zeros((1, C), jnp.float32)
    out = matmul_pallas(a, featflat, zero_bias)
    return out.reshape(K, out_size, out_size, C)


# --------------------------------------------------------------------------------------
# Blocks (OptimizedBlock / ResBlock) -- residual add fused into the c_sc GEMM epilogue;
# avg-pool applied once to the fused sum (avg-pool commutes with 1x1 conv / add).
# --------------------------------------------------------------------------------------

def optimized_block(p, x, downsample=False):
    h = conv3x3_pallas(x, p['conv1'], relu_in=False, relu_out=True)
    h = conv3x3_pallas(h, p['conv2'], relu_in=False, relu_out=False)
    N, H, W, _ = x.shape
    coutp = p['c_sc']['coutp']
    s = matmul_pallas(x.reshape(N * H * W, x.shape[-1]),
                      p['c_sc']['w'], p['c_sc']['b'],
                      shortcut=h.reshape(N * H * W, coutp))
    s = s.reshape(N, H, W, coutp)
    if downsample:
        s = avg_pool2_pallas(s)
    return s


def res_block(p, x, downsample=False, out_relu=False):
    h = conv3x3_pallas(x, p['conv1'], relu_in=True, relu_out=True)
    h = conv3x3_pallas(h, p['conv2'], relu_in=False, relu_out=False)
    N, H, W, C = x.shape
    if p.get('c_sc') is not None:
        coutp = p['c_sc']['coutp']
        s = matmul_pallas(x.reshape(N * H * W, C),
                          p['c_sc']['w'], p['c_sc']['b'],
                          shortcut=h.reshape(N * H * W, coutp),
                          relu_out=(out_relu and not downsample))
        s = s.reshape(N, H, W, coutp)
        if downsample:
            s = avg_pool2_pallas(s, relu=out_relu)
        return s
    assert not downsample
    return add_act_pallas(h, x, relu=out_relu)


# --------------------------------------------------------------------------------------
# Deterministic parameters (spectral normalization at setup time), pre-padded bf16 weights
# --------------------------------------------------------------------------------------

def _spectral_normalize(w2d, key, n_iter=1, eps=1e-4):
    u = jax.random.normal(key, (w2d.shape[0],), jnp.float32)
    u = u / jnp.maximum(jnp.linalg.norm(u), eps)
    v = None
    for _ in range(n_iter):
        v = w2d.T @ u
        v = v / jnp.maximum(jnp.linalg.norm(v), eps)
        u = w2d @ v
        u = u / jnp.maximum(jnp.linalg.norm(u), eps)
    sigma = u @ (w2d @ v)
    return w2d / sigma


def make_conv_params(key, cin, cout, k):
    kw_, kb_, ku_ = jax.random.split(key, 3)
    w = jax.random.normal(kw_, (cout, cin, k, k), jnp.float32) * 0.1   # PyTorch OIHW
    b = jax.random.normal(kb_, (cout,), jnp.float32) * 0.1
    w2d = _spectral_normalize(w.reshape(cout, -1), ku_)
    w = w2d.reshape(cout, cin, k, k)
    cp = _round_up(cin, 128)
    coutp = _round_up(cout, 128)
    if k == 3:
        wm = jnp.transpose(w, (2, 3, 1, 0)).reshape(9, cin, cout)       # tap-major
        wm = jnp.pad(wm, ((0, 0), (0, cp - cin), (0, coutp - cout)))
        wm = wm.reshape(9 * cp, coutp)
    else:
        wm = jnp.transpose(w[:, :, 0, 0], (1, 0))                       # (cin, cout)
        wm = jnp.pad(wm, ((0, cp - cin), (0, coutp - cout)))
    bp = jnp.pad(b.reshape(1, cout), ((0, 0), (0, coutp - cout)))
    return {'w': wm.astype(jnp.bfloat16), 'b': bp, 'k': k, 'cp': cp, 'coutp': coutp}


def make_linear_params(key, cin, cout):
    kw_, kb_, ku_ = jax.random.split(key, 3)
    w = jax.random.normal(kw_, (cout, cin), jnp.float32) * 0.1
    b = jax.random.normal(kb_, (cout,), jnp.float32) * 0.1
    w = _spectral_normalize(w, ku_)
    cp = _round_up(cin, 128)
    coutp = _round_up(cout, 128)
    wp = jnp.pad(w.T, ((0, cp - cin), (0, coutp - cout))).astype(jnp.bfloat16)
    bp = jnp.pad(b.reshape(1, cout), ((0, 0), (0, coutp - cout)))
    return {'w': wp, 'b': bp, 'cp': cp, 'coutp': coutp}


def make_opt_block(key, cin, cout):
    k1, k2, k3 = jax.random.split(key, 3)
    return {'conv1': make_conv_params(k1, cin, cout, 3),
            'conv2': make_conv_params(k2, cout, cout, 3),
            'c_sc': make_conv_params(k3, cin, cout, 1)}


def make_res_block(key, cin, cout, downsample):
    k1, k2, k3 = jax.random.split(key, 3)
    p = {'conv1': make_conv_params(k1, cin, cout, 3),
         'conv2': make_conv_params(k2, cout, cout, 3)}
    p['c_sc'] = make_conv_params(k3, cin, cout, 1) if (cin != cout or downsample) else None
    return p


def make_params(key, ch=8, num_classes=10):
    ks = jax.random.split(key, 12)
    return {
        'block1': make_opt_block(ks[0], 3, ch),
        'block2': make_res_block(ks[1], ch, ch * 2, True),
        'block3': make_res_block(ks[2], ch * 2, ch * 4, True),
        'block4': make_res_block(ks[3], ch * 4, ch * 8, True),
        'block5': make_res_block(ks[4], ch * 8, ch * 16, True),
        'block6': make_res_block(ks[5], ch * 16, ch * 16, False),
        'l7': make_linear_params(ks[6], ch * 16, 1),
        'block_obj3': make_res_block(ks[7], ch * 2, ch * 4, False),
        'block_obj4': make_res_block(ks[8], ch * 4, ch * 8, False),
        'block_obj5': make_res_block(ks[9], ch * 8, ch * 16, True),
        'l_obj': make_linear_params(ks[10], ch * 16, 1),
        'l_y': _spectral_normalize(
            jax.random.normal(ks[11], (num_classes, ch * 16), jnp.float32) * 0.1,
            jax.random.fold_in(ks[11], 1)),
    }


# --------------------------------------------------------------------------------------
# ResnetDiscriminator128 forward
# --------------------------------------------------------------------------------------

def resnet_discriminator_128(params, x_nchw, y, bbox):
    x = jnp.transpose(x_nchw, (0, 2, 3, 1)).astype(jnp.bfloat16)   # NCHW -> NHWC
    bbox_np = np.asarray(bbox, dtype=np.float32)
    y_np = np.asarray(y)
    b = bbox_np.shape[0]

    x = optimized_block(params['block1'], x, downsample=False)
    x1 = res_block(params['block2'], x, downsample=True)
    x2 = res_block(params['block3'], x1, downsample=True)
    x = res_block(params['block4'], x2, downsample=True)
    x = res_block(params['block5'], x, downsample=True)
    x = res_block(params['block6'], x, downsample=False, out_relu=True)   # block6 + ReLU
    feat = spatial_sum_pallas(x)                                          # (N, ch*16)
    out_im = matmul_pallas(feat, params['l7']['w'], params['l7']['b'],
                           out_dtype=jnp.float32)[:, :1]

    # split boxes into small / large (host-side, dynamic shapes)
    s_idx = (bbox_np[:, 3] < 64) & (bbox_np[:, 4] < 64)
    bbox_l, bbox_s = bbox_np[~s_idx], bbox_np[s_idx]
    y_l, y_s = y_np[~s_idx], y_np[s_idx]

    obj_feat_s = res_block(params['block_obj3'], x1, downsample=False)
    obj_feat_s = res_block(params['block_obj4'], obj_feat_s, downsample=False)
    obj_feat_s = roi_align_pallas(obj_feat_s, bbox_s, 8, 1.0 / 4.0)

    obj_feat_l = res_block(params['block_obj4'], x2, downsample=False)
    obj_feat_l = roi_align_pallas(obj_feat_l, bbox_l, 8, 1.0 / 8.0)

    obj_feat = jnp.concatenate([obj_feat_l, obj_feat_s], axis=0)
    y_all = jnp.asarray(np.concatenate([y_l, y_s], axis=0), dtype=jnp.int32)

    obj_feat = res_block(params['block_obj5'], obj_feat, downsample=True, out_relu=True)
    obj_vec = spatial_sum_pallas(obj_feat)                                # (b, ch*16)
    emb = params['l_y'][y_all]                                            # embedding lookup
    out_obj = obj_head_pallas(obj_vec, emb, params['l_obj']['w'], params['l_obj']['b'])
    assert out_obj.shape[0] == b
    return out_im, out_obj


if __name__ == "__main__":
    key = jax.random.PRNGKey(0)
    kp, kx = jax.random.split(key)
    ch = 8
    num_classes = 10
    params = make_params(kp, ch=ch, num_classes=num_classes)

    x = jax.random.normal(kx, (2, 3, 32, 32), jnp.float32)   # NCHW, PyTorch convention
    bbox = jnp.array([
        [0.0, 2.0, 3.0, 20.0, 24.0],    # small box (roi_align_s path)
        [0.0, 5.0, 6.0, 70.0, 80.0],    # large box (roi_align_l path)
        [1.0, 1.0, 1.0, 30.0, 31.0],    # small box
        [1.0, 10.0, 12.0, 90.0, 60.0],  # large box
    ], dtype=jnp.float32)
    y = jnp.array([1, 3, 5, 7], dtype=jnp.int32)

    out_im, out_obj = resnet_discriminator_128(params, x, y, bbox)
    jax.block_until_ready(out_im)
    jax.block_until_ready(out_obj)
    assert out_im.shape == (2, 1) and out_obj.shape == (4, 1)
    print("KERNEL_OK")
</pallas_src>

<mosaic_0001>
module attributes {stable_mosaic.version = 11 : i64} {
  func.func @_conv3x3_kernel(%arg0: i32, %arg1: i32, %arg2: memref<256x128xbf16, #tpu.memory_space<vmem>>, %arg3: memref<128x128xbf16, #tpu.memory_space<vmem>>, %arg4: memref<1152x128xbf16, #tpu.memory_space<vmem>>, %arg5: memref<1x128xf32, #tpu.memory_space<vmem>>, %arg6: memref<256x128xbf16, #tpu.memory_space<vmem>>) attributes {dimension_semantics = [#tpu.dimension_semantics<parallel>, #tpu.dimension_semantics<parallel>], iteration_bounds = array<i64: 11, 1>, scalar_prefetch = 0 : i64, scratch_operands = 0 : i64, tpu.core_type = #tpu.core_type<tc>, window_params = [{transform_indices = @transform_0, window_bounds = array<i64: 256, 128>}, {transform_indices = @transform_1, window_bounds = array<i64: 128, 128>}, {transform_indices = @transform_2, window_bounds = array<i64: 1152, 128>}, {transform_indices = @transform_3, window_bounds = array<i64: 1, 128>}, {transform_indices = @transform_4, window_bounds = array<i64: 256, 128>}]} {
    %c0 = arith.constant 0 : index
    %c0_0 = arith.constant 0 : index
    %0 = vector.load %arg2[%c0, %c0_0] : memref<256x128xbf16, #tpu.memory_space<vmem>>, vector<256x128xbf16>
    %c0_1 = arith.constant 0 : index
    %c0_2 = arith.constant 0 : index
    %1 = vector.load %arg3[%c0_1, %c0_2] : memref<128x128xbf16, #tpu.memory_space<vmem>>, vector<128x128xbf16>
    %2 = tpu.concatenate %0, %1 in 0 : vector<256x128xbf16>, vector<128x128xbf16> -> vector<384x128xbf16>
    %3 = arith.extf %2 : vector<384x128xbf16> to vector<384x128xf32>
    %cst = arith.constant 0.000000e+00 : f32
    %4 = vector.broadcast %cst : f32 to vector<256x128xf32>
    %5 = vector.extract_strided_slice %3 {offsets = [0, 0], sizes = [256, 128], strides = [1, 1]} : vector<384x128xf32> to vector<256x128xf32>
    %6 = arith.truncf %5 : vector<256x128xf32> to vector<256x128xbf16>
    %c0_3 = arith.constant 0 : index
    %c0_4 = arith.constant 0 : index
    %7 = vector.load %arg4[%c0_3, %c0_4] : memref<1152x128xbf16, #tpu.memory_space<vmem>>, vector<128x128xbf16>
    %cst_5 = arith.constant dense<0.000000e+00> : vector<256x128xf32>
    %8 = tpu.matmul %6, %7, %cst_5 {dimension_numbers = #tpu.dot_dimension_numbers<[1], [0], [0], [1], [0, 0, 1, 1], [], []>} : vector<256x128xbf16>, vector<128x128xbf16>, vector<256x128xf32> -> vector<256x128xf32>
    %9 = arith.addf %4, %8 : vector<256x128xf32>
    %10 = vector.extract_strided_slice %3 {offsets = [1, 0], sizes = [256, 128], strides = [1, 1]} : vector<384x128xf32> to vector<256x128xf32>
    %11 = arith.truncf %10 : vector<256x128xf32> to vector<256x128xbf16>
    %c128 = arith.constant 128 : index
    %c0_6 = arith.constant 0 : index
    %12 = vector.load %arg4[%c128, %c0_6] : memref<1152x128xbf16, #tpu.memory_space<vmem>>, vector<128x128xbf16>
    %cst_7 = arith.constant dense<0.000000e+00> : vector<256x128xf32>
    %13 = tpu.matmul %11, %12, %cst_7 {dimension_numbers = #tpu.dot_dimension_numbers<[1], [0], [0], [1], [0, 0, 1, 1], [], []>} : vector<256x128xbf16>, vector<128x128xbf16>, vector<256x128xf32> -> vector<256x128xf32>
    %14 = arith.addf %9, %13 : vector<256x128xf32>
    %15 = vector.extract_strided_slice %3 {offsets = [2, 0], sizes = [256, 128], strides = [1, 1]} : vector<384x128xf32> to vector<256x128xf32>
    %16 = arith.truncf %15 : vector<256x128xf32> to vector<256x128xbf16>
    %c256 = arith.constant 256 : index
    %c0_8 = arith.constant 0 : index
    %17 = vector.load %arg4[%c256, %c0_8] : memref<1152x128xbf16, #tpu.memory_space<vmem>>, vector<128x128xbf16>
    %cst_9 = arith.constant dense<0.000000e+00> : vector<256x128xf32>
    %18 = tpu.matmul %16, %17, %cst_9 {dimension_numbers = #tpu.dot_dimension_numbers<[1], [0], [0], [1], [0, 0, 1, 1], [], []>} : vector<256x128xbf16>, vector<128x128xbf16>, vector<256x128xf32> -> vector<256x128xf32>
    %19 = arith.addf %14, %18 : vector<256x128xf32>
    %20 = vector.extract_strided_slice %3 {offsets = [40, 0], sizes = [256, 128], strides = [1, 1]} : vector<384x128xf32> to vector<256x128xf32>
    %21 = arith.truncf %20 : vector<256x128xf32> to vector<256x128xbf16>
    %c384 = arith.constant 384 : index
    %c0_10 = arith.constant 0 : index
    %22 = vector.load %arg4[%c384, %c0_10] : memref<1152x128xbf16, #tpu.memory_space<vmem>>, vector<128x128xbf16>
    %cst_11 = arith.constant dense<0.000000e+00> : vector<256x128xf32>
    %23 = tpu.matmul %21, %22, %cst_11 {dimension_numbers = #tpu.dot_dimension_numbers<[1], [0], [0], [1], [0, 0, 1, 1], [], []>} : vector<256x128xbf16>, vector<128x128xbf16>, vector<256x128xf32> -> vector<256x128xf32>
    %24 = arith.addf %19, %23 : vector<256x128xf32>
    %25 = vector.extract_strided_slice %3 {offsets = [41, 0], sizes = [256, 128], strides = [1, 1]} : vector<384x128xf32> to vector<256x128xf32>
    %26 = arith.truncf %25 : vector<256x128xf32> to vector<256x128xbf16>
    %c512 = arith.constant 512 : index
    %c0_12 = arith.constant 0 : index
    %27 = vector.load %arg4[%c512, %c0_12] : memref<1152x128xbf16, #tpu.memory_space<vmem>>, vector<128x128xbf16>
    %cst_13 = arith.constant dense<0.000000e+00> : vector<256x128xf32>
    %28 = tpu.matmul %26, %27, %cst_13 {dimension_numbers = #tpu.dot_dimension_numbers<[1], [0], [0], [1], [0, 0, 1, 1], [], []>} : vector<256x128xbf16>, vector<128x128xbf16>, vector<256x128xf32> -> vector<256x128xf32>
    %29 = arith.addf %24, %28 : vector<256x128xf32>
    %30 = vector.extract_strided_slice %3 {offsets = [42, 0], sizes = [256, 128], strides = [1, 1]} : vector<384x128xf32> to vector<256x128xf32>
    %31 = arith.truncf %30 : vector<256x128xf32> to vector<256x128xbf16>
    %c640 = arith.constant 640 : index
    %c0_14 = arith.constant 0 : index
    %32 = vector.load %arg4[%c640, %c0_14] : memref<1152x128xbf16, #tpu.memory_space<vmem>>, vector<128x128xbf16>
    %cst_15 = arith.constant dense<0.000000e+00> : vector<256x128xf32>
    %33 = tpu.matmul %31, %32, %cst_15 {dimension_numbers = #tpu.dot_dimension_numbers<[1], [0], [0], [1], [0, 0, 1, 1], [], []>} : vector<256x128xbf16>, vector<128x128xbf16>, vector<256x128xf32> -> vector<256x128xf32>
    %34 = arith.addf %29, %33 : vector<256x128xf32>
    %35 = vector.extract_strided_slice %3 {offsets = [80, 0], sizes = [256, 128], strides = [1, 1]} : vector<384x128xf32> to vector<256x128xf32>
    %36 = arith.truncf %35 : vector<256x128xf32> to vector<256x128xbf16>
    %c768 = arith.constant 768 : index
    %c0_16 = arith.constant 0 : index
    %37 = vector.load %arg4[%c768, %c0_16] : memref<1152x128xbf16, #tpu.memory_space<vmem>>, vector<128x128xbf16>
    %cst_17 = arith.constant dense<0.000000e+00> : vector<256x128xf32>
    %38 = tpu.matmul %36, %37, %cst_17 {dimension_numbers = #tpu.dot_dimension_numbers<[1], [0], [0], [1], [0, 0, 1, 1], [], []>} : vector<256x128xbf16>, vector<128x128xbf16>, vector<256x128xf32> -> vector<256x128xf32>
    %39 = arith.addf %34, %38 : vector<256x128xf32>
    %40 = vector.extract_strided_slice %3 {offsets = [81, 0], sizes = [256, 128], strides = [1, 1]} : vector<384x128xf32> to vector<256x128xf32>
    %41 = arith.truncf %40 : vector<256x128xf32> to vector<256x128xbf16>
    %c896 = arith.constant 896 : index
    %c0_18 = arith.constant 0 : index
    %42 = vector.load %arg4[%c896, %c0_18] : memref<1152x128xbf16, #tpu.memory_space<vmem>>, vector<128x128xbf16>
    %cst_19 = arith.constant dense<0.000000e+00> : vector<256x128xf32>
    %43 = tpu.matmul %41, %42, %cst_19 {dimension_numbers = #tpu.dot_dimension_numbers<[1], [0], [0], [1], [0, 0, 1, 1], [], []>} : vector<256x128xbf16>, vector<128x128xbf16>, vector<256x128xf32> -> vector<256x128xf32>
    %44 = arith.addf %39, %43 : vector<256x128xf32>
    %45 = vector.extract_strided_slice %3 {offsets = [82, 0], sizes = [256, 128], strides = [1, 1]} : vector<384x128xf32> to vector<256x128xf32>
    %46 = arith.truncf %45 : vector<256x128xf32> to vector<256x128xbf16>
    %c1024 = arith.constant 1024 : index
    %c0_20 = arith.constant 0 : index
    %47 = vector.load %arg4[%c1024, %c0_20] : memref<1152x128xbf16, #tpu.memory_space<vmem>>, vector<128x128xbf16>
    %cst_21 = arith.constant dense<0.000000e+00> : vector<256x128xf32>
    %48 = tpu.matmul %46, %47, %cst_21 {dimension_numbers = #tpu.dot_dimension_numbers<[1], [0], [0], [1], [0, 0, 1, 1], [], []>} : vector<256x128xbf16>, vector<128x128xbf16>, vector<256x128xf32> -> vector<256x128xf32>
    %49 = arith.addf %44, %48 : vector<256x128xf32>
    %c0_22 = arith.constant 0 : index
    %c0_23 = arith.constant 0 : index
    %50 = vector.load %arg5[%c0_22, %c0_23] : memref<1x128xf32, #tpu.memory_space<vmem>>, vector<1x128xf32>
    %51 = vector.broadcast %50 : vector<1x128xf32> to vector<256x128xf32>
    %52 = arith.addf %49, %51 : vector<256x128xf32>
    %cst_24 = arith.constant 0.000000e+00 : f32
    %53 = vector.broadcast %cst_24 : f32 to vector<256x128xf32>
    %54 = arith.maximumf %52, %53 : vector<256x128xf32>
    %55 = arith.truncf %54 : vector<256x128xf32> to vector<256x128xbf16>
    %c0_25 = arith.constant 0 : index
    %c0_26 = arith.constant 0 : index
    %56 = vector.load %arg6[%c0_25, %c0_26] : memref<256x128xbf16, #tpu.memory_space<vmem>>, vector<256x128xbf16>
    tpu.vector_store %arg6[%c0_25, %c0_26], %55 {strides = array<i32>} : memref<256x128xbf16, #tpu.memory_space<vmem>>, vector<256x128xbf16>,
    return
  }
  func.func @transform_0(%arg0: i32, %arg1: i32) -> (i32, i32) {
    %c0_i32 = arith.constant 0 : i32
    %c0_i32_0 = arith.constant 0 : i32
    return %arg0, %c0_i32 : i32, i32
  }
  func.func @transform_1(%arg0: i32, %arg1: i32) -> (i32, i32) {
    %c1_i32 = arith.constant 1 : i32
    %0 = arith.addi %arg0, %c1_i32 : i32
    %c2_i32 = arith.constant 2 : i32
    %1 = arith.muli %0, %c2_i32 : i32
    %c0_i32 = arith.constant 0 : i32
    %c0_i32_0 = arith.constant 0 : i32
    return %1, %c0_i32 : i32, i32
  }
  func.func @transform_2(%arg0: i32, %arg1: i32) -> (i32, i32) {
    %c0_i32 = arith.constant 0 : i32
    %c0_i32_0 = arith.constant 0 : i32
    return %c0_i32, %arg1 : i32, i32
  }
  func.func @transform_3(%arg0: i32, %arg1: i32) -> (i32, i32) {
    %c0_i32 = arith.constant 0 : i32
    %c0_i32_0 = arith.constant 0 : i32
    return %c0_i32, %arg1 : i32, i32
  }
  func.func @transform_4(%arg0: i32, %arg1: i32) -> (i32, i32) {
    %c0_i32 = arith.constant 0 : i32
    return %arg0, %arg1 : i32, i32
  }
}

</mosaic_0001>

<llo_original>
// kernel: tpu_custom_call.1
$region0: #{tpu_custom_call.1}
  #allocation0 [shape = 'u32[]', space=smem, size = 0x4, offset = 0x4, fixed_abs, tag = 'smem constant byte address 0x4 - core index']
  #allocation1 [shape = 'u32[144,128]{1,0:T(1,128)}', space=vmem, size = 0x12000, scoped, tag = 'internal scratch']
  %s0 = inlined_call_operand.hbm [shape: bf16[3072,128], index: 0, kind: input, shape index: {}]
  %s1 = inlined_call_operand.hbm [shape: bf16[3072,128], index: 1, kind: input, shape index: {}]
  %s2 = inlined_call_operand.hbm [shape: bf16[1152,128], index: 2, kind: input, shape index: {}]
  %s3 = inlined_call_operand.vmem [shape: f32[1,128], index: 3, kind: input, shape index: {}]
  %s4 = inlined_call_operand.hbm [shape: bf16[2816,128], index: 4, kind: output, shape index: {}]
  %s5 = sld [smem:[#allocation0]]
  $region61: #{tpu_custom_call.1} parent=0
    _
  %s7 = ssub.s32 1, %s5
  %s8 = scalar_select 0, %s7, %s5
  $region1: #{tpu_custom_call.1} parent=0
    #allocation2 [shape = 'u8[131072]{0}', space=vmem, size = 0x20000, scoped, tag = 'input window, operand 0']
    #allocation3 [shape = 's32[2]{0}', space=sflag, size = 0x8, scoped, tag = 'scoped memory for tpu_custom_call.1']
    #allocation4 [shape = 's32[2]{0}', space=sflag, size = 0x8, scoped, tag = 'scoped memory for tpu_custom_call.1']
    #allocation5 [shape = 'u8[65536]{0}', space=vmem, size = 0x10000, scoped, tag = 'input window, operand 1']
    #allocation6 [shape = 's32[2]{0}', space=sflag, size = 0x8, scoped, tag = 'scoped memory for tpu_custom_call.1']
    #allocation7 [shape = 'u8[294912]{0}', space=vmem, size = 0x48000, scoped, tag = 'input window, operand 2, single buffered']
    #allocation8 [shape = 'u8[131072]{0}', space=vmem, size = 0x20000, scoped, tag = 'output window, operand 0']
    %9 = vsyncpa [#allocation3], 0
    %s10 = scalar_lea.sflag [#allocation3], 1
    %11 = vsyncpa %s10, 0
    %12 = vsyncpa [#allocation6], 0
    %s13 = scalar_lea.sflag [#allocation6], 1
    %14 = vsyncpa %s13, 0
    %15 = vsyncpa [#allocation4], 0
    %s16 = scalar_lea.sflag [#allocation4], 1
    %17 = vsyncpa %s16, 0
    loop: start=0, step=1, limit=13
    $region2: #{tpu_custom_call.1} parent=1 // loop_pre_header
      _
    $region3: #{tpu_custom_call.1} parent=1 // loop_header
      %s19 = sphi 0, %s23
      %p20 = scmp.ge.s32.totalorder %s19, 13
      %s26 = sphi 0, %s38
      %s27 = sphi 0, %s34
      %s28 = sphi 0, %s26
      %s29 = sphi 0, %s27
      %s30 = sphi 0, %s28
      %s31 = sphi 0, %s29
      %s41 = sphi 0, %s43
      %s44 = sphi 0, %s41
      %s45 = sphi 0, %s44
      %s61 = sphi 0, %s45
      %s71 = sphi 0, %s73
      %s74 = sphi 0, %s71
      %s75 = sphi 0, %s74
      %s91 = sphi 0, %s75
      %s97 = sphi 0, %s99
      %s100 = sphi 0, %s97
      %s101 = sphi 0, %s100
      %s117 = sphi 0, %s101
      %s123 = sphi 0, %s125
      %s126 = sphi 0, %s123
      %s127 = sphi 0, %s126
      %s143 = sphi 0, %s127
      %s151 = sphi 0, %s153
      %s154 = sphi 0, %s151
      %s155 = sphi 0, %s154
      %s171 = sphi 0, %s155
    $region4: #{tpu_custom_call.1} parent=1 // loop_header_branch
      %22 = sbr.rel (%p20) target = $region8
    $region5: #{tpu_custom_call.1} parent=1 // loop_body
      %s24 = ssub.s32 %s19, 1
      %s25 = ssub.s32 %s19, 2
      %s32 = sadd.s32 1, %s27
      %p33 = scmp.ge.s32.totalorder %s32, 1
      %s34 = scalar_select %p33, 0, %s32
      %s35 = sadd.s32 1, %s26
      %s36 = scalar_select %p33, %s35, %s26
      %p37 = scmp.ge.s32.totalorder %s36, 11
      %s38 = scalar_select %p37, 0, %s36
      %s39 = ssub.s32 %s26, %s38
      %p40 = scmp.eq.s32.totalorder %s39, 0
      %s42 = sadd.s32 %s41, 1
      %s43 = scalar_select %p40, %s41, %s42
      %p46 = pneg %p40
      %p47 = scmp.eq.s32.totalorder %s19, 10
      %p48 = por %p46, %p47
      %p49 = scmp.ne.s32.totalorder %s41, %s44
      %p50 = scmp.eq.s32.totalorder %s19, 0
      %p51 = por %p49, %p50
      %p52 = scmp.ne.s32.totalorder %s41, %s44
      %p53 = scmp.eq.s32.totalorder %s24, 10
      %p54 = por %p52, %p53
      %p55 = scmp.ne.s32.totalorder %s44, %s45
      %p56 = scmp.eq.s32.totalorder %s24, 0
      %p57 = por %p55, %p56
      %p58 = scmp.ne.s32.totalorder %s44, %s45
      %p59 = scmp.eq.s32.totalorder %s25, 10
      %p60 = por %p58, %p59
      %p62 = scmp.ne.s32.totalorder %s45, %s61
      %p63 = scmp.eq.s32.totalorder %s25, 0
      %p64 = por %p62, %p63
      %s65 = sadd.s32 %s26, 1
      %s66 = smul.u32 %s65, 2
      %s67 = sadd.s32 %s38, 1
      %s68 = smul.u32 %s67, 2
      %s69 = ssub.s32 %s66, %s68
      %p70 = scmp.eq.s32.totalorder %s69, 0
      %s72 = sadd.s32 %s71, 1
      %s73 = scalar_select %p70, %s71, %s72
      %p76 = pneg %p70
      %p77 = scmp.eq.s32.totalorder %s19, 10
      %p78 = por %p76, %p77
      %p79 = scmp.ne.s32.totalorder %s71, %s74
      %p80 = scmp.eq.s32.totalorder %s19, 0
      %p81 = por %p79, %p80
      %p82 = scmp.ne.s32.totalorder %s71, %s74
      %p83 = scmp.eq.s32.totalorder %s24, 10
      %p84 = por %p82, %p83
      %p85 = scmp.ne.s32.totalorder %s74, %s75
      %p86 = scmp.eq.s32.totalorder %s24, 0
      %p87 = por %p85, %p86
      %p88 = scmp.ne.s32.totalorder %s74, %s75
      %p89 = scmp.eq.s32.totalorder %s25, 10
      %p90 = por %p88, %p89
      %p92 = scmp.ne.s32.totalorder %s75, %s91
      %p93 = scmp.eq.s32.totalorder %s25, 0
      %p94 = por %p92, %p93
      %s95 = ssub.s32 %s27, %s34
      %p96 = scmp.eq.s32.totalorder %s95, 0
      %s98 = sadd.s32 %s97, 1
      %s99 = scalar_select %p96, %s97, %s98
      %p102 = pneg %p96
      %p103 = scmp.eq.s32.totalorder %s19, 10
      %p104 = por %p102, %p103
      %p105 = scmp.ne.s32.totalorder %s97, %s100
      %p106 = scmp.eq.s32.totalorder %s19, 0
      %p107 = por %p105, %p106
      %p108 = scmp.ne.s32.totalorder %s97, %s100
      %p109 = scmp.eq.s32.totalorder %s24, 10
      %p110 = por %p108, %p109
      %p111 = scmp.ne.s32.totalorder %s100, %s101
      %p112 = scmp.eq.s32.totalorder %s24, 0
      %p113 = por %p111, %p112
      %p114 = scmp.ne.s32.totalorder %s100, %s101
      %p115 = scmp.eq.s32.totalorder %s25, 10
      %p116 = por %p114, %p115
      %p118 = scmp.ne.s32.totalorder %s101, %s117
      %p119 = scmp.eq.s32.totalorder %s25, 0
      %p120 = por %p118, %p119
      %s121 = ssub.s32 %s27, %s34
      %p122 = scmp.eq.s32.totalorder %s121, 0
      %s124 = sadd.s32 %s123, 1
      %s125 = scalar_select %p122, %s123, %s124
      %p128 = pneg %p122
      %p129 = scmp.eq.s32.totalorder %s19, 10
      %p130 = por %p128, %p129
      %p131 = scmp.ne.s32.totalorder %s123, %s126
      %p132 = scmp.eq.s32.totalorder %s19, 0
      %p133 = por %p131, %p132
      %p134 = scmp.ne.s32.totalorder %s123, %s126
      %p135 = scmp.eq.s32.totalorder %s24, 10
      %p136 = por %p134, %p135
      %p137 = scmp.ne.s32.totalorder %s126, %s127
      %p138 = scmp.eq.s32.totalorder %s24, 0
      %p139 = por %p137, %p138
      %p140 = scmp.ne.s32.totalorder %s126, %s127
      %p141 = scmp.eq.s32.totalorder %s25, 10
      %p142 = por %p140, %p141
      %p144 = scmp.ne.s32.totalorder %s127, %s143
      %p145 = scmp.eq.s32.totalorder %s25, 0
      %p146 = por %p144, %p145
      %s147 = ssub.s32 %s26, %s38
      %s148 = ssub.s32 %s27, %s34
      %s149 = sor.u32 %s147, %s148
      %p150 = scmp.eq.s32.totalorder %s149, 0
      %s152 = sadd.s32 %s151, 1
      %s153 = scalar_select %p150, %s151, %s152
      %p156 = pneg %p150
      %p157 = scmp.eq.s32.totalorder %s19, 10
      %p158 = por %p156, %p157
      %p159 = scmp.ne.s32.totalorder %s151, %s154
      %p160 = scmp.eq.s32.totalorder %s19, 0
      %p161 = por %p159, %p160
      %p162 = scmp.ne.s32.totalorder %s151, %s154
      %p163 = scmp.eq.s32.totalorder %s24, 10
      %p164 = por %p162, %p163
      %p165 = scmp.ne.s32.totalorder %s154, %s155
      %p166 = scmp.eq.s32.totalorder %s24, 0
      %p167 = por %p165, %p166
      %p168 = scmp.ne.s32.totalorder %s154, %s155
      %p169 = scmp.eq.s32.totalorder %s25, 10
      %p170 = por %p168, %p169
      %p172 = scmp.ne.s32.totalorder %s155, %s171
      %p173 = scmp.eq.s32.totalorder %s25, 0
      %p174 = por %p172, %p173
      %p175 = scmp.le.s32.totalorder 1, %s19
      %p176 = scmp.lt.s32.totalorder %s19, 12
      %p177 = pnand %p175, %p176
      %p178 = pneg %p177
      // Predicated region
      $region9: #{tpu_custom_call.1} parent=5 // pred_check
        _
      $region10: #{tpu_custom_call.1} parent=5 // pred_check_branch
        %180 = sbr.rel (%p177) target = $region12
      $region11: #{tpu_custom_call.1} parent=5 // pred_region
        %s181 = ssub.s32 %s19, 1
        // Predicated region
        $region13: #{tpu_custom_call.1} parent=11 // pred_check
          %p182 = pneg %p113
        $region14: #{tpu_custom_call.1} parent=11 // pred_check_branch
          %184 = sbr.rel (%p182) target = $region16
        $region15: #{tpu_custom_call.1} parent=11 // pred_region
          %s186 = ssub.s32 9216, 9216
          %187 = vsyncadd [#allocation6], %s186
          %s188 = smul.addr %s29, 64
          %s189 = scalar_lea.hbm %s2, %s188
          %s190 = sshll.u32 [#allocation7], 4
          %s191 = int_to_ptr.vmem [resolvable:$true] %s190
          %196 = dma.hbm_to_vmem [thread:$0]  %s189, 9216, %s191, [#allocation6], 64, 64, 4
        $region16: #{tpu_custom_call.1} parent=11 // pred_fallthru
          _
        // Predicated region
        $region17: #{tpu_custom_call.1} parent=11 // pred_check
          %p197 = pneg %p139
        $region18: #{tpu_custom_call.1} parent=11 // pred_check_branch
          %199 = sbr.rel (%p197) target = $region20
        $region19: #{tpu_custom_call.1} parent=11 // pred_region
          %p200 = scmp.lt.s32.totalorder %s29, 0
          %s201 = scalar_select %p200, %s29, 0
          %s202 = scalar_lea.vmem %s3, %s201
        $region20: #{tpu_custom_call.1} parent=11 // pred_fallthru
          _
      $region12: #{tpu_custom_call.1} parent=5 // pred_fallthru
        _
      %p203 = scmp.lt.s32.totalorder %s19, 11
      // Predicated region
      $region21: #{tpu_custom_call.1} parent=5 // pred_check
        %p204 = pneg %p203
      $region22: #{tpu_custom_call.1} parent=5 // pred_check_branch
        %206 = sbr.rel (%p204) target = $region24
      $region23: #{tpu_custom_call.1} parent=5 // pred_region
        // Predicated region
        $region25: #{tpu_custom_call.1} parent=23 // pred_check
          %p207 = pneg %p51
        $region26: #{tpu_custom_call.1} parent=23 // pred_check_branch
          %209 = sbr.rel (%p207) target = $region28
        $region27: #{tpu_custom_call.1} parent=23 // pred_region
          %s210 = sand.u32 %s41, 1
          %s211 = scalar_lea.sflag [#allocation3], %s210
          %s212 = sand.u32 %s41, 1
          %s213 = smul.addr %s212, 128
          %s214 = scalar_lea.vmem [#allocation2], %s213
          %s215 = smul.u32 32, %s26
          %s217 = ssub.s32 2048, 2048
          %218 = vsyncadd %s211, %s217
          %s219 = smul.addr %s215, 64
          %s220 = scalar_lea.hbm %s0, %s219
          %s221 = sshll.u32 %s214, 4
          %s222 = int_to_ptr.vmem [resolvable:$true] %s221
          %227 = dma.hbm_to_vmem [thread:$0]  %s220, 2048, %s222, %s211, 64, 64, 4
        $region28: #{tpu_custom_call.1} parent=23 // pred_fallthru
          _
        // Predicated region
        $region29: #{tpu_custom_call.1} parent=23 // pred_check
          %p228 = pneg %p81
        $region30: #{tpu_custom_call.1} parent=23 // pred_check_branch
          %230 = sbr.rel (%p228) target = $region32
        $region31: #{tpu_custom_call.1} parent=23 // pred_region
          %s231 = sand.u32 %s19, 1
          %s232 = scalar_lea.sflag [#allocation6], %s231
          %s233 = sand.u32 %s71, 1
          %s234 = smul.addr %s233, 64
          %s235 = scalar_lea.vmem [#allocation5], %s234
          %s236 = sadd.s32 %s26, 1
          %s237 = smul.u32 %s236, 2
          %s238 = smul.u32 16, %s237
          %s240 = ssub.s32 1024, 1024
          %241 = vsyncadd %s232, %s240
          %s242 = smul.addr %s238, 64
          %s243 = scalar_lea.hbm %s1, %s242
          %s244 = sshll.u32 %s235, 4
          %s245 = int_to_ptr.vmem [resolvable:$true] %s244
          %250 = dma.hbm_to_vmem [thread:$0]  %s243, 1024, %s245, %s232, 64, 64, 4
        $region32: #{tpu_custom_call.1} parent=23 // pred_fallthru
          _
      $region24: #{tpu_custom_call.1} parent=5 // pred_fallthru
        _
      %p251 = scmp.le.s32.totalorder 1, %s19
      %p252 = scmp.lt.s32.totalorder %s19, 12
      %p253 = pnand %p251, %p252
      %p254 = pneg %p253
      // Predicated region
      $region33: #{tpu_custom_call.1} parent=5 // pred_check
        _
      $region34: #{tpu_custom_call.1} parent=5 // pred_check_branch
        %256 = sbr.rel (%p253) target = $region36
      $region35: #{tpu_custom_call.1} parent=5 // pred_region
        %s257 = ssub.s32 %s19, 1
        %s258 = sand.u32 %s44, 1
        %s259 = scalar_lea.sflag [#allocation3], %s258
        %s260 = sand.u32 %s44, 1
        %s261 = smul.addr %s260, 128
        %s262 = scalar_lea.vmem [#allocation2], %s261
        // Predicated region
        $region37: #{tpu_custom_call.1} parent=35 // pred_check
          %p263 = pneg %p57
        $region38: #{tpu_custom_call.1} parent=35 // pred_check_branch
          %265 = sbr.rel (%p263) target = $region40
        $region39: #{tpu_custom_call.1} parent=35 // pred_region
          %266 = dma.done %s259, 2048
        $region40: #{tpu_custom_call.1} parent=35 // pred_fallthru
          _
        %s267 = sand.u32 %s24, 1
        %s268 = scalar_lea.sflag [#allocation6], %s267
        %s269 = sand.u32 %s74, 1
        %s270 = smul.addr %s269, 64
        %s271 = scalar_lea.vmem [#allocation5], %s270
        // Predicated region
        $region41: #{tpu_custom_call.1} parent=35 // pred_check
          %p272 = pneg %p87
        $region42: #{tpu_custom_call.1} parent=35 // pred_check_branch
          %274 = sbr.rel (%p272) target = $region44
        $region43: #{tpu_custom_call.1} parent=35 // pred_region
          %275 = dma.done %s268, 1024
        $region44: #{tpu_custom_call.1} parent=35 // pred_fallthru
          _
        // Predicated region
        $region45: #{tpu_custom_call.1} parent=35 // pred_check
          %p276 = pneg %p113
        $region46: #{tpu_custom_call.1} parent=35 // pred_check_branch
          %278 = sbr.rel (%p276) target = $region48
        $region47: #{tpu_custom_call.1} parent=35 // pred_region
          %279 = dma.done [#allocation6], 9216
        $region48: #{tpu_custom_call.1} parent=35 // pred_fallthru
          _
        %s280 = sand.u32 %s44, 1
        %s281 = scalar_lea.sflag [#allocation3], %s280
        %s282 = sand.u32 %s44, 1
        %s283 = smul.addr %s282, 128
        %s284 = scalar_lea.vmem [#allocation2], %s283
        %p285 = pneg %p57
        %p286 = pneg %p54
        %s287 = sand.u32 %s24, 1
        %s288 = scalar_lea.sflag [#allocation6], %s287
        %s289 = sand.u32 %s74, 1
        %s290 = smul.addr %s289, 64
        %s291 = scalar_lea.vmem [#allocation5], %s290
        %p292 = pneg %p87
        %p293 = pneg %p84
        %p294 = pneg %p113
        %p295 = pneg %p110
        %p296 = scmp.lt.s32.totalorder %s29, 0
        %s297 = scalar_select %p296, %s29, 0
        %s298 = scalar_lea.vmem %s3, %s297
        %p299 = pneg %p139
        %p300 = pneg %p136
        %p301 = pneg %p167
        %p302 = pneg %p164
        %s303 = sand.u32 %s154, 1
        %s304 = scalar_lea.sflag [#allocation4], %s303
        %s305 = sand.u32 %s154, 1
        %s306 = smul.addr %s305, 128
        %s307 = scalar_lea.vmem [#allocation8], %s306
        %s308 = smul.u32 32, %s28
        %s309 = sadd.s32 %s28, 1
        %s310 = smul.u32 %s309, 2
        %s311 = smul.u32 16, %s310
        %p312 = scmp.lt.s32.totalorder %s29, 0
        %s313 = scalar_select %p312, %s29, 0
        %s314 = scalar_lea.vmem %s3, %s313
        %s315 = smul.u32 32, %s28
        %v317 = vld [vmem:[%s262] sm:$0xf]
        %v318 = vld [vmem:[%s262 + $0x4] sm:$0xf]
        %v319 = vld [vmem:[%s262 + $0x8] sm:$0xf]
        %v320 = vld [vmem:[%s262 + $0xc] sm:$0xf]
        %v321 = vld [vmem:[%s262 + $0x10] sm:$0xf]
        %v322 = vld [vmem:[%s262 + $0x14] sm:$0xf]
        %v323 = vld [vmem:[%s262 + $0x18] sm:$0xf]
        %v324 = vld [vmem:[%s262 + $0x1c] sm:$0xf]
        %v325 = vld [vmem:[%s262 + $0x20] sm:$0xf]
        %v326 = vld [vmem:[%s262 + $0x24] sm:$0xf]
        %v327 = vld [vmem:[%s262 + $0x28] sm:$0xf]
        %v328 = vld [vmem:[%s262 + $0x2c] sm:$0xf]
        %v329 = vld [vmem:[%s262 + $0x30] sm:$0xf]
        %v330 = vld [vmem:[%s262 + $0x34] sm:$0xf]
        %v331 = vld [vmem:[%s262 + $0x38] sm:$0xf]
        %v332 = vld [vmem:[%s262 + $0x3c] sm:$0xf]
        %v333 = vld [vmem:[%s262 + $0x40] sm:$0xf]
        %v334 = vld [vmem:[%s262 + $0x44] sm:$0xf]
        %v335 = vld [vmem:[%s262 + $0x48] sm:$0xf]
        %v336 = vld [vmem:[%s262 + $0x4c] sm:$0xf]
        %v337 = vld [vmem:[%s262 + $0x50] sm:$0xf]
        %v338 = vld [vmem:[%s262 + $0x54] sm:$0xf]
        %v339 = vld [vmem:[%s262 + $0x58] sm:$0xf]
        %v340 = vld [vmem:[%s262 + $0x5c] sm:$0xf]
        %v341 = vld [vmem:[%s262 + $0x60] sm:$0xf]
        %v342 = vld [vmem:[%s262 + $0x64] sm:$0xf]
        %v343 = vld [vmem:[%s262 + $0x68] sm:$0xf]
        %v344 = vld [vmem:[%s262 + $0x6c] sm:$0xf]
        %v345 = vld [vmem:[%s262 + $0x70] sm:$0xf]
        %v346 = vld [vmem:[%s262 + $0x74] sm:$0xf]
        %v347 = vld [vmem:[%s262 + $0x78] sm:$0xf]
        %v348 = vld [vmem:[%s262 + $0x7c] sm:$0xf]
        %v349 = vld [vmem:[%s271] sm:$0xf]
        %v350 = vld [vmem:[%s271 + $0x4] sm:$0xf]
        %v351 = vld [vmem:[%s271 + $0x8] sm:$0xf]
        %v352 = vld [vmem:[%s271 + $0xc] sm:$0xf]
        %v353 = vld [vmem:[%s271 + $0x10] sm:$0xf]
        %v354 = vld [vmem:[%s271 + $0x14] sm:$0xf]
        %v355 = vld [vmem:[%s271 + $0x18] sm:$0xf]
        %v356 = vld [vmem:[%s271 + $0x1c] sm:$0xf]
        %v357 = vld [vmem:[%s271 + $0x20] sm:$0xf]
        %v358 = vld [vmem:[%s271 + $0x24] sm:$0xf]
        %v359 = vld [vmem:[%s271 + $0x28] sm:$0xf]
        %v360 = vld [vmem:[%s271 + $0x2c] sm:$0xf]
        %v393 = vunpack.c.l.b16 %v317
        %v394 = vunpack.c.l.b16 %v318
        %v395 = vunpack.c.l.b16 %v319
        %v396 = vunpack.c.l.b16 %v320
        %v397 = vunpack.c.l.b16 %v321
        %v398 = vunpack.c.l.b16 %v322
        %v399 = vunpack.c.l.b16 %v323
        %v400 = vunpack.c.l.b16 %v324
        %v401 = vunpack.c.l.b16 %v325
        %v402 = vunpack.c.l.b16 %v326
        %v403 = vunpack.c.l.b16 %v327
        %v404 = vunpack.c.l.b16 %v328
        %v405 = vunpack.c.l.b16 %v329
        %v406 = vunpack.c.l.b16 %v330
        %v407 = vunpack.c.l.b16 %v331
        %v408 = vunpack.c.l.b16 %v332
        %v409 = vunpack.c.l.b16 %v333
        %v410 = vunpack.c.l.b16 %v334
        %v411 = vunpack.c.l.b16 %v335
        %v412 = vunpack.c.l.b16 %v336
        %v413 = vunpack.c.l.b16 %v337
        %v414 = vunpack.c.l.b16 %v338
        %v415 = vunpack.c.l.b16 %v339
        %v416 = vunpack.c.l.b16 %v340
        %v417 = vunpack.c.l.b16 %v341
        %v418 = vunpack.c.l.b16 %v342
        %v419 = vunpack.c.l.b16 %v343
        %v420 = vunpack.c.l.b16 %v344
        %v421 = vunpack.c.l.b16 %v345
        %v422 = vunpack.c.l.b16 %v346
        %v423 = vunpack.c.l.b16 %v347
        %v424 = vunpack.c.l.b16 %v348
        %v425 = vpack.c.b16 %v394, %v393
        %v426 = vpack.c.b16 %v396, %v395
        %v427 = vpack.c.b16 %v398, %v397
        %v428 = vpack.c.b16 %v400, %v399
        %v429 = vpack.c.b16 %v402, %v401
        %v430 = vpack.c.b16 %v404, %v403
        %v431 = vpack.c.b16 %v406, %v405
        %v432 = vpack.c.b16 %v408, %v407
        %v433 = vpack.c.b16 %v410, %v409
        %v434 = vpack.c.b16 %v412, %v411
        %v435 = vpack.c.b16 %v414, %v413
        %v436 = vpack.c.b16 %v416, %v415
        %v437 = vpack.c.b16 %v418, %v417
        %v438 = vpack.c.b16 %v420, %v419
        %v439 = vpack.c.b16 %v422, %v421
        %v440 = vpack.c.b16 %v424, %v423
        %v469 = vunpack.c.l.b16 %v349
        %v470 = vunpack.c.l.b16 %v350
        %v471 = vunpack.c.l.b16 %v351
        %v472 = vunpack.c.l.b16 %v352
        %v473 = vunpack.c.l.b16 %v353
        %v474 = vunpack.c.l.b16 %v354
        %v475 = vunpack.c.l.b16 %v355
        %v476 = vunpack.c.l.b16 %v356
        %v477 = vunpack.c.l.b16 %v357
        %v478 = vunpack.c.l.b16 %v358
        %v479 = vunpack.c.l.b16 %v359
        %v480 = vunpack.c.l.b16 %v360
        %v481 = vpack.c.b16 %v470, %v469
        %v482 = vpack.c.b16 %v472, %v471
        %v483 = vpack.c.b16 %v474, %v473
        %v484 = vpack.c.b16 %v476, %v475
        %v485 = vpack.c.b16 %v478, %v477
        %v486 = vpack.c.b16 %v480, %v479
        %v493 = vunpack.c.l.bf16 %v425
        %v494 = vunpack.c.h.bf16 %v425
        %v495 = vunpack.c.l.bf16 %v426
        %v496 = vunpack.c.h.bf16 %v426
        %v497 = vunpack.c.l.bf16 %v427
        %v498 = vunpack.c.h.bf16 %v427
        %v499 = vunpack.c.l.bf16 %v428
        %v500 = vunpack.c.h.bf16 %v428
        %v501 = vunpack.c.l.bf16 %v429
        %v502 = vunpack.c.h.bf16 %v429
        %v503 = vunpack.c.l.bf16 %v430
        %v504 = vunpack.c.h.bf16 %v430
        %v505 = vunpack.c.l.bf16 %v431
        %v506 = vunpack.c.h.bf16 %v431
        %v507 = vunpack.c.l.bf16 %v432
        %v508 = vunpack.c.h.bf16 %v432
        %v509 = vunpack.c.l.bf16 %v433
        %v510 = vunpack.c.h.bf16 %v433
        %v511 = vunpack.c.l.bf16 %v434
        %v512 = vunpack.c.h.bf16 %v434
        %v513 = vunpack.c.l.bf16 %v435
        %v514 = vunpack.c.h.bf16 %v435
        %v515 = vunpack.c.l.bf16 %v436
        %v516 = vunpack.c.h.bf16 %v436
        %v517 = vunpack.c.l.bf16 %v437
        %v518 = vunpack.c.h.bf16 %v437
        %v519 = vunpack.c.l.bf16 %v438
        %v520 = vunpack.c.h.bf16 %v438
        %v521 = vunpack.c.l.bf16 %v439
        %v522 = vunpack.c.h.bf16 %v439
        %v523 = vunpack.c.l.bf16 %v440
        %v524 = vunpack.c.h.bf16 %v440
        %v525 = vunpack.c.l.bf16 %v481
        %v526 = vunpack.c.h.bf16 %v481
        %v527 = vunpack.c.l.bf16 %v482
        %v528 = vunpack.c.h.bf16 %v482
        %v529 = vunpack.c.l.bf16 %v483
        %v530 = vunpack.c.h.bf16 %v483
        %v531 = vunpack.c.l.bf16 %v484
        %v532 = vunpack.c.h.bf16 %v484
        %v533 = vunpack.c.l.bf16 %v485
        %v534 = vunpack.c.h.bf16 %v485
        %v535 = vunpack.c.l.bf16 %v486
        %v536 = vpack.c.bf16 %v494, %v493
        %v537 = vpack.c.bf16 %v496, %v495
        %v538 = vpack.c.bf16 %v498, %v497
        %v539 = vpack.c.bf16 %v500, %v499
        %v540 = vpack.c.bf16 %v502, %v501
        %v541 = vpack.c.bf16 %v504, %v503
        %v542 = vpack.c.bf16 %v506, %v505
        %v543 = vpack.c.bf16 %v508, %v507
        %v544 = vpack.c.bf16 %v510, %v509
        %v545 = vpack.c.bf16 %v512, %v511
        %v546 = vpack.c.bf16 %v514, %v513
        %v547 = vpack.c.bf16 %v516, %v515
        %v548 = vpack.c.bf16 %v518, %v517
        %v549 = vpack.c.bf16 %v520, %v519
        %v550 = vpack.c.bf16 %v522, %v521
        %v551 = vpack.c.bf16 %v524, %v523
        %v552 = vld [vmem:[#allocation7] sm:$0xf]
        %v553 = vld [vmem:[#allocation7 + $0x4] sm:$0xf]
        %v554 = vld [vmem:[#allocation7 + $0x8] sm:$0xf]
        %v555 = vld [vmem:[#allocation7 + $0xc] sm:$0xf]
        %v556 = vld [vmem:[#allocation7 + $0x10] sm:$0xf]
        %v557 = vld [vmem:[#allocation7 + $0x14] sm:$0xf]
        %v558 = vld [vmem:[#allocation7 + $0x18] sm:$0xf]
        %v559 = vld [vmem:[#allocation7 + $0x1c] sm:$0xf]
        %v560 = vld [vmem:[#allocation7 + $0x20] sm:$0xf]
        %v561 = vld [vmem:[#allocation7 + $0x24] sm:$0xf]
        %v562 = vld [vmem:[#allocation7 + $0x28] sm:$0xf]
        %v563 = vld [vmem:[#allocation7 + $0x2c] sm:$0xf]
        %v564 = vld [vmem:[#allocation7 + $0x30] sm:$0xf]
        %v565 = vld [vmem:[#allocation7 + $0x34] sm:$0xf]
        %v566 = vld [vmem:[#allocation7 + $0x38] sm:$0xf]
        %v567 = vld [vmem:[#allocation7 + $0x3c] sm:$0xf]
        %v568 = vpack.c.bf16 %v525, %v525
        %v569 = vld [vmem:[#allocation7 + $0x40] sm:$0xf]
        %v570 = vld [vmem:[#allocation7 + $0x44] sm:$0xf]
        %v571 = vld [vmem:[#allocation7 + $0x48] sm:$0xf]
        %v572 = vld [vmem:[#allocation7 + $0x4c] sm:$0xf]
        %v573 = vld [vmem:[#allocation7 + $0x50] sm:$0xf]
        %v574 = vld [vmem:[#allocation7 + $0x54] sm:$0xf]
        %v575 = vld [vmem:[#allocation7 + $0x58] sm:$0xf]
        %v576 = vld [vmem:[#allocation7 + $0x5c] sm:$0xf]
        %v577 = vld [vmem:[#allocation7 + $0x60] sm:$0xf]
        %v578 = vld [vmem:[#allocation7 + $0x64] sm:$0xf]
        %v579 = vld [vmem:[#allocation7 + $0x68] sm:$0xf]
        %v580 = vld [vmem:[#allocation7 + $0x6c] sm:$0xf]
        %v581 = vld [vmem:[#allocation7 + $0x70] sm:$0xf]
        %v582 = vld [vmem:[#allocation7 + $0x74] sm:$0xf]
        %v583 = vld [vmem:[#allocation7 + $0x78] sm:$0xf]
        %v584 = vld [vmem:[#allocation7 + $0x7c] sm:$0xf]
        %vm585 = vsmask.f32 7424
        %v587 = vshrl.u32 %v536, 16
        %v589 = vshll.u32 %v536, 16
        %v591 = vrot.slane %v589, 1
        %v592 = vor.u32 %v587, %v591
        %v594 = vshll.u32 %v537, 16
        %v596 = vrot.slane %v594, 1
        %v597 = vsel %vm585, %v592, %v596
        %v598 = vshrl.u32 %v537, 16
        %v600 = vor.u32 %v598, %v596
        %v602 = vshll.u32 %v538, 16
        %v604 = vrot.slane %v602, 1
        %v605 = vsel %vm585, %v600, %v604
        %v606 = vshrl.u32 %v538, 16
        %v608 = vor.u32 %v606, %v604
        %v610 = vshll.u32 %v539, 16
        %v612 = vrot.slane %v610, 1
        %v613 = vsel %vm585, %v608, %v612
        %v614 = vshrl.u32 %v539, 16
        %v616 = vor.u32 %v614, %v612
        %v618 = vshll.u32 %v540, 16
        %v620 = vrot.slane %v618, 1
        %v621 = vsel %vm585, %v616, %v620
        %v622 = vshrl.u32 %v540, 16
        %v624 = vor.u32 %v622, %v620
        %v626 = vshll.u32 %v541, 16
        %v628 = vrot.slane %v626, 1
        %v629 = vsel %vm585, %v624, %v628
        %v630 = vshrl.u32 %v541, 16
        %v632 = vor.u32 %v630, %v628
        %v634 = vshll.u32 %v542, 16
        %v636 = vrot.slane %v634, 1
        %v637 = vsel %vm585, %v632, %v636
        %v638 = vshrl.u32 %v542, 16
        %v640 = vor.u32 %v638, %v636
        %v642 = vshll.u32 %v543, 16
        %v644 = vrot.slane %v642, 1
        %v645 = vsel %vm585, %v640, %v644
        %v646 = vshrl.u32 %v543, 16
        %v648 = vor.u32 %v646, %v644
        %v650 = vshll.u32 %v544, 16
        %v652 = vrot.slane %v650, 1
        %v653 = vsel %vm585, %v648, %v652
        %v654 = vshrl.u32 %v544, 16
        %v656 = vor.u32 %v654, %v652
        %v658 = vshll.u32 %v545, 16
        %v660 = vrot.slane %v658, 1
        %v661 = vsel %vm585, %v656, %v660
        %v662 = vshrl.u32 %v545, 16
        %v664 = vor.u32 %v662, %v660
        %v666 = vshll.u32 %v546, 16
        %v668 = vrot.slane %v666, 1
        %v669 = vsel %vm585, %v664, %v668
        %v670 = vshrl.u32 %v546, 16
        %v672 = vor.u32 %v670, %v668
        %v674 = vshll.u32 %v547, 16
        %v676 = vrot.slane %v674, 1
        %v677 = vsel %vm585, %v672, %v676
        %v678 = vshrl.u32 %v547, 16
        %v680 = vor.u32 %v678, %v676
        %v682 = vshll.u32 %v548, 16
        %v684 = vrot.slane %v682, 1
        %v685 = vsel %vm585, %v680, %v684
        %v686 = vshrl.u32 %v548, 16
        %v688 = vor.u32 %v686, %v684
        %v690 = vshll.u32 %v549, 16
        %v692 = vrot.slane %v690, 1
        %v693 = vsel %vm585, %v688, %v692
        %v694 = vshrl.u32 %v549, 16
        %v696 = vor.u32 %v694, %v692
        %v698 = vshll.u32 %v550, 16
        %v700 = vrot.slane %v698, 1
        %v701 = vsel %vm585, %v696, %v700
        %v702 = vshrl.u32 %v550, 16
        %v704 = vor.u32 %v702, %v700
        %v706 = vshll.u32 %v551, 16
        %v708 = vrot.slane %v706, 1
        %v709 = vsel %vm585, %v704, %v708
        %v710 = vshrl.u32 %v551, 16
        %v712 = vor.u32 %v710, %v708
        %v714 = vshll.u32 %v568, 16
        %v716 = vrot.slane %v714, 1
        %v717 = vsel %vm585, %v712, %v716
        %v750 = vunpack.c.l.b16 %v569
        %v751 = vunpack.c.l.b16 %v570
        %v752 = vunpack.c.l.b16 %v571
        %v753 = vunpack.c.l.b16 %v572
        %v754 = vunpack.c.l.b16 %v573
        %v755 = vunpack.c.l.b16 %v574
        %v756 = vunpack.c.l.b16 %v575
        %v757 = vunpack.c.l.b16 %v576
        %v758 = vunpack.c.l.b16 %v577
        %v759 = vunpack.c.l.b16 %v578
        %v760 = vunpack.c.l.b16 %v579
        %v761 = vunpack.c.l.b16 %v580
        %v762 = vunpack.c.l.b16 %v581
        %v763 = vunpack.c.l.b16 %v582
        %v764 = vunpack.c.l.b16 %v583
        %v765 = vunpack.c.l.b16 %v584
        %v766 = vpack.c.b16 %v751, %v750
        %v767 = vpack.c.b16 %v753, %v752
        %v768 = vpack.c.b16 %v755, %v754
        %v769 = vpack.c.b16 %v757, %v756
        %v770 = vpack.c.b16 %v759, %v758
        %v771 = vpack.c.b16 %v761, %v760
        %v772 = vpack.c.b16 %v763, %v762
        %v773 = vpack.c.b16 %v765, %v764
        %782 = vmatprep.subr.bf16.mxu0 0
        %783 = vmatpush1.bf16.msra.mxu0 %v766
        %784 = vmatprep.subr.bf16.mxu0 0
        %785 = vmatpush1.bf16.msra.mxu0 %v767
        %786 = vmatprep.subr.bf16.mxu0 0
        %787 = vmatpush1.bf16.msra.mxu0 %v768
        %788 = vmatprep.subr.bf16.mxu0 0
        %789 = vmatpush1.bf16.msra.mxu0 %v769
        %790 = vmatprep.subr.bf16.mxu0 0
        %791 = vmatpush1.bf16.msra.mxu0 %v770
        %792 = vmatprep.subr.bf16.mxu0 0
        %793 = vmatpush1.bf16.msra.mxu0 %v771
        %794 = vmatprep.subr.bf16.mxu0 0
        %795 = vmatpush1.bf16.msra.mxu0 %v772
        %796 = vmatprep.subr.bf16.mxu0 0
        %797 = vmatpush1.bf16.msra.mxu0 %v773
        %798 = vmatprep.subr.bf16.mxu0 0
        %799 = vmatpush1.bf16.msra.mxu0 0
        %800 = vmatprep.subr.bf16.mxu0 0
        %801 = vmatpush1.bf16.msra.mxu0 0
        %802 = vmatprep.subr.bf16.mxu0 0
        %803 = vmatpush1.bf16.msra.mxu0 0
        %804 = vmatprep.subr.bf16.mxu0 0
        %805 = vmatpush1.bf16.msra.mxu0 0
        %806 = vmatprep.subr.bf16.mxu0 0
        %807 = vmatpush1.bf16.msra.mxu0 0
        %808 = vmatprep.subr.bf16.mxu0 0
        %809 = vmatpush1.bf16.msra.mxu0 0
        %810 = vmatprep.subr.bf16.mxu0 0
        %811 = vmatpush1.bf16.msra.mxu0 0
        %812 = vmatprep.subr.bf16.mxu0 0
        %813 = vmatpush1.bf16.msra.mxu0 0
        %814 = vmatprep.mubr.bf16.mxu0 0
        %815 = vmatmul.mubr.bf16.gmra.mrb[0].mxu0 %v597
        %v816 = vpop.f32.mrb[0].mxu0
        %v817 = vadd.f32 0.0, %v816
        %v818 = vpop.f32.mrb[0].mxu0
        %v819 = vpop.f32.mrb[0].mxu0
        %v820 = vadd.f32 0.0, %v819
        %v821 = vpop.f32.mrb[0].mxu0
        %822 = vmatprep.mubr.bf16.mxu0 0
        %823 = vmatmul.mubr.bf16.gmra.mrb[0].mxu0 %v605
        %v824 = vpop.f32.mrb[0].mxu0
        %v825 = vadd.f32 0.0, %v824
        %v826 = vpop.f32.mrb[0].mxu0
        %v827 = vpop.f32.mrb[0].mxu0
        %v828 = vadd.f32 0.0, %v827
        %v829 = vpop.f32.mrb[0].mxu0
        %830 = vmatprep.mubr.bf16.mxu0 0
        %831 = vmatmul.mubr.bf16.gmra.mrb[0].mxu0 %v613
        %v832 = vpop.f32.mrb[0].mxu0
        %v833 = vadd.f32 0.0, %v832
        %v834 = vpop.f32.mrb[0].mxu0
        %v835 = vpop.f32.mrb[0].mxu0
        %v836 = vadd.f32 0.0, %v835
        %v837 = vpop.f32.mrb[0].mxu0
        %838 = vmatprep.mubr.bf16.mxu0 0
        %839 = vmatmul.mubr.bf16.gmra.mrb[0].mxu0 %v621
        %v840 = vpop.f32.mrb[0].mxu0
        %v841 = vadd.f32 0.0, %v840
        %v842 = vpop.f32.mrb[0].mxu0
        %v843 = vpop.f32.mrb[0].mxu0
        %v844 = vadd.f32 0.0, %v843
        %v845 = vpop.f32.mrb[0].mxu0
        %846 = vmatprep.mubr.bf16.mxu0 0
        %847 = vmatmul.mubr.bf16.gmra.mrb[0].mxu0 %v629
        %v848 = vpop.f32.mrb[0].mxu0
        %v849 = vadd.f32 0.0, %v848
        %v850 = vpop.f32.mrb[0].mxu0
        %v851 = vpop.f32.mrb[0].mxu0
        %v852 = vadd.f32 0.0, %v851
        %v853 = vpop.f32.mrb[0].mxu0
        %854 = vmatprep.mubr.bf16.mxu0 0
        %855 = vmatmul.mubr.bf16.gmra.mrb[0].mxu0 %v637
        %v856 = vpop.f32.mrb[0].mxu0
        %v857 = vadd.f32 0.0, %v856
        %v858 = vpop.f32.mrb[0].mxu0
        %v859 = vpop.f32.mrb[0].mxu0
        %v860 = vadd.f32 0.0, %v859
        %v861 = vpop.f32.mrb[0].mxu0
        %862 = vmatprep.mubr.bf16.mxu0 0
        %863 = vmatmul.mubr.bf16.gmra.mrb[0].mxu0 %v645
        %v864 = vpop.f32.mrb[0].mxu0
        %v865 = vadd.f32 0.0, %v864
        %v866 = vpop.f32.mrb[0].mxu0
        %v867 = vpop.f32.mrb[0].mxu0
        %v868 = vadd.f32 0.0, %v867
        %v869 = vpop.f32.mrb[0].mxu0
        %870 = vmatprep.mubr.bf16.mxu0 0
        %871 = vmatmul.mubr.bf16.gmra.mrb[0].mxu0 %v653
        %v872 = vpop.f32.mrb[0].mxu0
        %v873 = vadd.f32 0.0, %v872
        %v874 = vpop.f32.mrb[0].mxu0
        %v875 = vpop.f32.mrb[0].mxu0
        %v876 = vadd.f32 0.0, %v875
        %v877 = vpop.f32.mrb[0].mxu0
        %878 = vmatprep.mubr.bf16.mxu0 0
        %879 = vmatmul.mubr.bf16.gmra.mrb[0].mxu0 %v661
        %v880 = vpop.f32.mrb[0].mxu0
        %v881 = vadd.f32 0.0, %v880
        %v882 = vpop.f32.mrb[0].mxu0
        %v883 = vpop.f32.mrb[0].mxu0
        %v884 = vadd.f32 0.0, %v883
        %v885 = vpop.f32.mrb[0].mxu0
        %886 = vmatprep.mubr.bf16.mxu0 0
        %887 = vmatmul.mubr.bf16.gmra.mrb[0].mxu0 %v669
        %v888 = vpop.f32.mrb[0].mxu0
        %v889 = vadd.f32 0.0, %v888
        %v890 = vpop.f32.mrb[0].mxu0
        %v891 = vpop.f32.mrb[0].mxu0
        %v892 = vadd.f32 0.0, %v891
        %v893 = vpop.f32.mrb[0].mxu0
        %894 = vmatprep.mubr.bf16.mxu0 0
        %895 = vmatmul.mubr.bf16.gmra.mrb[0].mxu0 %v677
        %v896 = vpop.f32.mrb[0].mxu0
        %v897 = vadd.f32 0.0, %v896
        %v898 = vpop.f32.mrb[0].mxu0
        %v899 = vpop.f32.mrb[0].mxu0
        %v900 = vadd.f32 0.0, %v899
        %v901 = vpop.f32.mrb[0].mxu0
        %902 = vmatprep.mubr.bf16.mxu0 0
        %903 = vmatmul.mubr.bf16.gmra.mrb[0].mxu0 %v685
        %v904 = vpop.f32.mrb[0].mxu0
        %v905 = vadd.f32 0.0, %v904
        %v906 = vpop.f32.mrb[0].mxu0
        %v907 = vpop.f32.mrb[0].mxu0
        %v908 = vadd.f32 0.0, %v907
        %v909 = vpop.f32.mrb[0].mxu0
        %910 = vmatprep.mubr.bf16.mxu0 0
        %911 = vmatmul.mubr.bf16.gmra.mrb[0].mxu0 %v693
        %v912 = vpop.f32.mrb[0].mxu0
        %v913 = vadd.f32 0.0, %v912
        %v914 = vpop.f32.mrb[0].mxu0
        %v915 = vpop.f32.mrb[0].mxu0
        %v916 = vadd.f32 0.0, %v915
        %v917 = vpop.f32.mrb[0].mxu0
        %918 = vmatprep.mubr.bf16.mxu0 0
        %919 = vmatmul.mubr.bf16.gmra.mrb[0].mxu0 %v701
        %v920 = vpop.f32.mrb[0].mxu0
        %v921 = vadd.f32 0.0, %v920
        %v922 = vpop.f32.mrb[0].mxu0
        %v923 = vpop.f32.mrb[0].mxu0
        %v924 = vadd.f32 0.0, %v923
        %v925 = vpop.f32.mrb[0].mxu0
        %926 = vmatprep.mubr.bf16.mxu0 0
        %927 = vmatmul.mubr.bf16.gmra.mrb[0].mxu0 %v709
        %v928 = vpop.f32.mrb[0].mxu0
        %v929 = vadd.f32 0.0, %v928
        %v930 = vpop.f32.mrb[0].mxu0
        %v931 = vpop.f32.mrb[0].mxu0
        %v932 = vadd.f32 0.0, %v931
        %v933 = vpop.f32.mrb[0].mxu0
        %934 = vmatprep.mubr.bf16.mxu0 0
        %935 = vmatmul.mubr.bf16.gmra.mrb[0].mxu0 %v717
        %v936 = vpop.f32.mrb[0].mxu0
        %v937 = vadd.f32 0.0, %v936
        %v938 = vpop.f32.mrb[0].mxu0
        %v939 = vpop.f32.mrb[0].mxu0
        %v940 = vadd.f32 0.0, %v939
        %v941 = vpop.f32.mrb[0].mxu0
        %942 = vdwg.mxu0
        %v959 = vunpack.c.l.b16 %v552
        %v960 = vunpack.c.l.b16 %v553
        %v961 = vunpack.c.l.b16 %v554
        %v962 = vunpack.c.l.b16 %v555
        %v963 = vunpack.c.l.b16 %v556
        %v964 = vunpack.c.l.b16 %v557
        %v965 = vunpack.c.l.b16 %v558
        %v966 = vunpack.c.l.b16 %v559
        %v967 = vunpack.c.l.b16 %v560
        %v968 = vunpack.c.l.b16 %v561
        %v969 = vunpack.c.l.b16 %v562
        %v970 = vunpack.c.l.b16 %v563
        %v971 = vunpack.c.l.b16 %v564
        %v972 = vunpack.c.l.b16 %v565
        %v973 = vunpack.c.l.b16 %v566
        %v974 = vunpack.c.l.b16 %v567
        %v975 = vpack.c.b16 %v960, %v959
        %v976 = vpack.c.b16 %v962, %v961
        %v977 = vpack.c.b16 %v964, %v963
        %v978 = vpack.c.b16 %v966, %v965
        %v979 = vpack.c.b16 %v968, %v967
        %v980 = vpack.c.b16 %v970, %v969
        %v981 = vpack.c.b16 %v972, %v971
        %v982 = vpack.c.b16 %v974, %v973
        %991 = vmatprep.subr.bf16.mxu0 0
        %992 = vmatpush1.bf16.msra.mxu0 %v975
        %993 = vmatprep.subr.bf16.mxu0 0
        %994 = vmatpush1.bf16.msra.mxu0 %v976
        %995 = vmatprep.subr.bf16.mxu0 0
        %996 = vmatpush1.bf16.msra.mxu0 %v977
        %997 = vmatprep.subr.bf16.mxu0 0
        %998 = vmatpush1.bf16.msra.mxu0 %v978
        %999 = vmatprep.subr.bf16.mxu0 0
        %1000 = vmatpush1.bf16.msra.mxu0 %v979
        %1001 = vmatprep.subr.bf16.mxu0 0
        %1002 = vmatpush1.bf16.msra.mxu0 %v980
        %1003 = vmatprep.subr.bf16.mxu0 0
        %1004 = vmatpush1.bf16.msra.mxu0 %v981
        %1005 = vmatprep.subr.bf16.mxu0 0
        %1006 = vmatpush1.bf16.msra.mxu0 %v982
        %1007 = vmatprep.subr.bf16.mxu0 0
        %1008 = vmatpush1.bf16.msra.mxu0 0
        %1009 = vmatprep.subr.bf16.mxu0 0
        %1010 = vmatpush1.bf16.msra.mxu0 0
        %1011 = vmatprep.subr.bf16.mxu0 0
        %1012 = vmatpush1.bf16.msra.mxu0 0
        %1013 = vmatprep.subr.bf16.mxu0 0
        %1014 = vmatpush1.bf16.msra.mxu0 0
        %1015 = vmatprep.subr.bf16.mxu0 0
        %1016 = vmatpush1.bf16.msra.mxu0 0
        %1017 = vmatprep.subr.bf16.mxu0 0
        %1018 = vmatpush1.bf16.msra.mxu0 0
        %1019 = vmatprep.subr.bf16.mxu0 0
        %1020 = vmatpush1.bf16.msra.mxu0 0
        %1021 = vmatprep.subr.bf16.mxu0 0
        %1022 = vmatpush1.bf16.msra.mxu0 0
        %1023 = vmatprep.mubr.bf16.mxu0 0
        %1024 = vmatmul.mubr.bf16.gmra.mrb[0].mxu0 %v536
        %v1025 = vpop.f32.mrb[0].mxu0
        %v1026 = vadd.f32 %v817, %v1025
        %v1027 = vpop.f32.mrb[0].mxu0
        %v1028 = vpop.f32.mrb[0].mxu0
        %v1029 = vadd.f32 %v820, %v1028
        %v1030 = vpop.f32.mrb[0].mxu0
        %1031 = vmatprep.mubr.bf16.mxu0 0
        %1032 = vmatmul.mubr.bf16.gmra.mrb[0].mxu0 %v537
        %v1033 = vpop.f32.mrb[0].mxu0
        %v1034 = vadd.f32 %v825, %v1033
        %v1035 = vpop.f32.mrb[0].mxu0
        %v1036 = vpop.f32.mrb[0].mxu0
        %v1037 = vadd.f32 %v828, %v1036
        %v1038 = vpop.f32.mrb[0].mxu0
        %1039 = vmatprep.mubr.bf16.mxu0 0
        %1040 = vmatmul.mubr.bf16.gmra.mrb[0].mxu0 %v538
        %v1041 = vpop.f32.mrb[0].mxu0
        %v1042 = vadd.f32 %v833, %v1041
        %v1043 = vpop.f32.mrb[0].mxu0
        %v1044 = vpop.f32.mrb[0].mxu0
        %v1045 = vadd.f32 %v836, %v1044
        %v1046 = vpop.f32.mrb[0].mxu0
        %1047 = vmatprep.mubr.bf16.mxu0 0
        %1048 = vmatmul.mubr.bf16.gmra.mrb[0].mxu0 %v539
        %v1049 = vpop.f32.mrb[0].mxu0
        %v1050 = vadd.f32 %v841, %v1049
        %v1051 = vpop.f32.mrb[0].mxu0
        %v1052 = vpop.f32.mrb[0].mxu0
        %v1053 = vadd.f32 %v844, %v1052
        %v1054 = vpop.f32.mrb[0].mxu0
        %1055 = vmatprep.mubr.bf16.mxu0 0
        %1056 = vmatmul.mubr.bf16.gmra.mrb[0].mxu0 %v540
        %v1057 = vpop.f32.mrb[0].mxu0
        %v1058 = vadd.f32 %v849, %v1057
        %v1059 = vpop.f32.mrb[0].mxu0
        %v1060 = vpop.f32.mrb[0].mxu0
        %v1061 = vadd.f32 %v852, %v1060
        %v1062 = vpop.f32.mrb[0].mxu0
        %1063 = vmatprep.mubr.bf16.mxu0 0
        %1064 = vmatmul.mubr.bf16.gmra.mrb[0].mxu0 %v541
        %v1065 = vpop.f32.mrb[0].mxu0
        %v1066 = vadd.f32 %v857, %v1065
        %v1067 = vpop.f32.mrb[0].mxu0
        %v1068 = vpop.f32.mrb[0].mxu0
        %v1069 = vadd.f32 %v860, %v1068
        %v1070 = vpop.f32.mrb[0].mxu0
        %1071 = vmatprep.mubr.bf16.mxu0 0
        %1072 = vmatmul.mubr.bf16.gmra.mrb[0].mxu0 %v542
        %v1073 = vpop.f32.mrb[0].mxu0
        %v1074 = vadd.f32 %v865, %v1073
        %v1075 = vpop.f32.mrb[0].mxu0
        %v1076 = vpop.f32.mrb[0].mxu0
        %v1077 = vadd.f32 %v868, %v1076
        %v1078 = vpop.f32.mrb[0].mxu0
        %1079 = vmatprep.mubr.bf16.mxu0 0
        %1080 = vmatmul.mubr.bf16.gmra.mrb[0].mxu0 %v543
        %v1081 = vpop.f32.mrb[0].mxu0
        %v1082 = vadd.f32 %v873, %v1081
        %v1083 = vpop.f32.mrb[0].mxu0
        %v1084 = vpop.f32.mrb[0].mxu0
        %v1085 = vadd.f32 %v876, %v1084
        %v1086 = vpop.f32.mrb[0].mxu0
        %1087 = vmatprep.mubr.bf16.mxu0 0
        %1088 = vmatmul.mubr.bf16.gmra.mrb[0].mxu0 %v544
        %v1089 = vpop.f32.mrb[0].mxu0
        %v1090 = vadd.f32 %v881, %v1089
        %v1091 = vpop.f32.mrb[0].mxu0
        %v1092 = vpop.f32.mrb[0].mxu0
        %v1093 = vadd.f32 %v884, %v1092
        %v1094 = vpop.f32.mrb[0].mxu0
        %1095 = vmatprep.mubr.bf16.mxu0 0
        %1096 = vmatmul.mubr.bf16.gmra.mrb[0].mxu0 %v545
        %v1097 = vpop.f32.mrb[0].mxu0
        %v1098 = vadd.f32 %v889, %v1097
        %v1099 = vpop.f32.mrb[0].mxu0
        %v1100 = vpop.f32.mrb[0].mxu0
        %v1101 = vadd.f32 %v892, %v1100
        %v1102 = vpop.f32.mrb[0].mxu0
        %1103 = vmatprep.mubr.bf16.mxu0 0
        %1104 = vmatmul.mubr.bf16.gmra.mrb[0].mxu0 %v546
        %v1105 = vpop.f32.mrb[0].mxu0
        %v1106 = vadd.f32 %v897, %v1105
        %v1107 = vpop.f32.mrb[0].mxu0
        %v1108 = vpop.f32.mrb[0].mxu0
        %v1109 = vadd.f32 %v900, %v1108
        %v1110 = vpop.f32.mrb[0].mxu0
        %1111 = vmatprep.mubr.bf16.mxu0 0
        %1112 = vmatmul.mubr.bf16.gmra.mrb[0].mxu0 %v547
        %v1113 = vpop.f32.mrb[0].mxu0
        %v1114 = vadd.f32 %v905, %v1113
        %v1115 = vpop.f32.mrb[0].mxu0
        %v1116 = vpop.f32.mrb[0].mxu0
        %v1117 = vadd.f32 %v908, %v1116
        %v1118 = vpop.f32.mrb[0].mxu0
        %1119 = vmatprep.mubr.bf16.mxu0 0
        %1120 = vmatmul.mubr.bf16.gmra.mrb[0].mxu0 %v548
        %v1121 = vpop.f32.mrb[0].mxu0
        %v1122 = vadd.f32 %v913, %v1121
        %v1123 = vpop.f32.mrb[0].mxu0
        %v1124 = vpop.f32.mrb[0].mxu0
        %v1125 = vadd.f32 %v916, %v1124
        %v1126 = vpop.f32.mrb[0].mxu0
        %1127 = vmatprep.mubr.bf16.mxu0 0
        %1128 = vmatmul.mubr.bf16.gmra.mrb[0].mxu0 %v549
        %v1129 = vpop.f32.mrb[0].mxu0
        %v1130 = vadd.f32 %v921, %v1129
        %v1131 = vpop.f32.mrb[0].mxu0
        %v1132 = vpop.f32.mrb[0].mxu0
        %v1133 = vadd.f32 %v924, %v1132
        %v1134 = vpop.f32.mrb[0].mxu0
        %1135 = vmatprep.mubr.bf16.mxu0 0
        %1136 = vmatmul.mubr.bf16.gmra.mrb[0].mxu0 %v550
        %v1137 = vpop.f32.mrb[0].mxu0
        %v1138 = vadd.f32 %v929, %v1137
        %v1139 = vpop.f32.mrb[0].mxu0
        %v1140 = vpop.f32.mrb[0].mxu0
        %v1141 = vadd.f32 %v932, %v1140
        %v1142 = vpop.f32.mrb[0].mxu0
        %1143 = vmatprep.mubr.bf16.mxu0 0
        %1144 = vmatmul.mubr.bf16.gmra.mrb[0].mxu0 %v551
        %v1145 = vpop.f32.mrb[0].mxu0
        %v1146 = vadd.f32 %v937, %v1145
        %v1147 = vpop.f32.mrb[0].mxu0
        %v1148 = vpop.f32.mrb[0].mxu0
        %v1149 = vadd.f32 %v940, %v1148
        %v1150 = vpop.f32.mrb[0].mxu0
        %1151 = vdwg.mxu0
        %v1152 = vld [vmem:[#allocation7 + $0x80] sm:$0xf]
        %v1153 = vld [vmem:[#allocation7 + $0x84] sm:$0xf]
        %v1154 = vld [vmem:[#allocation7 + $0x88] sm:$0xf]
        %v1155 = vld [vmem:[#allocation7 + $0x8c] sm:$0xf]
        %v1156 = vld [vmem:[#allocation7 + $0x90] sm:$0xf]
        %v1157 = vld [vmem:[#allocation7 + $0x94] sm:$0xf]
        %v1158 = vld [vmem:[#allocation7 + $0x98] sm:$0xf]
        %v1159 = vld [vmem:[#allocation7 + $0x9c] sm:$0xf]
        %v1160 = vld [vmem:[#allocation7 + $0xa0] sm:$0xf]
        %v1161 = vld [vmem:[#allocation7 + $0xa4] sm:$0xf]
        %v1162 = vld [vmem:[#allocation7 + $0xa8] sm:$0xf]
        %v1163 = vld [vmem:[#allocation7 + $0xac] sm:$0xf]
        %v1164 = vld [vmem:[#allocation7 + $0xb0] sm:$0xf]
        %v1165 = vld [vmem:[#allocation7 + $0xb4] sm:$0xf]
        %v1166 = vld [vmem:[#allocation7 + $0xb8] sm:$0xf]
        %v1167 = vld [vmem:[#allocation7 + $0xbc] sm:$0xf]
        %vm1185 = vcmask 1046528
        %v1186 = vrot.slane %v536, 1
        %v1187 = vrot.slane %v537, 1
        %v1188 = vsel %vm1185, %v1186, %v1187
        %v1189 = vrot.slane %v538, 1
        %v1190 = vsel %vm1185, %v1187, %v1189
        %v1191 = vrot.slane %v539, 1
        %v1192 = vsel %vm1185, %v1189, %v1191
        %v1193 = vrot.slane %v540, 1
        %v1194 = vsel %vm1185, %v1191, %v1193
        %v1195 = vrot.slane %v541, 1
        %v1196 = vsel %vm1185, %v1193, %v1195
        %v1197 = vrot.slane %v542, 1
        %v1198 = vsel %vm1185, %v1195, %v1197
        %v1199 = vrot.slane %v543, 1
        %v1200 = vsel %vm1185, %v1197, %v1199
        %v1201 = vrot.slane %v544, 1
        %v1202 = vsel %vm1185, %v1199, %v1201
        %v1203 = vrot.slane %v545, 1
        %v1204 = vsel %vm1185, %v1201, %v1203
        %v1205 = vrot.slane %v546, 1
        %v1206 = vsel %vm1185, %v1203, %v1205
        %v1207 = vrot.slane %v547, 1
        %v1208 = vsel %vm1185, %v1205, %v1207
        %v1209 = vrot.slane %v548, 1
        %v1210 = vsel %vm1185, %v1207, %v1209
        %v1211 = vrot.slane %v549, 1
        %v1212 = vsel %vm1185, %v1209, %v1211
        %v1213 = vrot.slane %v550, 1
        %v1214 = vsel %vm1185, %v1211, %v1213
        %v1215 = vrot.slane %v551, 1
        %v1216 = vsel %vm1185, %v1213, %v1215
        %v1217 = vrot.slane %v568, 1
        %v1218 = vsel %vm1185, %v1215, %v1217
        %v1251 = vunpack.c.l.b16 %v1152
        %v1252 = vunpack.c.l.b16 %v1153
        %v1253 = vunpack.c.l.b16 %v1154
        %v1254 = vunpack.c.l.b16 %v1155
        %v1255 = vunpack.c.l.b16 %v1156
        %v1256 = vunpack.c.l.b16 %v1157
        %v1257 = vunpack.c.l.b16 %v1158
        %v1258 = vunpack.c.l.b16 %v1159
        %v1259 = vunpack.c.l.b16 %v1160
        %v1260 = vunpack.c.l.b16 %v1161
        %v1261 = vunpack.c.l.b16 %v1162
        %v1262 = vunpack.c.l.b16 %v1163
        %v1263 = vunpack.c.l.b16 %v1164
        %v1264 = vunpack.c.l.b16 %v1165
        %v1265 = vunpack.c.l.b16 %v1166
        %v1266 = vunpack.c.l.b16 %v1167
        %v1267 = vpack.c.b16 %v1252, %v1251
        %v1268 = vpack.c.b16 %v1254, %v1253
        %v1269 = vpack.c.b16 %v1256, %v1255
        %v1270 = vpack.c.b16 %v1258, %v1257
        %v1271 = vpack.c.b16 %v1260, %v1259
        %v1272 = vpack.c.b16 %v1262, %v1261
        %v1273 = vpack.c.b16 %v1264, %v1263
        %v1274 = vpack.c.b16 %v1266, %v1265
        %1283 = vmatprep.subr.bf16.mxu0 0
        %1284 = vmatpush1.bf16.msra.mxu0 %v1267
        %1285 = vmatprep.subr.bf16.mxu0 0
        %1286 = vmatpush1.bf16.msra.mxu0 %v1268
        %1287 = vmatprep.subr.bf16.mxu0 0
        %1288 = vmatpush1.bf16.msra.mxu0 %v1269
        %1289 = vmatprep.subr.bf16.mxu0 0
        %1290 = vmatpush1.bf16.msra.mxu0 %v1270
        %1291 = vmatprep.subr.bf16.mxu0 0
        %1292 = vmatpush1.bf16.msra.mxu0 %v1271
        %1293 = vmatprep.subr.bf16.mxu0 0
        %1294 = vmatpush1.bf16.msra.mxu0 %v1272
        %1295 = vmatprep.subr.bf16.mxu0 0
        %1296 = vmatpush1.bf16.msra.mxu0 %v1273
        %1297 = vmatprep.subr.bf16.mxu0 0
        %1298 = vmatpush1.bf16.msra.mxu0 %v1274
        %1299 = vmatprep.subr.bf16.mxu0 0
        %1300 = vmatpush1.bf16.msra.mxu0 0
        %1301 = vmatprep.subr.bf16.mxu0 0
        %1302 = vmatpush1.bf16.msra.mxu0 0
        %1303 = vmatprep.subr.bf16.mxu0 0
        %1304 = vmatpush1.bf16.msra.mxu0 0
        %1305 = vmatprep.subr.bf16.mxu0 0
        %1306 = vmatpush1.bf16.msra.mxu0 0
        %1307 = vmatprep.subr.bf16.mxu0 0
        %1308 = vmatpush1.bf16.msra.mxu0 0
        %1309 = vmatprep.subr.bf16.mxu0 0
        %1310 = vmatpush1.bf16.msra.mxu0 0
        %1311 = vmatprep.subr.bf16.mxu0 0
        %1312 = vmatpush1.bf16.msra.mxu0 0
        %1313 = vmatprep.subr.bf16.mxu0 0
        %1314 = vmatpush1.bf16.msra.mxu0 0
        %1315 = vmatprep.mubr.bf16.mxu0 0
        %1316 = vmatmul.mubr.bf16.gmra.mrb[0].mxu0 %v1188
        %v1317 = vpop.f32.mrb[0].mxu0
        %v1318 = vadd.f32 0.0, %v1317
        %v1319 = vpop.f32.mrb[0].mxu0
        %v1320 = vpop.f32.mrb[0].mxu0
        %v1321 = vadd.f32 0.0, %v1320
        %v1322 = vpop.f32.mrb[0].mxu0
        %1323 = vmatprep.mubr.bf16.mxu0 0
        %1324 = vmatmul.mubr.bf16.gmra.mrb[0].mxu0 %v1190
        %v1325 = vpop.f32.mrb[0].mxu0
        %v1326 = vadd.f32 0.0, %v1325
        %v1327 = vpop.f32.mrb[0].mxu0
        %v1328 = vpop.f32.mrb[0].mxu0
        %v1329 = vadd.f32 0.0, %v1328
        %v1330 = vpop.f32.mrb[0].mxu0
        %1331 = vmatprep.mubr.bf16.mxu0 0
        %1332 = vmatmul.mubr.bf16.gmra.mrb[0].mxu0 %v1192
        %v1333 = vpop.f32.mrb[0].mxu0
        %v1334 = vadd.f32 0.0, %v1333
        %v1335 = vpop.f32.mrb[0].mxu0
        %v1336 = vpop.f32.mrb[0].mxu0
        %v1337 = vadd.f32 0.0, %v1336
        %v1338 = vpop.f32.mrb[0].mxu0
        %1339 = vmatprep.mubr.bf16.mxu0 0
        %1340 = vmatmul.mubr.bf16.gmra.mrb[0].mxu0 %v1194
        %v1341 = vpop.f32.mrb[0].mxu0
        %v1342 = vadd.f32 0.0, %v1341
        %v1343 = vpop.f32.mrb[0].mxu0
        %v1344 = vpop.f32.mrb[0].mxu0
        %v1345 = vadd.f32 0.0, %v1344
        %v1346 = vpop.f32.mrb[0].mxu0
        %1347 = vmatprep.mubr.bf16.mxu0 0
        %1348 = vmatmul.mubr.bf16.gmra.mrb[0].mxu0 %v1196
        %v1349 = vpop.f32.mrb[0].mxu0
        %v1350 = vadd.f32 0.0, %v1349
        %v1351 = vpop.f32.mrb[0].mxu0
        %v1352 = vpop.f32.mrb[0].mxu0
        %v1353 = vadd.f32 0.0, %v1352
        %v1354 = vpop.f32.mrb[0].mxu0
        %1355 = vmatprep.mubr.bf16.mxu0 0
        %1356 = vmatmul.mubr.bf16.gmra.mrb[0].mxu0 %v1198
        %v1357 = vpop.f32.mrb[0].mxu0
        %v1358 = vadd.f32 0.0, %v1357
        %v1359 = vpop.f32.mrb[0].mxu0
        %v1360 = vpop.f32.mrb[0].mxu0
        %v1361 = vadd.f32 0.0, %v1360
        %v1362 = vpop.f32.mrb[0].mxu0
        %1363 = vmatprep.mubr.bf16.mxu0 0
        %1364 = vmatmul.mubr.bf16.gmra.mrb[0].mxu0 %v1200
        %v1365 = vpop.f32.mrb[0].mxu0
        %v1366 = vadd.f32 0.0, %v1365
        %v1367 = vpop.f32.mrb[0].mxu0
        %v1368 = vpop.f32.mrb[0].mxu0
        %v1369 = vadd.f32 0.0, %v1368
        %v1370 = vpop.f32.mrb[0].mxu0
        %1371 = vmatprep.mubr.bf16.mxu0 0
        %1372 = vmatmul.mubr.bf16.gmra.mrb[0].mxu0 %v1202
        %v1373 = vpop.f32.mrb[0].mxu0
        %v1374 = vadd.f32 0.0, %v1373
        %v1375 = vpop.f32.mrb[0].mxu0
        %v1376 = vpop.f32.mrb[0].mxu0
        %v1377 = vadd.f32 0.0, %v1376
        %v1378 = vpop.f32.mrb[0].mxu0
        %1379 = vmatprep.mubr.bf16.mxu0 0
        %1380 = vmatmul.mubr.bf16.gmra.mrb[0].mxu0 %v1204
        %v1381 = vpop.f32.mrb[0].mxu0
        %v1382 = vadd.f32 0.0, %v1381
        %v1383 = vpop.f32.mrb[0].mxu0
        %v1384 = vpop.f32.mrb[0].mxu0
        %v1385 = vadd.f32 0.0, %v1384
        %v1386 = vpop.f32.mrb[0].mxu0
        %1387 = vmatprep.mubr.bf16.mxu0 0
        %1388 = vmatmul.mubr.bf16.gmra.mrb[0].mxu0 %v1206
        %v1389 = vpop.f32.mrb[0].mxu0
        %v1390 = vadd.f32 0.0, %v1389
        %v1391 = vpop.f32.mrb[0].mxu0
        %v1392 = vpop.f32.mrb[0].mxu0
        %v1393 = vadd.f32 0.0, %v1392
        %v1394 = vpop.f32.mrb[0].mxu0
        %1395 = vmatprep.mubr.bf16.mxu0 0
        %1396 = vmatmul.mubr.bf16.gmra.mrb[0].mxu0 %v1208
        %v1397 = vpop.f32.mrb[0].mxu0
        %v1398 = vadd.f32 0.0, %v1397
        %v1399 = vpop.f32.mrb[0].mxu0
        %v1400 = vpop.f32.mrb[0].mxu0
        %v1401 = vadd.f32 0.0, %v1400
        %v1402 = vpop.f32.mrb[0].mxu0
        %1403 = vmatprep.mubr.bf16.mxu0 0
        %1404 = vmatmul.mubr.bf16.gmra.mrb[0].mxu0 %v1210
        %v1405 = vpop.f32.mrb[0].mxu0
        %v1406 = vadd.f32 0.0, %v1405
        %v1407 = vpop.f32.mrb[0].mxu0
        %v1408 = vpop.f32.mrb[0].mxu0
        %v1409 = vadd.f32 0.0, %v1408
        %v1410 = vpop.f32.mrb[0].mxu0
        %1411 = vmatprep.mubr.bf16.mxu0 0
        %1412 = vmatmul.mubr.bf16.gmra.mrb[0].mxu0 %v1212
        %v1413 = vpop.f32.mrb[0].mxu0
        %v1414 = vadd.f32 0.0, %v1413
        %v1415 = vpop.f32.mrb[0].mxu0
        %v1416 = vpop.f32.mrb[0].mxu0
        %v1417 = vadd.f32 0.0, %v1416
        %v1418 = vpop.f32.mrb[0].mxu0
        %1419 = vmatprep.mubr.bf16.mxu0 0
        %1420 = vmatmul.mubr.bf16.gmra.mrb[0].mxu0 %v1214
        %v1421 = vpop.f32.mrb[0].mxu0
        %v1422 = vadd.f32 0.0, %v1421
        %v1423 = vpop.f32.mrb[0].mxu0
        %v1424 = vpop.f32.mrb[0].mxu0
        %v1425 = vadd.f32 0.0, %v1424
        %v1426 = vpop.f32.mrb[0].mxu0
        %1427 = vmatprep.mubr.bf16.mxu0 0
        %1428 = vmatmul.mubr.bf16.gmra.mrb[0].mxu0 %v1216
        %v1429 = vpop.f32.mrb[0].mxu0
        %v1430 = vadd.f32 0.0, %v1429
        %v1431 = vpop.f32.mrb[0].mxu0
        %v1432 = vpop.f32.mrb[0].mxu0
        %v1433 = vadd.f32 0.0, %v1432
        %v1434 = vpop.f32.mrb[0].mxu0
        %1435 = vmatprep.mubr.bf16.mxu0 0
        %1436 = vmatmul.mubr.bf16.gmra.mrb[0].mxu0 %v1218
        %v1437 = vpop.f32.mrb[0].mxu0
        %v1438 = vadd.f32 0.0, %v1437
        %v1439 = vpop.f32.mrb[0].mxu0
        %v1440 = vpop.f32.mrb[0].mxu0
        %v1441 = vadd.f32 0.0, %v1440
        %v1442 = vpop.f32.mrb[0].mxu0
        %1443 = vdwg.mxu0
        %v1444 = vadd.f32 %v1026, %v1318
        %v1445 = vadd.f32 %v1029, %v1321
        %v1446 = vadd.f32 %v1034, %v1326
        %v1447 = vadd.f32 %v1037, %v1329
        %v1448 = vadd.f32 %v1042, %v1334
        %v1449 = vadd.f32 %v1045, %v1337
        %v1450 = vadd.f32 %v1050, %v1342
        %v1451 = vadd.f32 %v1053, %v1345
        %v1452 = vadd.f32 %v1058, %v1350
        %v1453 = vadd.f32 %v1061, %v1353
        %v1454 = vadd.f32 %v1066, %v1358
        %v1455 = vadd.f32 %v1069, %v1361
        %v1456 = vadd.f32 %v1074, %v1366
        %v1457 = vadd.f32 %v1077, %v1369
        %v1458 = vadd.f32 %v1082, %v1374
        %v1459 = vadd.f32 %v1085, %v1377
        %v1460 = vadd.f32 %v1090, %v1382
        %v1461 = vadd.f32 %v1093, %v1385
        %v1462 = vadd.f32 %v1098, %v1390
        %v1463 = vadd.f32 %v1101, %v1393
        %v1464 = vadd.f32 %v1106, %v1398
        %v1465 = vadd.f32 %v1109, %v1401
        %v1466 = vadd.f32 %v1114, %v1406
        %v1467 = vadd.f32 %v1117, %v1409
        %v1468 = vadd.f32 %v1122, %v1414
        %v1469 = vadd.f32 %v1125, %v1417
        %v1470 = vadd.f32 %v1130, %v1422
        %v1471 = vadd.f32 %v1133, %v1425
        %v1472 = vadd.f32 %v1138, %v1430
        %v1473 = vadd.f32 %v1141, %v1433
        %v1474 = vadd.f32 %v1146, %v1438
        %v1475 = vadd.f32 %v1149, %v1441
        %v1476 = vpack.c.bf16 %v499, %v498
        %v1477 = vpack.c.bf16 %v501, %v500
        %v1478 = vpack.c.bf16 %v503, %v502
        %v1479 = vpack.c.bf16 %v505, %v504
        %v1480 = vpack.c.bf16 %v507, %v506
        %v1481 = vpack.c.bf16 %v509, %v508
        %v1482 = vpack.c.bf16 %v511, %v510
        %v1483 = vpack.c.bf16 %v513, %v512
        %v1484 = vpack.c.bf16 %v515, %v514
        %v1485 = vpack.c.bf16 %v517, %v516
        %v1486 = vpack.c.bf16 %v519, %v518
        %v1487 = vpack.c.bf16 %v521, %v520
        %v1488 = vpack.c.bf16 %v523, %v522
        %v1489 = vpack.c.bf16 %v525, %v524
        %v1490 = vpack.c.bf16 %v527, %v526
        %v1491 = vpack.c.bf16 %v529, %v528
        %v1492 = vld [vmem:[#allocation7 + $0xc0] sm:$0xf]
        %v1493 = vld [vmem:[#allocation7 + $0xc4] sm:$0xf]
        %v1494 = vld [vmem:[#allocation7 + $0xc8] sm:$0xf]
        %v1495 = vld [vmem:[#allocation7 + $0xcc] sm:$0xf]
        %v1496 = vld [vmem:[#allocation7 + $0xd0] sm:$0xf]
        %v1497 = vld [vmem:[#allocation7 + $0xd4] sm:$0xf]
        %v1498 = vld [vmem:[#allocation7 + $0xd8] sm:$0xf]
        %v1499 = vld [vmem:[#allocation7 + $0xdc] sm:$0xf]
        %v1500 = vld [vmem:[#allocation7 + $0xe0] sm:$0xf]
        %v1501 = vld [vmem:[#allocation7 + $0xe4] sm:$0xf]
        %v1502 = vld [vmem:[#allocation7 + $0xe8] sm:$0xf]
        %v1503 = vld [vmem:[#allocation7 + $0xec] sm:$0xf]
        %v1504 = vld [vmem:[#allocation7 + $0xf0] sm:$0xf]
        %v1505 = vld [vmem:[#allocation7 + $0xf4] sm:$0xf]
        %v1506 = vld [vmem:[#allocation7 + $0xf8] sm:$0xf]
        %v1507 = vld [vmem:[#allocation7 + $0xfc] sm:$0xf]
        %v1524 = vunpack.c.l.b16 %v1492
        %v1525 = vunpack.c.l.b16 %v1493
        %v1526 = vunpack.c.l.b16 %v1494
        %v1527 = vunpack.c.l.b16 %v1495
        %v1528 = vunpack.c.l.b16 %v1496
        %v1529 = vunpack.c.l.b16 %v1497
        %v1530 = vunpack.c.l.b16 %v1498
        %v1531 = vunpack.c.l.b16 %v1499
        %v1532 = vunpack.c.l.b16 %v1500
        %v1533 = vunpack.c.l.b16 %v1501
        %v1534 = vunpack.c.l.b16 %v1502
        %v1535 = vunpack.c.l.b16 %v1503
        %v1536 = vunpack.c.l.b16 %v1504
        %v1537 = vunpack.c.l.b16 %v1505
        %v1538 = vunpack.c.l.b16 %v1506
        %v1539 = vunpack.c.l.b16 %v1507
        %v1540 = vpack.c.b16 %v1525, %v1524
        %v1541 = vpack.c.b16 %v1527, %v1526
        %v1542 = vpack.c.b16 %v1529, %v1528
        %v1543 = vpack.c.b16 %v1531, %v1530
        %v1544 = vpack.c.b16 %v1533, %v1532
        %v1545 = vpack.c.b16 %v1535, %v1534
        %v1546 = vpack.c.b16 %v1537, %v1536
        %v1547 = vpack.c.b16 %v1539, %v1538
        %1556 = vmatprep.subr.bf16.mxu0 0
        %1557 = vmatpush1.bf16.msra.mxu0 %v1540
        %1558 = vmatprep.subr.bf16.mxu0 0
        %1559 = vmatpush1.bf16.msra.mxu0 %v1541
        %1560 = vmatprep.subr.bf16.mxu0 0
        %1561 = vmatpush1.bf16.msra.mxu0 %v1542
        %1562 = vmatprep.subr.bf16.mxu0 0
        %1563 = vmatpush1.bf16.msra.mxu0 %v1543
        %1564 = vmatprep.subr.bf16.mxu0 0
        %1565 = vmatpush1.bf16.msra.mxu0 %v1544
        %1566 = vmatprep.subr.bf16.mxu0 0
        %1567 = vmatpush1.bf16.msra.mxu0 %v1545
        %1568 = vmatprep.subr.bf16.mxu0 0
        %1569 = vmatpush1.bf16.msra.mxu0 %v1546
        %1570 = vmatprep.subr.bf16.mxu0 0
        %1571 = vmatpush1.bf16.msra.mxu0 %v1547
        %1572 = vmatprep.subr.bf16.mxu0 0
        %1573 = vmatpush1.bf16.msra.mxu0 0
        %1574 = vmatprep.subr.bf16.mxu0 0
        %1575 = vmatpush1.bf16.msra.mxu0 0
        %1576 = vmatprep.subr.bf16.mxu0 0
        %1577 = vmatpush1.bf16.msra.mxu0 0
        %1578 = vmatprep.subr.bf16.mxu0 0
        %1579 = vmatpush1.bf16.msra.mxu0 0
        %1580 = vmatprep.subr.bf16.mxu0 0
        %1581 = vmatpush1.bf16.msra.mxu0 0
        %1582 = vmatprep.subr.bf16.mxu0 0
        %1583 = vmatpush1.bf16.msra.mxu0 0
        %1584 = vmatprep.subr.bf16.mxu0 0
        %1585 = vmatpush1.bf16.msra.mxu0 0
        %1586 = vmatprep.subr.bf16.mxu0 0
        %1587 = vmatpush1.bf16.msra.mxu0 0
        %1588 = vmatprep.mubr.bf16.mxu0 0
        %1589 = vmatmul.mubr.bf16.gmra.mrb[0].mxu0 %v1476
        %v1590 = vpop.f32.mrb[0].mxu0
        %v1591 = vadd.f32 0.0, %v1590
        %v1592 = vpop.f32.mrb[0].mxu0
        %v1593 = vpop.f32.mrb[0].mxu0
        %v1594 = vadd.f32 0.0, %v1593
        %v1595 = vpop.f32.mrb[0].mxu0
        %1596 = vmatprep.mubr.bf16.mxu0 0
        %1597 = vmatmul.mubr.bf16.gmra.mrb[0].mxu0 %v1477
        %v1598 = vpop.f32.mrb[0].mxu0
        %v1599 = vadd.f32 0.0, %v1598
        %v1600 = vpop.f32.mrb[0].mxu0
        %v1601 = vpop.f32.mrb[0].mxu0
        %v1602 = vadd.f32 0.0, %v1601
        %v1603 = vpop.f32.mrb[0].mxu0
        %1604 = vmatprep.mubr.bf16.mxu0 0
        %1605 = vmatmul.mubr.bf16.gmra.mrb[0].mxu0 %v1478
        %v1606 = vpop.f32.mrb[0].mxu0
        %v1607 = vadd.f32 0.0, %v1606
        %v1608 = vpop.f32.mrb[0].mxu0
        %v1609 = vpop.f32.mrb[0].mxu0
        %v1610 = vadd.f32 0.0, %v1609
        %v1611 = vpop.f32.mrb[0].mxu0
        %1612 = vmatprep.mubr.bf16.mxu0 0
        %1613 = vmatmul.mubr.bf16.gmra.mrb[0].mxu0 %v1479
        %v1614 = vpop.f32.mrb[0].mxu0
        %v1615 = vadd.f32 0.0, %v1614
        %v1616 = vpop.f32.mrb[0].mxu0
        %v1617 = vpop.f32.mrb[0].mxu0
        %v1618 = vadd.f32 0.0, %v1617
        %v1619 = vpop.f32.mrb[0].mxu0
        %1620 = vmatprep.mubr.bf16.mxu0 0
        %1621 = vmatmul.mubr.bf16.gmra.mrb[0].mxu0 %v1480
        %v1622 = vpop.f32.mrb[0].mxu0
        %v1623 = vadd.f32 0.0, %v1622
        %v1624 = vpop.f32.mrb[0].mxu0
        %v1625 = vpop.f32.mrb[0].mxu0
        %v1626 = vadd.f32 0.0, %v1625
        %v1627 = vpop.f32.mrb[0].mxu0
        %1628 = vmatprep.mubr.bf16.mxu0 0
        %1629 = vmatmul.mubr.bf16.gmra.mrb[0].mxu0 %v1481
        %v1630 = vpop.f32.mrb[0].mxu0
        %v1631 = vadd.f32 0.0, %v1630
        %v1632 = vpop.f32.mrb[0].mxu0
        %v1633 = vpop.f32.mrb[0].mxu0
        %v1634 = vadd.f32 0.0, %v1633
        %v1635 = vpop.f32.mrb[0].mxu0
        %1636 = vmatprep.mubr.bf16.mxu0 0
        %1637 = vmatmul.mubr.bf16.gmra.mrb[0].mxu0 %v1482
        %v1638 = vpop.f32.mrb[0].mxu0
        %v1639 = vadd.f32 0.0, %v1638
        %v1640 = vpop.f32.mrb[0].mxu0
        %v1641 = vpop.f32.mrb[0].mxu0
        %v1642 = vadd.f32 0.0, %v1641
        %v1643 = vpop.f32.mrb[0].mxu0
        %1644 = vmatprep.mubr.bf16.mxu0 0
        %1645 = vmatmul.mubr.bf16.gmra.mrb[0].mxu0 %v1483
        %v1646 = vpop.f32.mrb[0].mxu0
        %v1647 = vadd.f32 0.0, %v1646
        %v1648 = vpop.f32.mrb[0].mxu0
        %v1649 = vpop.f32.mrb[0].mxu0
        %v1650 = vadd.f32 0.0, %v1649
        %v1651 = vpop.f32.mrb[0].mxu0
        %1652 = vmatprep.mubr.bf16.mxu0 0
        %1653 = vmatmul.mubr.bf16.gmra.mrb[0].mxu0 %v1484
        %v1654 = vpop.f32.mrb[0].mxu0
        %v1655 = vadd.f32 0.0, %v1654
        %v1656 = vpop.f32.mrb[0].mxu0
        %v1657 = vpop.f32.mrb[0].mxu0
        %v1658 = vadd.f32 0.0, %v1657
        %v1659 = vpop.f32.mrb[0].mxu0
        %1660 = vmatprep.mubr.bf16.mxu0 0
        %1661 = vmatmul.mubr.bf16.gmra.mrb[0].mxu0 %v1485
        %v1662 = vpop.f32.mrb[0].mxu0
        %v1663 = vadd.f32 0.0, %v1662
        %v1664 = vpop.f32.mrb[0].mxu0
        %v1665 = vpop.f32.mrb[0].mxu0
        %v1666 = vadd.f32 0.0, %v1665
        %v1667 = vpop.f32.mrb[0].mxu0
        %1668 = vmatprep.mubr.bf16.mxu0 0
        %1669 = vmatmul.mubr.bf16.gmra.mrb[0].mxu0 %v1486
        %v1670 = vpop.f32.mrb[0].mxu0
        %v1671 = vadd.f32 0.0, %v1670
        %v1672 = vpop.f32.mrb[0].mxu0
        %v1673 = vpop.f32.mrb[0].mxu0
        %v1674 = vadd.f32 0.0, %v1673
        %v1675 = vpop.f32.mrb[0].mxu0
        %1676 = vmatprep.mubr.bf16.mxu0 0
        %1677 = vmatmul.mubr.bf16.gmra.mrb[0].mxu0 %v1487
        %v1678 = vpop.f32.mrb[0].mxu0
        %v1679 = vadd.f32 0.0, %v1678
        %v1680 = vpop.f32.mrb[0].mxu0
        %v1681 = vpop.f32.mrb[0].mxu0
        %v1682 = vadd.f32 0.0, %v1681
        %v1683 = vpop.f32.mrb[0].mxu0
        %1684 = vmatprep.mubr.bf16.mxu0 0
        %1685 = vmatmul.mubr.bf16.gmra.mrb[0].mxu0 %v1488
        %v1686 = vpop.f32.mrb[0].mxu0
        %v1687 = vadd.f32 0.0, %v1686
        %v1688 = vpop.f32.mrb[0].mxu0
        %v1689 = vpop.f32.mrb[0].mxu0
        %v1690 = vadd.f32 0.0, %v1689
        %v1691 = vpop.f32.mrb[0].mxu0
        %1692 = vmatprep.mubr.bf16.mxu0 0
        %1693 = vmatmul.mubr.bf16.gmra.mrb[0].mxu0 %v1489
        %v1694 = vpop.f32.mrb[0].mxu0
        %v1695 = vadd.f32 0.0, %v1694
        %v1696 = vpop.f32.mrb[0].mxu0
        %v1697 = vpop.f32.mrb[0].mxu0
        %v1698 = vadd.f32 0.0, %v1697
        %v1699 = vpop.f32.mrb[0].mxu0
        %1700 = vmatprep.mubr.bf16.mxu0 0
        %1701 = vmatmul.mubr.bf16.gmra.mrb[0].mxu0 %v1490
        %v1702 = vpop.f32.mrb[0].mxu0
        %v1703 = vadd.f32 0.0, %v1702
        %v1704 = vpop.f32.mrb[0].mxu0
        %v1705 = vpop.f32.mrb[0].mxu0
        %v1706 = vadd.f32 0.0, %v1705
        %v1707 = vpop.f32.mrb[0].mxu0
        %1708 = vmatprep.mubr.bf16.mxu0 0
        %1709 = vmatmul.mubr.bf16.gmra.mrb[0].mxu0 %v1491
        %v1710 = vpop.f32.mrb[0].mxu0
        %v1711 = vadd.f32 0.0, %v1710
        %v1712 = vpop.f32.mrb[0].mxu0
        %v1713 = vpop.f32.mrb[0].mxu0
        %v1714 = vadd.f32 0.0, %v1713
        %v1715 = vpop.f32.mrb[0].mxu0
        %1716 = vdwg.mxu0
        %v1717 = vadd.f32 %v1444, %v1591
        %v1718 = vadd.f32 %v1445, %v1594
        %v1719 = vadd.f32 %v1446, %v1599
        %v1720 = vadd.f32 %v1447, %v1602
        %v1721 = vadd.f32 %v1448, %v1607
        %v1722 = vadd.f32 %v1449, %v1610
        %v1723 = vadd.f32 %v1450, %v1615
        %v1724 = vadd.f32 %v1451, %v1618
        %v1725 = vadd.f32 %v1452, %v1623
        %v1726 = vadd.f32 %v1453, %v1626
        %v1727 = vadd.f32 %v1454, %v1631
        %v1728 = vadd.f32 %v1455, %v1634
        %v1729 = vadd.f32 %v1456, %v1639
        %v1730 = vadd.f32 %v1457, %v1642
        %v1731 = vadd.f32 %v1458, %v1647
        %v1732 = vadd.f32 %v1459, %v1650
        %v1733 = vadd.f32 %v1460, %v1655
        %v1734 = vadd.f32 %v1461, %v1658
        %v1735 = vadd.f32 %v1462, %v1663
        %v1736 = vadd.f32 %v1463, %v1666
        %v1737 = vadd.f32 %v1464, %v1671
        %v1738 = vadd.f32 %v1465, %v1674
        %v1739 = vadd.f32 %v1466, %v1679
        %v1740 = vadd.f32 %v1467, %v1682
        %v1741 = vadd.f32 %v1468, %v1687
        %v1742 = vadd.f32 %v1469, %v1690
        %v1743 = vadd.f32 %v1470, %v1695
        %v1744 = vadd.f32 %v1471, %v1698
        %v1745 = vadd.f32 %v1472, %v1703
        %v1746 = vadd.f32 %v1473, %v1706
        %v1747 = vadd.f32 %v1474, %v1711
        %v1748 = vadd.f32 %v1475, %v1714
        %v1749 = vpack.c.bf16 %v530, %v530
        %v1750 = vld [vmem:[#allocation7 + $0x100] sm:$0xf]
        %v1751 = vld [vmem:[#allocation7 + $0x104] sm:$0xf]
        %v1752 = vld [vmem:[#allocation7 + $0x108] sm:$0xf]
        %v1753 = vld [vmem:[#allocation7 + $0x10c] sm:$0xf]
        %v1754 = vld [vmem:[#allocation7 + $0x110] sm:$0xf]
        %v1755 = vld [vmem:[#allocation7 + $0x114] sm:$0xf]
        %v1756 = vld [vmem:[#allocation7 + $0x118] sm:$0xf]
        %v1757 = vld [vmem:[#allocation7 + $0x11c] sm:$0xf]
        %v1758 = vld [vmem:[#allocation7 + $0x120] sm:$0xf]
        %v1759 = vld [vmem:[#allocation7 + $0x124] sm:$0xf]
        %v1760 = vld [vmem:[#allocation7 + $0x128] sm:$0xf]
        %v1761 = vld [vmem:[#allocation7 + $0x12c] sm:$0xf]
        %v1762 = vld [vmem:[#allocation7 + $0x130] sm:$0xf]
        %v1763 = vld [vmem:[#allocation7 + $0x134] sm:$0xf]
        %v1764 = vld [vmem:[#allocation7 + $0x138] sm:$0xf]
        %v1765 = vld [vmem:[#allocation7 + $0x13c] sm:$0xf]
        %v1767 = vshrl.u32 %v1476, 16
        %v1769 = vshll.u32 %v1476, 16
        %v1771 = vrot.slane %v1769, 1
        %v1772 = vor.u32 %v1767, %v1771
        %v1774 = vshll.u32 %v1477, 16
        %v1776 = vrot.slane %v1774, 1
        %v1777 = vsel %vm585, %v1772, %v1776
        %v1778 = vshrl.u32 %v1477, 16
        %v1780 = vor.u32 %v1778, %v1776
        %v1782 = vshll.u32 %v1478, 16
        %v1784 = vrot.slane %v1782, 1
        %v1785 = vsel %vm585, %v1780, %v1784
        %v1786 = vshrl.u32 %v1478, 16
        %v1788 = vor.u32 %v1786, %v1784
        %v1790 = vshll.u32 %v1479, 16
        %v1792 = vrot.slane %v1790, 1
        %v1793 = vsel %vm585, %v1788, %v1792
        %v1794 = vshrl.u32 %v1479, 16
        %v1796 = vor.u32 %v1794, %v1792
        %v1798 = vshll.u32 %v1480, 16
        %v1800 = vrot.slane %v1798, 1
        %v1801 = vsel %vm585, %v1796, %v1800
        %v1802 = vshrl.u32 %v1480, 16
        %v1804 = vor.u32 %v1802, %v1800
        %v1806 = vshll.u32 %v1481, 16
        %v1808 = vrot.slane %v1806, 1
        %v1809 = vsel %vm585, %v1804, %v1808
        %v1810 = vshrl.u32 %v1481, 16
        %v1812 = vor.u32 %v1810, %v1808
        %v1814 = vshll.u32 %v1482, 16
        %v1816 = vrot.slane %v1814, 1
        %v1817 = vsel %vm585, %v1812, %v1816
        %v1818 = vshrl.u32 %v1482, 16
        %v1820 = vor.u32 %v1818, %v1816
        %v1822 = vshll.u32 %v1483, 16
        %v1824 = vrot.slane %v1822, 1
        %v1825 = vsel %vm585, %v1820, %v1824
        %v1826 = vshrl.u32 %v1483, 16
        %v1828 = vor.u32 %v1826, %v1824
        %v1830 = vshll.u32 %v1484, 16
        %v1832 = vrot.slane %v1830, 1
        %v1833 = vsel %vm585, %v1828, %v1832
        %v1834 = vshrl.u32 %v1484, 16
        %v1836 = vor.u32 %v1834, %v1832
        %v1838 = vshll.u32 %v1485, 16
        %v1840 = vrot.slane %v1838, 1
        %v1841 = vsel %vm585, %v1836, %v1840
        %v1842 = vshrl.u32 %v1485, 16
        %v1844 = vor.u32 %v1842, %v1840
        %v1846 = vshll.u32 %v1486, 16
        %v1848 = vrot.slane %v1846, 1
        %v1849 = vsel %vm585, %v1844, %v1848
        %v1850 = vshrl.u32 %v1486, 16
        %v1852 = vor.u32 %v1850, %v1848
        %v1854 = vshll.u32 %v1487, 16
        %v1856 = vrot.slane %v1854, 1
        %v1857 = vsel %vm585, %v1852, %v1856
        %v1858 = vshrl.u32 %v1487, 16
        %v1860 = vor.u32 %v1858, %v1856
        %v1862 = vshll.u32 %v1488, 16
        %v1864 = vrot.slane %v1862, 1
        %v1865 = vsel %vm585, %v1860, %v1864
        %v1866 = vshrl.u32 %v1488, 16
        %v1868 = vor.u32 %v1866, %v1864
        %v1870 = vshll.u32 %v1489, 16
        %v1872 = vrot.slane %v1870, 1
        %v1873 = vsel %vm585, %v1868, %v1872
        %v1874 = vshrl.u32 %v1489, 16
        %v1876 = vor.u32 %v1874, %v1872
        %v1878 = vshll.u32 %v1490, 16
        %v1880 = vrot.slane %v1878, 1
        %v1881 = vsel %vm585, %v1876, %v1880
        %v1882 = vshrl.u32 %v1490, 16
        %v1884 = vor.u32 %v1882, %v1880
        %v1886 = vshll.u32 %v1491, 16
        %v1888 = vrot.slane %v1886, 1
        %v1889 = vsel %vm585, %v1884, %v1888
        %v1890 = vshrl.u32 %v1491, 16
        %v1892 = vor.u32 %v1890, %v1888
        %v1894 = vshll.u32 %v1749, 16
        %v1896 = vrot.slane %v1894, 1
        %v1897 = vsel %vm585, %v1892, %v1896
        %v1930 = vunpack.c.l.b16 %v1750
        %v1931 = vunpack.c.l.b16 %v1751
        %v1932 = vunpack.c.l.b16 %v1752
        %v1933 = vunpack.c.l.b16 %v1753
        %v1934 = vunpack.c.l.b16 %v1754
        %v1935 = vunpack.c.l.b16 %v1755
        %v1936 = vunpack.c.l.b16 %v1756
        %v1937 = vunpack.c.l.b16 %v1757
        %v1938 = vunpack.c.l.b16 %v1758
        %v1939 = vunpack.c.l.b16 %v1759
        %v1940 = vunpack.c.l.b16 %v1760
        %v1941 = vunpack.c.l.b16 %v1761
        %v1942 = vunpack.c.l.b16 %v1762
        %v1943 = vunpack.c.l.b16 %v1763
        %v1944 = vunpack.c.l.b16 %v1764
        %v1945 = vunpack.c.l.b16 %v1765
        %v1946 = vpack.c.b16 %v1931, %v1930
        %v1947 = vpack.c.b16 %v1933, %v1932
        %v1948 = vpack.c.b16 %v1935, %v1934
        %v1949 = vpack.c.b16 %v1937, %v1936
        %v1950 = vpack.c.b16 %v1939, %v1938
        %v1951 = vpack.c.b16 %v1941, %v1940
        %v1952 = vpack.c.b16 %v1943, %v1942
        %v1953 = vpack.c.b16 %v1945, %v1944
        %1962 = vmatprep.subr.bf16.mxu0 0
        %1963 = vmatpush1.bf16.msra.mxu0 %v1946
        %1964 = vmatprep.subr.bf16.mxu0 0
        %1965 = vmatpush1.bf16.msra.mxu0 %v1947
        %1966 = vmatprep.subr.bf16.mxu0 0
        %1967 = vmatpush1.bf16.msra.mxu0 %v1948
        %1968 = vmatprep.subr.bf16.mxu0 0
        %1969 = vmatpush1.bf16.msra.mxu0 %v1949
        %1970 = vmatprep.subr.bf16.mxu0 0
        %1971 = vmatpush1.bf16.msra.mxu0 %v1950
        %1972 = vmatprep.subr.bf16.mxu0 0
        %1973 = vmatpush1.bf16.msra.mxu0 %v1951
        %1974 = vmatprep.subr.bf16.mxu0 0
        %1975 = vmatpush1.bf16.msra.mxu0 %v1952
        %1976 = vmatprep.subr.bf16.mxu0 0
        %1977 = vmatpush1.bf16.msra.mxu0 %v1953
        %1978 = vmatprep.subr.bf16.mxu0 0
        %1979 = vmatpush1.bf16.msra.mxu0 0
        %1980 = vmatprep.subr.bf16.mxu0 0
        %1981 = vmatpush1.bf16.msra.mxu0 0
        %1982 = vmatprep.subr.bf16.mxu0 0
        %1983 = vmatpush1.bf16.msra.mxu0 0
        %1984 = vmatprep.subr.bf16.mxu0 0
        %1985 = vmatpush1.bf16.msra.mxu0 0
        %1986 = vmatprep.subr.bf16.mxu0 0
        %1987 = vmatpush1.bf16.msra.mxu0 0
        %1988 = vmatprep.subr.bf16.mxu0 0
        %1989 = vmatpush1.bf16.msra.mxu0 0
        %1990 = vmatprep.subr.bf16.mxu0 0
        %1991 = vmatpush1.bf16.msra.mxu0 0
        %1992 = vmatprep.subr.bf16.mxu0 0
        %1993 = vmatpush1.bf16.msra.mxu0 0
        %1994 = vmatprep.mubr.bf16.mxu0 0
        %1995 = vmatmul.mubr.bf16.gmra.mrb[0].mxu0 %v1777
        %v1996 = vpop.f32.mrb[0].mxu0
        %v1997 = vadd.f32 0.0, %v1996
        %v1998 = vpop.f32.mrb[0].mxu0
        %v1999 = vpop.f32.mrb[0].mxu0
        %v2000 = vadd.f32 0.0, %v1999
        %v2001 = vpop.f32.mrb[0].mxu0
        %2002 = vmatprep.mubr.bf16.mxu0 0
        %2003 = vmatmul.mubr.bf16.gmra.mrb[0].mxu0 %v1785
        %v2004 = vpop.f32.mrb[0].mxu0
        %v2005 = vadd.f32 0.0, %v2004
        %v2006 = vpop.f32.mrb[0].mxu0
        %v2007 = vpop.f32.mrb[0].mxu0
        %v2008 = vadd.f32 0.0, %v2007
        %v2009 = vpop.f32.mrb[0].mxu0
        %2010 = vmatprep.mubr.bf16.mxu0 0
        %2011 = vmatmul.mubr.bf16.gmra.mrb[0].mxu0 %v1793
        %v2012 = vpop.f32.mrb[0].mxu0
        %v2013 = vadd.f32 0.0, %v2012
        %v2014 = vpop.f32.mrb[0].mxu0
        %v2015 = vpop.f32.mrb[0].mxu0
        %v2016 = vadd.f32 0.0, %v2015
        %v2017 = vpop.f32.mrb[0].mxu0
        %2018 = vmatprep.mubr.bf16.mxu0 0
        %2019 = vmatmul.mubr.bf16.gmra.mrb[0].mxu0 %v1801
        %v2020 = vpop.f32.mrb[0].mxu0
        %v2021 = vadd.f32 0.0, %v2020
        %v2022 = vpop.f32.mrb[0].mxu0
        %v2023 = vpop.f32.mrb[0].mxu0
        %v2024 = vadd.f32 0.0, %v2023
        %v2025 = vpop.f32.mrb[0].mxu0
        %2026 = vmatprep.mubr.bf16.mxu0 0
        %2027 = vmatmul.mubr.bf16.gmra.mrb[0].mxu0 %v1809
        %v2028 = vpop.f32.mrb[0].mxu0
        %v2029 = vadd.f32 0.0, %v2028
        %v2030 = vpop.f32.mrb[0].mxu0
        %v2031 = vpop.f32.mrb[0].mxu0
        %v2032 = vadd.f32 0.0, %v2031
        %v2033 = vpop.f32.mrb[0].mxu0
        %2034 = vmatprep.mubr.bf16.mxu0 0
        %2035 = vmatmul.mubr.bf16.gmra.mrb[0].mxu0 %v1817
        %v2036 = vpop.f32.mrb[0].mxu0
        %v2037 = vadd.f32 0.0, %v2036
        %v2038 = vpop.f32.mrb[0].mxu0
        %v2039 = vpop.f32.mrb[0].mxu0
        %v2040 = vadd.f32 0.0, %v2039
        %v2041 = vpop.f32.mrb[0].mxu0
        %2042 = vmatprep.mubr.bf16.mxu0 0
        %2043 = vmatmul.mubr.bf16.gmra.mrb[0].mxu0 %v1825
        %v2044 = vpop.f32.mrb[0].mxu0
        %v2045 = vadd.f32 0.0, %v2044
        %v2046 = vpop.f32.mrb[0].mxu0
        %v2047 = vpop.f32.mrb[0].mxu0
        %v2048 = vadd.f32 0.0, %v2047
        %v2049 = vpop.f32.mrb[0].mxu0
        %2050 = vmatprep.mubr.bf16.mxu0 0
        %2051 = vmatmul.mubr.bf16.gmra.mrb[0].mxu0 %v1833
        %v2052 = vpop.f32.mrb[0].mxu0
        %v2053 = vadd.f32 0.0, %v2052
        %v2054 = vpop.f32.mrb[0].mxu0
        %v2055 = vpop.f32.mrb[0].mxu0
        %v2056 = vadd.f32 0.0, %v2055
        %v2057 = vpop.f32.mrb[0].mxu0
        %2058 = vmatprep.mubr.bf16.mxu0 0
        %2059 = vmatmul.mubr.bf16.gmra.mrb[0].mxu0 %v1841
        %v2060 = vpop.f32.mrb[0].mxu0
        %v2061 = vadd.f32 0.0, %v2060
        %v2062 = vpop.f32.mrb[0].mxu0
        %v2063 = vpop.f32.mrb[0].mxu0
        %v2064 = vadd.f32 0.0, %v2063
        %v2065 = vpop.f32.mrb[0].mxu0
        %2066 = vmatprep.mubr.bf16.mxu0 0
        %2067 = vmatmul.mubr.bf16.gmra.mrb[0].mxu0 %v1849
        %v2068 = vpop.f32.mrb[0].mxu0
        %v2069 = vadd.f32 0.0, %v2068
        %v2070 = vpop.f32.mrb[0].mxu0
        %v2071 = vpop.f32.mrb[0].mxu0
        %v2072 = vadd.f32 0.0, %v2071
        %v2073 = vpop.f32.mrb[0].mxu0
        %2074 = vmatprep.mubr.bf16.mxu0 0
        %2075 = vmatmul.mubr.bf16.gmra.mrb[0].mxu0 %v1857
        %v2076 = vpop.f32.mrb[0].mxu0
        %v2077 = vadd.f32 0.0, %v2076
        %v2078 = vpop.f32.mrb[0].mxu0
        %v2079 = vpop.f32.mrb[0].mxu0
        %v2080 = vadd.f32 0.0, %v2079
        %v2081 = vpop.f32.mrb[0].mxu0
        %2082 = vmatprep.mubr.bf16.mxu0 0
        %2083 = vmatmul.mubr.bf16.gmra.mrb[0].mxu0 %v1865
        %v2084 = vpop.f32.mrb[0].mxu0
        %v2085 = vadd.f32 0.0, %v2084
        %v2086 = vpop.f32.mrb[0].mxu0
        %v2087 = vpop.f32.mrb[0].mxu0
        %v2088 = vadd.f32 0.0, %v2087
        %v2089 = vpop.f32.mrb[0].mxu0
        %2090 = vmatprep.mubr.bf16.mxu0 0
        %2091 = vmatmul.mubr.bf16.gmra.mrb[0].mxu0 %v1873
        %v2092 = vpop.f32.mrb[0].mxu0
        %v2093 = vadd.f32 0.0, %v2092
        %v2094 = vpop.f32.mrb[0].mxu0
        %v2095 = vpop.f32.mrb[0].mxu0
        %v2096 = vadd.f32 0.0, %v2095
        %v2097 = vpop.f32.mrb[0].mxu0
        %2098 = vmatprep.mubr.bf16.mxu0 0
        %2099 = vmatmul.mubr.bf16.gmra.mrb[0].mxu0 %v1881
        %v2100 = vpop.f32.mrb[0].mxu0
        %v2101 = vadd.f32 0.0, %v2100
        %v2102 = vpop.f32.mrb[0].mxu0
        %v2103 = vpop.f32.mrb[0].mxu0
        %v2104 = vadd.f32 0.0, %v2103
        %v2105 = vpop.f32.mrb[0].mxu0
        %2106 = vmatprep.mubr.bf16.mxu0 0
        %2107 = vmatmul.mubr.bf16.gmra.mrb[0].mxu0 %v1889
        %v2108 = vpop.f32.mrb[0].mxu0
        %v2109 = vadd.f32 0.0, %v2108
        %v2110 = vpop.f32.mrb[0].mxu0
        %v2111 = vpop.f32.mrb[0].mxu0
        %v2112 = vadd.f32 0.0, %v2111
        %v2113 = vpop.f32.mrb[0].mxu0
        %2114 = vmatprep.mubr.bf16.mxu0 0
        %2115 = vmatmul.mubr.bf16.gmra.mrb[0].mxu0 %v1897
        %v2116 = vpop.f32.mrb[0].mxu0
        %v2117 = vadd.f32 0.0, %v2116
        %v2118 = vpop.f32.mrb[0].mxu0
        %v2119 = vpop.f32.mrb[0].mxu0
        %v2120 = vadd.f32 0.0, %v2119
        %v2121 = vpop.f32.mrb[0].mxu0
        %2122 = vdwg.mxu0
        %v2123 = vadd.f32 %v1717, %v1997
        %v2124 = vadd.f32 %v1718, %v2000
        %v2125 = vadd.f32 %v1719, %v2005
        %v2126 = vadd.f32 %v1720, %v2008
        %v2127 = vadd.f32 %v1721, %v2013
        %v2128 = vadd.f32 %v1722, %v2016
        %v2129 = vadd.f32 %v1723, %v2021
        %v2130 = vadd.f32 %v1724, %v2024
        %v2131 = vadd.f32 %v1725, %v2029
        %v2132 = vadd.f32 %v1726, %v2032
        %v2133 = vadd.f32 %v1727, %v2037
        %v2134 = vadd.f32 %v1728, %v2040
        %v2135 = vadd.f32 %v1729, %v2045
        %v2136 = vadd.f32 %v1730, %v2048
        %v2137 = vadd.f32 %v1731, %v2053
        %v2138 = vadd.f32 %v1732, %v2056
        %v2139 = vadd.f32 %v1733, %v2061
        %v2140 = vadd.f32 %v1734, %v2064
        %v2141 = vadd.f32 %v1735, %v2069
        %v2142 = vadd.f32 %v1736, %v2072
        %v2143 = vadd.f32 %v1737, %v2077
        %v2144 = vadd.f32 %v1738, %v2080
        %v2145 = vadd.f32 %v1739, %v2085
        %v2146 = vadd.f32 %v1740, %v2088
        %v2147 = vadd.f32 %v1741, %v2093
        %v2148 = vadd.f32 %v1742, %v2096
        %v2149 = vadd.f32 %v1743, %v2101
        %v2150 = vadd.f32 %v1744, %v2104
        %v2151 = vadd.f32 %v1745, %v2109
        %v2152 = vadd.f32 %v1746, %v2112
        %v2153 = vadd.f32 %v1747, %v2117
        %v2154 = vadd.f32 %v1748, %v2120
        %v2155 = vld [vmem:[#allocation7 + $0x140] sm:$0xf]
        %v2156 = vld [vmem:[#allocation7 + $0x144] sm:$0xf]
        %v2157 = vld [vmem:[#allocation7 + $0x148] sm:$0xf]
        %v2158 = vld [vmem:[#allocation7 + $0x14c] sm:$0xf]
        %v2159 = vld [vmem:[#allocation7 + $0x150] sm:$0xf]
        %v2160 = vld [vmem:[#allocation7 + $0x154] sm:$0xf]
        %v2161 = vld [vmem:[#allocation7 + $0x158] sm:$0xf]
        %v2162 = vld [vmem:[#allocation7 + $0x15c] sm:$0xf]
        %v2163 = vld [vmem:[#allocation7 + $0x160] sm:$0xf]
        %v2164 = vld [vmem:[#allocation7 + $0x164] sm:$0xf]
        %v2165 = vld [vmem:[#allocation7 + $0x168] sm:$0xf]
        %v2166 = vld [vmem:[#allocation7 + $0x16c] sm:$0xf]
        %v2167 = vld [vmem:[#allocation7 + $0x170] sm:$0xf]
        %v2168 = vld [vmem:[#allocation7 + $0x174] sm:$0xf]
        %v2169 = vld [vmem:[#allocation7 + $0x178] sm:$0xf]
        %v2170 = vld [vmem:[#allocation7 + $0x17c] sm:$0xf]
        %v2188 = vrot.slane %v1476, 1
        %v2189 = vrot.slane %v1477, 1
        %v2190 = vsel %vm1185, %v2188, %v2189
        %v2191 = vrot.slane %v1478, 1
        %v2192 = vsel %vm1185, %v2189, %v2191
        %v2193 = vrot.slane %v1479, 1
        %v2194 = vsel %vm1185, %v2191, %v2193
        %v2195 = vrot.slane %v1480, 1
        %v2196 = vsel %vm1185, %v2193, %v2195
        %v2197 = vrot.slane %v1481, 1
        %v2198 = vsel %vm1185, %v2195, %v2197
        %v2199 = vrot.slane %v1482, 1
        %v2200 = vsel %vm1185, %v2197, %v2199
        %v2201 = vrot.slane %v1483, 1
        %v2202 = vsel %vm1185, %v2199, %v2201
        %v2203 = vrot.slane %v1484, 1
        %v2204 = vsel %vm1185, %v2201, %v2203
        %v2205 = vrot.slane %v1485, 1
        %v2206 = vsel %vm1185, %v2203, %v2205
        %v2207 = vrot.slane %v1486, 1
        %v2208 = vsel %vm1185, %v2205, %v2207
        %v2209 = vrot.slane %v1487, 1
        %v2210 = vsel %vm1185, %v2207, %v2209
        %v2211 = vrot.slane %v1488, 1
        %v2212 = vsel %vm1185, %v2209, %v2211
        %v2213 = vrot.slane %v1489, 1
        %v2214 = vsel %vm1185, %v2211, %v2213
        %v2215 = vrot.slane %v1490, 1
        %v2216 = vsel %vm1185, %v2213, %v2215
        %v2217 = vrot.slane %v1491, 1
        %v2218 = vsel %vm1185, %v2215, %v2217
        %v2219 = vrot.slane %v1749, 1
        %v2220 = vsel %vm1185, %v2217, %v2219
        %v2253 = vunpack.c.l.b16 %v2155
        %v2254 = vunpack.c.l.b16 %v2156
        %v2255 = vunpack.c.l.b16 %v2157
        %v2256 = vunpack.c.l.b16 %v2158
        %v2257 = vunpack.c.l.b16 %v2159
        %v2258 = vunpack.c.l.b16 %v2160
        %v2259 = vunpack.c.l.b16 %v2161
        %v2260 = vunpack.c.l.b16 %v2162
        %v2261 = vunpack.c.l.b16 %v2163
        %v2262 = vunpack.c.l.b16 %v2164
        %v2263 = vunpack.c.l.b16 %v2165
        %v2264 = vunpack.c.l.b16 %v2166
        %v2265 = vunpack.c.l.b16 %v2167
        %v2266 = vunpack.c.l.b16 %v2168
        %v2267 = vunpack.c.l.b16 %v2169
        %v2268 = vunpack.c.l.b16 %v2170
        %v2269 = vpack.c.b16 %v2254, %v2253
        %v2270 = vpack.c.b16 %v2256, %v2255
        %v2271 = vpack.c.b16 %v2258, %v2257
        %v2272 = vpack.c.b16 %v2260, %v2259
        %v2273 = vpack.c.b16 %v2262, %v2261
        %v2274 = vpack.c.b16 %v2264, %v2263
        %v2275 = vpack.c.b16 %v2266, %v2265
        %v2276 = vpack.c.b16 %v2268, %v2267
        %2285 = vmatprep.subr.bf16.mxu0 0
        %2286 = vmatpush1.bf16.msra.mxu0 %v2269
        %2287 = vmatprep.subr.bf16.mxu0 0
        %2288 = vmatpush1.bf16.msra.mxu0 %v2270
        %2289 = vmatprep.subr.bf16.mxu0 0
        %2290 = vmatpush1.bf16.msra.mxu0 %v2271
        %2291 = vmatprep.subr.bf16.mxu0 0
        %2292 = vmatpush1.bf16.msra.mxu0 %v2272
        %2293 = vmatprep.subr.bf16.mxu0 0
        %2294 = vmatpush1.bf16.msra.mxu0 %v2273
        %2295 = vmatprep.subr.bf16.mxu0 0
        %2296 = vmatpush1.bf16.msra.mxu0 %v2274
        %2297 = vmatprep.subr.bf16.mxu0 0
        %2298 = vmatpush1.bf16.msra.mxu0 %v2275
        %2299 = vmatprep.subr.bf16.mxu0 0
        %2300 = vmatpush1.bf16.msra.mxu0 %v2276
        %2301 = vmatprep.subr.bf16.mxu0 0
        %2302 = vmatpush1.bf16.msra.mxu0 0
        %2303 = vmatprep.subr.bf16.mxu0 0
        %2304 = vmatpush1.bf16.msra.mxu0 0
        %2305 = vmatprep.subr.bf16.mxu0 0
        %2306 = vmatpush1.bf16.msra.mxu0 0
        %2307 = vmatprep.subr.bf16.mxu0 0
        %2308 = vmatpush1.bf16.msra.mxu0 0
        %2309 = vmatprep.subr.bf16.mxu0 0
        %2310 = vmatpush1.bf16.msra.mxu0 0
        %2311 = vmatprep.subr.bf16.mxu0 0
        %2312 = vmatpush1.bf16.msra.mxu0 0
        %2313 = vmatprep.subr.bf16.mxu0 0
        %2314 = vmatpush1.bf16.msra.mxu0 0
        %2315 = vmatprep.subr.bf16.mxu0 0
        %2316 = vmatpush1.bf16.msra.mxu0 0
        %2317 = vmatprep.mubr.bf16.mxu0 0
        %2318 = vmatmul.mubr.bf16.gmra.mrb[0].mxu0 %v2190
        %v2319 = vpop.f32.mrb[0].mxu0
        %v2320 = vadd.f32 0.0, %v2319
        %v2321 = vpop.f32.mrb[0].mxu0
        %v2322 = vpop.f32.mrb[0].mxu0
        %v2323 = vadd.f32 0.0, %v2322
        %v2324 = vpop.f32.mrb[0].mxu0
        %2325 = vmatprep.mubr.bf16.mxu0 0
        %2326 = vmatmul.mubr.bf16.gmra.mrb[0].mxu0 %v2192
        %v2327 = vpop.f32.mrb[0].mxu0
        %v2328 = vadd.f32 0.0, %v2327
        %v2329 = vpop.f32.mrb[0].mxu0
        %v2330 = vpop.f32.mrb[0].mxu0
        %v2331 = vadd.f32 0.0, %v2330
        %v2332 = vpop.f32.mrb[0].mxu0
        %2333 = vmatprep.mubr.bf16.mxu0 0
        %2334 = vmatmul.mubr.bf16.gmra.mrb[0].mxu0 %v2194
        %v2335 = vpop.f32.mrb[0].mxu0
        %v2336 = vadd.f32 0.0, %v2335
        %v2337 = vpop.f32.mrb[0].mxu0
        %v2338 = vpop.f32.mrb[0].mxu0
        %v2339 = vadd.f32 0.0, %v2338
        %v2340 = vpop.f32.mrb[0].mxu0
        %2341 = vmatprep.mubr.bf16.mxu0 0
        %2342 = vmatmul.mubr.bf16.gmra.mrb[0].mxu0 %v2196
        %v2343 = vpop.f32.mrb[0].mxu0
        %v2344 = vadd.f32 0.0, %v2343
        %v2345 = vpop.f32.mrb[0].mxu0
        %v2346 = vpop.f32.mrb[0].mxu0
        %v2347 = vadd.f32 0.0, %v2346
        %v2348 = vpop.f32.mrb[0].mxu0
        %2349 = vmatprep.mubr.bf16.mxu0 0
        %2350 = vmatmul.mubr.bf16.gmra.mrb[0].mxu0 %v2198
        %v2351 = vpop.f32.mrb[0].mxu0
        %v2352 = vadd.f32 0.0, %v2351
        %v2353 = vpop.f32.mrb[0].mxu0
        %v2354 = vpop.f32.mrb[0].mxu0
        %v2355 = vadd.f32 0.0, %v2354
        %v2356 = vpop.f32.mrb[0].mxu0
        %2357 = vmatprep.mubr.bf16.mxu0 0
        %2358 = vmatmul.mubr.bf16.gmra.mrb[0].mxu0 %v2200
        %v2359 = vpop.f32.mrb[0].mxu0
        %v2360 = vadd.f32 0.0, %v2359
        %v2361 = vpop.f32.mrb[0].mxu0
        %v2362 = vpop.f32.mrb[0].mxu0
        %v2363 = vadd.f32 0.0, %v2362
        %v2364 = vpop.f32.mrb[0].mxu0
        %2365 = vmatprep.mubr.bf16.mxu0 0
        %2366 = vmatmul.mubr.bf16.gmra.mrb[0].mxu0 %v2202
        %v2367 = vpop.f32.mrb[0].mxu0
        %v2368 = vadd.f32 0.0, %v2367
        %v2369 = vpop.f32.mrb[0].mxu0
        %v2370 = vpop.f32.mrb[0].mxu0
        %v2371 = vadd.f32 0.0, %v2370
        %v2372 = vpop.f32.mrb[0].mxu0
        %2373 = vmatprep.mubr.bf16.mxu0 0
        %2374 = vmatmul.mubr.bf16.gmra.mrb[0].mxu0 %v2204
        %v2375 = vpop.f32.mrb[0].mxu0
        %v2376 = vadd.f32 0.0, %v2375
        %v2377 = vpop.f32.mrb[0].mxu0
        %v2378 = vpop.f32.mrb[0].mxu0
        %v2379 = vadd.f32 0.0, %v2378
        %v2380 = vpop.f32.mrb[0].mxu0
        %2381 = vmatprep.mubr.bf16.mxu0 0
        %2382 = vmatmul.mubr.bf16.gmra.mrb[0].mxu0 %v2206
        %v2383 = vpop.f32.mrb[0].mxu0
        %v2384 = vadd.f32 0.0, %v2383
        %v2385 = vpop.f32.mrb[0].mxu0
        %v2386 = vpop.f32.mrb[0].mxu0
        %v2387 = vadd.f32 0.0, %v2386
        %v2388 = vpop.f32.mrb[0].mxu0
        %2389 = vmatprep.mubr.bf16.mxu0 0
        %2390 = vmatmul.mubr.bf16.gmra.mrb[0].mxu0 %v2208
        %v2391 = vpop.f32.mrb[0].mxu0
        %v2392 = vadd.f32 0.0, %v2391
        %v2393 = vpop.f32.mrb[0].mxu0
        %v2394 = vpop.f32.mrb[0].mxu0
        %v2395 = vadd.f32 0.0, %v2394
        %v2396 = vpop.f32.mrb[0].mxu0
        %2397 = vmatprep.mubr.bf16.mxu0 0
        %2398 = vmatmul.mubr.bf16.gmra.mrb[0].mxu0 %v2210
        %v2399 = vpop.f32.mrb[0].mxu0
        %v2400 = vadd.f32 0.0, %v2399
        %v2401 = vpop.f32.mrb[0].mxu0
        %v2402 = vpop.f32.mrb[0].mxu0
        %v2403 = vadd.f32 0.0, %v2402
        %v2404 = vpop.f32.mrb[0].mxu0
        %2405 = vmatprep.mubr.bf16.mxu0 0
        %2406 = vmatmul.mubr.bf16.gmra.mrb[0].mxu0 %v2212
        %v2407 = vpop.f32.mrb[0].mxu0
        %v2408 = vadd.f32 0.0, %v2407
        %v2409 = vpop.f32.mrb[0].mxu0
        %v2410 = vpop.f32.mrb[0].mxu0
        %v2411 = vadd.f32 0.0, %v2410
        %v2412 = vpop.f32.mrb[0].mxu0
        %2413 = vmatprep.mubr.bf16.mxu0 0
        %2414 = vmatmul.mubr.bf16.gmra.mrb[0].mxu0 %v2214
        %v2415 = vpop.f32.mrb[0].mxu0
        %v2416 = vadd.f32 0.0, %v2415
        %v2417 = vpop.f32.mrb[0].mxu0
        %v2418 = vpop.f32.mrb[0].mxu0
        %v2419 = vadd.f32 0.0, %v2418
        %v2420 = vpop.f32.mrb[0].mxu0
        %2421 = vmatprep.mubr.bf16.mxu0 0
        %2422 = vmatmul.mubr.bf16.gmra.mrb[0].mxu0 %v2216
        %v2423 = vpop.f32.mrb[0].mxu0
        %v2424 = vadd.f32 0.0, %v2423
        %v2425 = vpop.f32.mrb[0].mxu0
        %v2426 = vpop.f32.mrb[0].mxu0
        %v2427 = vadd.f32 0.0, %v2426
        %v2428 = vpop.f32.mrb[0].mxu0
        %2429 = vmatprep.mubr.bf16.mxu0 0
        %2430 = vmatmul.mubr.bf16.gmra.mrb[0].mxu0 %v2218
        %v2431 = vpop.f32.mrb[0].mxu0
        %v2432 = vadd.f32 0.0, %v2431
        %v2433 = vpop.f32.mrb[0].mxu0
        %v2434 = vpop.f32.mrb[0].mxu0
        %v2435 = vadd.f32 0.0, %v2434
        %v2436 = vpop.f32.mrb[0].mxu0
        %2437 = vmatprep.mubr.bf16.mxu0 0
        %2438 = vmatmul.mubr.bf16.gmra.mrb[0].mxu0 %v2220
        %v2439 = vpop.f32.mrb[0].mxu0
        %v2440 = vadd.f32 0.0, %v2439
        %v2441 = vpop.f32.mrb[0].mxu0
        %v2442 = vpop.f32.mrb[0].mxu0
        %v2443 = vadd.f32 0.0, %v2442
        %v2444 = vpop.f32.mrb[0].mxu0
        %2445 = vdwg.mxu0
        %v2446 = vadd.f32 %v2123, %v2320
        %v2447 = vadd.f32 %v2124, %v2323
        %v2448 = vadd.f32 %v2125, %v2328
        %v2449 = vadd.f32 %v2126, %v2331
        %v2450 = vadd.f32 %v2127, %v2336
        %v2451 = vadd.f32 %v2128, %v2339
        %v2452 = vadd.f32 %v2129, %v2344
        %v2453 = vadd.f32 %v2130, %v2347
        %v2454 = vadd.f32 %v2131, %v2352
        %v2455 = vadd.f32 %v2132, %v2355
        %v2456 = vadd.f32 %v2133, %v2360
        %v2457 = vadd.f32 %v2134, %v2363
        %v2458 = vadd.f32 %v2135, %v2368
        %v2459 = vadd.f32 %v2136, %v2371
        %v2460 = vadd.f32 %v2137, %v2376
        %v2461 = vadd.f32 %v2138, %v2379
        %v2462 = vadd.f32 %v2139, %v2384
        %v2463 = vadd.f32 %v2140, %v2387
        %v2464 = vadd.f32 %v2141, %v2392
        %v2465 = vadd.f32 %v2142, %v2395
        %v2466 = vadd.f32 %v2143, %v2400
        %v2467 = vadd.f32 %v2144, %v2403
        %v2468 = vadd.f32 %v2145, %v2408
        %v2469 = vadd.f32 %v2146, %v2411
        %v2470 = vadd.f32 %v2147, %v2416
        %v2471 = vadd.f32 %v2148, %v2419
        %v2472 = vadd.f32 %v2149, %v2424
        %v2473 = vadd.f32 %v2150, %v2427
        %v2474 = vadd.f32 %v2151, %v2432
        %v2475 = vadd.f32 %v2152, %v2435
        %v2476 = vadd.f32 %v2153, %v2440
        %v2477 = vadd.f32 %v2154, %v2443
        %v2478 = vpack.c.bf16 %v526, %v525
        %v2479 = vpack.c.bf16 %v528, %v527
        %v2480 = vpack.c.bf16 %v530, %v529
        %v2481 = vpack.c.bf16 %v532, %v531
        %v2482 = vpack.c.bf16 %v534, %v533
        %v2483 = vld [vmem:[#allocation7 + $0x180] sm:$0xf]
        %v2484 = vld [vmem:[#allocation7 + $0x184] sm:$0xf]
        %v2485 = vld [vmem:[#allocation7 + $0x188] sm:$0xf]
        %v2486 = vld [vmem:[#allocation7 + $0x18c] sm:$0xf]
        %v2487 = vld [vmem:[#allocation7 + $0x190] sm:$0xf]
        %v2488 = vld [vmem:[#allocation7 + $0x194] sm:$0xf]
        %v2489 = vld [vmem:[#allocation7 + $0x198] sm:$0xf]
        %v2490 = vld [vmem:[#allocation7 + $0x19c] sm:$0xf]
        %v2491 = vld [vmem:[#allocation7 + $0x1a0] sm:$0xf]
        %v2492 = vld [vmem:[#allocation7 + $0x1a4] sm:$0xf]
        %v2493 = vld [vmem:[#allocation7 + $0x1a8] sm:$0xf]
        %v2494 = vld [vmem:[#allocation7 + $0x1ac] sm:$0xf]
        %v2495 = vld [vmem:[#allocation7 + $0x1b0] sm:$0xf]
        %v2496 = vld [vmem:[#allocation7 + $0x1b4] sm:$0xf]
        %v2497 = vld [vmem:[#allocation7 + $0x1b8] sm:$0xf]
        %v2498 = vld [vmem:[#allocation7 + $0x1bc] sm:$0xf]
        %v2515 = vunpack.c.l.b16 %v2483
        %v2516 = vunpack.c.l.b16 %v2484
        %v2517 = vunpack.c.l.b16 %v2485
        %v2518 = vunpack.c.l.b16 %v2486
        %v2519 = vunpack.c.l.b16 %v2487
        %v2520 = vunpack.c.l.b16 %v2488
        %v2521 = vunpack.c.l.b16 %v2489
        %v2522 = vunpack.c.l.b16 %v2490
        %v2523 = vunpack.c.l.b16 %v2491
        %v2524 = vunpack.c.l.b16 %v2492
        %v2525 = vunpack.c.l.b16 %v2493
        %v2526 = vunpack.c.l.b16 %v2494
        %v2527 = vunpack.c.l.b16 %v2495
        %v2528 = vunpack.c.l.b16 %v2496
        %v2529 = vunpack.c.l.b16 %v2497
        %v2530 = vunpack.c.l.b16 %v2498
        %v2531 = vpack.c.b16 %v2516, %v2515
        %v2532 = vpack.c.b16 %v2518, %v2517
        %v2533 = vpack.c.b16 %v2520, %v2519
        %v2534 = vpack.c.b16 %v2522, %v2521
        %v2535 = vpack.c.b16 %v2524, %v2523
        %v2536 = vpack.c.b16 %v2526, %v2525
        %v2537 = vpack.c.b16 %v2528, %v2527
        %v2538 = vpack.c.b16 %v2530, %v2529
        %2547 = vmatprep.subr.bf16.mxu0 0
        %2548 = vmatpush1.bf16.msra.mxu0 %v2531
        %2549 = vmatprep.subr.bf16.mxu0 0
        %2550 = vmatpush1.bf16.msra.mxu0 %v2532
        %2551 = vmatprep.subr.bf16.mxu0 0
        %2552 = vmatpush1.bf16.msra.mxu0 %v2533
        %2553 = vmatprep.subr.bf16.mxu0 0
        %2554 = vmatpush1.bf16.msra.mxu0 %v2534
        %2555 = vmatprep.subr.bf16.mxu0 0
        %2556 = vmatpush1.bf16.msra.mxu0 %v2535
        %2557 = vmatprep.subr.bf16.mxu0 0
        %2558 = vmatpush1.bf16.msra.mxu0 %v2536
        %2559 = vmatprep.subr.bf16.mxu0 0
        %2560 = vmatpush1.bf16.msra.mxu0 %v2537
        %2561 = vmatprep.subr.bf16.mxu0 0
        %2562 = vmatpush1.bf16.msra.mxu0 %v2538
        %2563 = vmatprep.subr.bf16.mxu0 0
        %2564 = vmatpush1.bf16.msra.mxu0 0
        %2565 = vmatprep.subr.bf16.mxu0 0
        %2566 = vmatpush1.bf16.msra.mxu0 0
        %2567 = vmatprep.subr.bf16.mxu0 0
        %2568 = vmatpush1.bf16.msra.mxu0 0
        %2569 = vmatprep.subr.bf16.mxu0 0
        %2570 = vmatpush1.bf16.msra.mxu0 0
        %2571 = vmatprep.subr.bf16.mxu0 0
        %2572 = vmatpush1.bf16.msra.mxu0 0
        %2573 = vmatprep.subr.bf16.mxu0 0
        %2574 = vmatpush1.bf16.msra.mxu0 0
        %2575 = vmatprep.subr.bf16.mxu0 0
        %2576 = vmatpush1.bf16.msra.mxu0 0
        %2577 = vmatprep.subr.bf16.mxu0 0
        %2578 = vmatpush1.bf16.msra.mxu0 0
        %2579 = vmatprep.mubr.bf16.mxu0 0
        %2580 = vmatmul.mubr.bf16.gmra.mrb[0].mxu0 %v541
        %v2581 = vpop.f32.mrb[0].mxu0
        %v2582 = vadd.f32 0.0, %v2581
        %v2583 = vpop.f32.mrb[0].mxu0
        %v2584 = vpop.f32.mrb[0].mxu0
        %v2585 = vadd.f32 0.0, %v2584
        %v2586 = vpop.f32.mrb[0].mxu0
        %2587 = vmatprep.mubr.bf16.mxu0 0
        %2588 = vmatmul.mubr.bf16.gmra.mrb[0].mxu0 %v542
        %v2589 = vpop.f32.mrb[0].mxu0
        %v2590 = vadd.f32 0.0, %v2589
        %v2591 = vpop.f32.mrb[0].mxu0
        %v2592 = vpop.f32.mrb[0].mxu0
        %v2593 = vadd.f32 0.0, %v2592
        %v2594 = vpop.f32.mrb[0].mxu0
        %2595 = vmatprep.mubr.bf16.mxu0 0
        %2596 = vmatmul.mubr.bf16.gmra.mrb[0].mxu0 %v543
        %v2597 = vpop.f32.mrb[0].mxu0
        %v2598 = vadd.f32 0.0, %v2597
        %v2599 = vpop.f32.mrb[0].mxu0
        %v2600 = vpop.f32.mrb[0].mxu0
        %v2601 = vadd.f32 0.0, %v2600
        %v2602 = vpop.f32.mrb[0].mxu0
        %2603 = vmatprep.mubr.bf16.mxu0 0
        %2604 = vmatmul.mubr.bf16.gmra.mrb[0].mxu0 %v544
        %v2605 = vpop.f32.mrb[0].mxu0
        %v2606 = vadd.f32 0.0, %v2605
        %v2607 = vpop.f32.mrb[0].mxu0
        %v2608 = vpop.f32.mrb[0].mxu0
        %v2609 = vadd.f32 0.0, %v2608
        %v2610 = vpop.f32.mrb[0].mxu0
        %2611 = vmatprep.mubr.bf16.mxu0 0
        %2612 = vmatmul.mubr.bf16.gmra.mrb[0].mxu0 %v545
        %v2613 = vpop.f32.mrb[0].mxu0
        %v2614 = vadd.f32 0.0, %v2613
        %v2615 = vpop.f32.mrb[0].mxu0
        %v2616 = vpop.f32.mrb[0].mxu0
        %v2617 = vadd.f32 0.0, %v2616
        %v2618 = vpop.f32.mrb[0].mxu0
        %2619 = vmatprep.mubr.bf16.mxu0 0
        %2620 = vmatmul.mubr.bf16.gmra.mrb[0].mxu0 %v546
        %v2621 = vpop.f32.mrb[0].mxu0
        %v2622 = vadd.f32 0.0, %v2621
        %v2623 = vpop.f32.mrb[0].mxu0
        %v2624 = vpop.f32.mrb[0].mxu0
        %v2625 = vadd.f32 0.0, %v2624
        %v2626 = vpop.f32.mrb[0].mxu0
        %2627 = vmatprep.mubr.bf16.mxu0 0
        %2628 = vmatmul.mubr.bf16.gmra.mrb[0].mxu0 %v547
        %v2629 = vpop.f32.mrb[0].mxu0
        %v2630 = vadd.f32 0.0, %v2629
        %v2631 = vpop.f32.mrb[0].mxu0
        %v2632 = vpop.f32.mrb[0].mxu0
        %v2633 = vadd.f32 0.0, %v2632
        %v2634 = vpop.f32.mrb[0].mxu0
        %2635 = vmatprep.mubr.bf16.mxu0 0
        %2636 = vmatmul.mubr.bf16.gmra.mrb[0].mxu0 %v548
        %v2637 = vpop.f32.mrb[0].mxu0
        %v2638 = vadd.f32 0.0, %v2637
        %v2639 = vpop.f32.mrb[0].mxu0
        %v2640 = vpop.f32.mrb[0].mxu0
        %v2641 = vadd.f32 0.0, %v2640
        %v2642 = vpop.f32.mrb[0].mxu0
        %2643 = vmatprep.mubr.bf16.mxu0 0
        %2644 = vmatmul.mubr.bf16.gmra.mrb[0].mxu0 %v549
        %v2645 = vpop.f32.mrb[0].mxu0
        %v2646 = vadd.f32 0.0, %v2645
        %v2647 = vpop.f32.mrb[0].mxu0
        %v2648 = vpop.f32.mrb[0].mxu0
        %v2649 = vadd.f32 0.0, %v2648
        %v2650 = vpop.f32.mrb[0].mxu0
        %2651 = vmatprep.mubr.bf16.mxu0 0
        %2652 = vmatmul.mubr.bf16.gmra.mrb[0].mxu0 %v550
        %v2653 = vpop.f32.mrb[0].mxu0
        %v2654 = vadd.f32 0.0, %v2653
        %v2655 = vpop.f32.mrb[0].mxu0
        %v2656 = vpop.f32.mrb[0].mxu0
        %v2657 = vadd.f32 0.0, %v2656
        %v2658 = vpop.f32.mrb[0].mxu0
        %2659 = vmatprep.mubr.bf16.mxu0 0
        %2660 = vmatmul.mubr.bf16.gmra.mrb[0].mxu0 %v551
        %v2661 = vpop.f32.mrb[0].mxu0
        %v2662 = vadd.f32 0.0, %v2661
        %v2663 = vpop.f32.mrb[0].mxu0
        %v2664 = vpop.f32.mrb[0].mxu0
        %v2665 = vadd.f32 0.0, %v2664
        %v2666 = vpop.f32.mrb[0].mxu0
        %2667 = vmatprep.mubr.bf16.mxu0 0
        %2668 = vmatmul.mubr.bf16.gmra.mrb[0].mxu0 %v2478
        %v2669 = vpop.f32.mrb[0].mxu0
        %v2670 = vadd.f32 0.0, %v2669
        %v2671 = vpop.f32.mrb[0].mxu0
        %v2672 = vpop.f32.mrb[0].mxu0
        %v2673 = vadd.f32 0.0, %v2672
        %v2674 = vpop.f32.mrb[0].mxu0
        %2675 = vmatprep.mubr.bf16.mxu0 0
        %2676 = vmatmul.mubr.bf16.gmra.mrb[0].mxu0 %v2479
        %v2677 = vpop.f32.mrb[0].mxu0
        %v2678 = vadd.f32 0.0, %v2677
        %v2679 = vpop.f32.mrb[0].mxu0
        %v2680 = vpop.f32.mrb[0].mxu0
        %v2681 = vadd.f32 0.0, %v2680
        %v2682 = vpop.f32.mrb[0].mxu0
        %2683 = vmatprep.mubr.bf16.mxu0 0
        %2684 = vmatmul.mubr.bf16.gmra.mrb[0].mxu0 %v2480
        %v2685 = vpop.f32.mrb[0].mxu0
        %v2686 = vadd.f32 0.0, %v2685
        %v2687 = vpop.f32.mrb[0].mxu0
        %v2688 = vpop.f32.mrb[0].mxu0
        %v2689 = vadd.f32 0.0, %v2688
        %v2690 = vpop.f32.mrb[0].mxu0
        %2691 = vmatprep.mubr.bf16.mxu0 0
        %2692 = vmatmul.mubr.bf16.gmra.mrb[0].mxu0 %v2481
        %v2693 = vpop.f32.mrb[0].mxu0
        %v2694 = vadd.f32 0.0, %v2693
        %v2695 = vpop.f32.mrb[0].mxu0
        %v2696 = vpop.f32.mrb[0].mxu0
        %v2697 = vadd.f32 0.0, %v2696
        %v2698 = vpop.f32.mrb[0].mxu0
        %2699 = vmatprep.mubr.bf16.mxu0 0
        %2700 = vmatmul.mubr.bf16.gmra.mrb[0].mxu0 %v2482
        %v2701 = vpop.f32.mrb[0].mxu0
        %v2702 = vadd.f32 0.0, %v2701
        %v2703 = vpop.f32.mrb[0].mxu0
        %v2704 = vpop.f32.mrb[0].mxu0
        %v2705 = vadd.f32 0.0, %v2704
        %v2706 = vpop.f32.mrb[0].mxu0
        %2707 = vdwg.mxu0
        %v2708 = vadd.f32 %v2446, %v2582
        %v2709 = vadd.f32 %v2447, %v2585
        %v2710 = vadd.f32 %v2448, %v2590
        %v2711 = vadd.f32 %v2449, %v2593
        %v2712 = vadd.f32 %v2450, %v2598
        %v2713 = vadd.f32 %v2451, %v2601
        %v2714 = vadd.f32 %v2452, %v2606
        %v2715 = vadd.f32 %v2453, %v2609
        %v2716 = vadd.f32 %v2454, %v2614
        %v2717 = vadd.f32 %v2455, %v2617
        %v2718 = vadd.f32 %v2456, %v2622
        %v2719 = vadd.f32 %v2457, %v2625
        %v2720 = vadd.f32 %v2458, %v2630
        %v2721 = vadd.f32 %v2459, %v2633
        %v2722 = vadd.f32 %v2460, %v2638
        %v2723 = vadd.f32 %v2461, %v2641
        %v2724 = vadd.f32 %v2462, %v2646
        %v2725 = vadd.f32 %v2463, %v2649
        %v2726 = vadd.f32 %v2464, %v2654
        %v2727 = vadd.f32 %v2465, %v2657
        %v2728 = vadd.f32 %v2466, %v2662
        %v2729 = vadd.f32 %v2467, %v2665
        %v2730 = vadd.f32 %v2468, %v2670
        %v2731 = vadd.f32 %v2469, %v2673
        %v2732 = vadd.f32 %v2470, %v2678
        %v2733 = vadd.f32 %v2471, %v2681
        %v2734 = vadd.f32 %v2472, %v2686
        %v2735 = vadd.f32 %v2473, %v2689
        %v2736 = vadd.f32 %v2474, %v2694
        %v2737 = vadd.f32 %v2475, %v2697
        %v2738 = vadd.f32 %v2476, %v2702
        %v2739 = vadd.f32 %v2477, %v2705
        %v2740 = vpack.c.bf16 %v535, %v535
        %v2741 = vld [vmem:[#allocation7 + $0x1c0] sm:$0xf]
        %v2742 = vld [vmem:[#allocation7 + $0x1c4] sm:$0xf]
        %v2743 = vld [vmem:[#allocation7 + $0x1c8] sm:$0xf]
        %v2744 = vld [vmem:[#allocation7 + $0x1cc] sm:$0xf]
        %v2745 = vld [vmem:[#allocation7 + $0x1d0] sm:$0xf]
        %v2746 = vld [vmem:[#allocation7 + $0x1d4] sm:$0xf]
        %v2747 = vld [vmem:[#allocation7 + $0x1d8] sm:$0xf]
        %v2748 = vld [vmem:[#allocation7 + $0x1dc] sm:$0xf]
        %v2749 = vld [vmem:[#allocation7 + $0x1e0] sm:$0xf]
        %v2750 = vld [vmem:[#allocation7 + $0x1e4] sm:$0xf]
        %v2751 = vld [vmem:[#allocation7 + $0x1e8] sm:$0xf]
        %v2752 = vld [vmem:[#allocation7 + $0x1ec] sm:$0xf]
        %v2753 = vld [vmem:[#allocation7 + $0x1f0] sm:$0xf]
        %v2754 = vld [vmem:[#allocation7 + $0x1f4] sm:$0xf]
        %v2755 = vld [vmem:[#allocation7 + $0x1f8] sm:$0xf]
        %v2756 = vld [vmem:[#allocation7 + $0x1fc] sm:$0xf]
        %v2758 = vshll.u32 %v2478, 16
        %v2760 = vrot.slane %v2758, 1
        %v2761 = vsel %vm585, %v712, %v2760
        %v2762 = vshrl.u32 %v2478, 16
        %v2764 = vor.u32 %v2762, %v2760
        %v2766 = vshll.u32 %v2479, 16
        %v2768 = vrot.slane %v2766, 1
        %v2769 = vsel %vm585, %v2764, %v2768
        %v2770 = vshrl.u32 %v2479, 16
        %v2772 = vor.u32 %v2770, %v2768
        %v2774 = vshll.u32 %v2480, 16
        %v2776 = vrot.slane %v2774, 1
        %v2777 = vsel %vm585, %v2772, %v2776
        %v2778 = vshrl.u32 %v2480, 16
        %v2780 = vor.u32 %v2778, %v2776
        %v2782 = vshll.u32 %v2481, 16
        %v2784 = vrot.slane %v2782, 1
        %v2785 = vsel %vm585, %v2780, %v2784
        %v2786 = vshrl.u32 %v2481, 16
        %v2788 = vor.u32 %v2786, %v2784
        %v2790 = vshll.u32 %v2482, 16
        %v2792 = vrot.slane %v2790, 1
        %v2793 = vsel %vm585, %v2788, %v2792
        %v2794 = vshrl.u32 %v2482, 16
        %v2796 = vor.u32 %v2794, %v2792
        %v2798 = vshll.u32 %v2740, 16
        %v2800 = vrot.slane %v2798, 1
        %v2801 = vsel %vm585, %v2796, %v2800
        %v2824 = vunpack.c.l.b16 %v2741
        %v2825 = vunpack.c.l.b16 %v2742
        %v2826 = vunpack.c.l.b16 %v2743
        %v2827 = vunpack.c.l.b16 %v2744
        %v2828 = vunpack.c.l.b16 %v2745
        %v2829 = vunpack.c.l.b16 %v2746
        %v2830 = vunpack.c.l.b16 %v2747
        %v2831 = vunpack.c.l.b16 %v2748
        %v2832 = vunpack.c.l.b16 %v2749
        %v2833 = vunpack.c.l.b16 %v2750
        %v2834 = vunpack.c.l.b16 %v2751
        %v2835 = vunpack.c.l.b16 %v2752
        %v2836 = vunpack.c.l.b16 %v2753
        %v2837 = vunpack.c.l.b16 %v2754
        %v2838 = vunpack.c.l.b16 %v2755
        %v2839 = vunpack.c.l.b16 %v2756
        %v2840 = vpack.c.b16 %v2825, %v2824
        %v2841 = vpack.c.b16 %v2827, %v2826
        %v2842 = vpack.c.b16 %v2829, %v2828
        %v2843 = vpack.c.b16 %v2831, %v2830
        %v2844 = vpack.c.b16 %v2833, %v2832
        %v2845 = vpack.c.b16 %v2835, %v2834
        %v2846 = vpack.c.b16 %v2837, %v2836
        %v2847 = vpack.c.b16 %v2839, %v2838
        %2856 = vmatprep.subr.bf16.mxu0 0
        %2857 = vmatpush1.bf16.msra.mxu0 %v2840
        %2858 = vmatprep.subr.bf16.mxu0 0
        %2859 = vmatpush1.bf16.msra.mxu0 %v2841
        %2860 = vmatprep.subr.bf16.mxu0 0
        %2861 = vmatpush1.bf16.msra.mxu0 %v2842
        %2862 = vmatprep.subr.bf16.mxu0 0
        %2863 = vmatpush1.bf16.msra.mxu0 %v2843
        %2864 = vmatprep.subr.bf16.mxu0 0
        %2865 = vmatpush1.bf16.msra.mxu0 %v2844
        %2866 = vmatprep.subr.bf16.mxu0 0
        %2867 = vmatpush1.bf16.msra.mxu0 %v2845
        %2868 = vmatprep.subr.bf16.mxu0 0
        %2869 = vmatpush1.bf16.msra.mxu0 %v2846
        %2870 = vmatprep.subr.bf16.mxu0 0
        %2871 = vmatpush1.bf16.msra.mxu0 %v2847
        %2872 = vmatprep.subr.bf16.mxu0 0
        %2873 = vmatpush1.bf16.msra.mxu0 0
        %2874 = vmatprep.subr.bf16.mxu0 0
        %2875 = vmatpush1.bf16.msra.mxu0 0
        %2876 = vmatprep.subr.bf16.mxu0 0
        %2877 = vmatpush1.bf16.msra.mxu0 0
        %2878 = vmatprep.subr.bf16.mxu0 0
        %2879 = vmatpush1.bf16.msra.mxu0 0
        %2880 = vmatprep.subr.bf16.mxu0 0
        %2881 = vmatpush1.bf16.msra.mxu0 0
        %2882 = vmatprep.subr.bf16.mxu0 0
        %2883 = vmatpush1.bf16.msra.mxu0 0
        %2884 = vmatprep.subr.bf16.mxu0 0
        %2885 = vmatpush1.bf16.msra.mxu0 0
        %2886 = vmatprep.subr.bf16.mxu0 0
        %2887 = vmatpush1.bf16.msra.mxu0 0
        %2888 = vmatprep.mubr.bf16.mxu0 0
        %2889 = vmatmul.mubr.bf16.gmra.mrb[0].mxu0 %v637
        %v2890 = vpop.f32.mrb[0].mxu0
        %v2891 = vadd.f32 0.0, %v2890
        %v2892 = vpop.f32.mrb[0].mxu0
        %v2893 = vpop.f32.mrb[0].mxu0
        %v2894 = vadd.f32 0.0, %v2893
        %v2895 = vpop.f32.mrb[0].mxu0
        %2896 = vmatprep.mubr.bf16.mxu0 0
        %2897 = vmatmul.mubr.bf16.gmra.mrb[0].mxu0 %v645
        %v2898 = vpop.f32.mrb[0].mxu0
        %v2899 = vadd.f32 0.0, %v2898
        %v2900 = vpop.f32.mrb[0].mxu0
        %v2901 = vpop.f32.mrb[0].mxu0
        %v2902 = vadd.f32 0.0, %v2901
        %v2903 = vpop.f32.mrb[0].mxu0
        %2904 = vmatprep.mubr.bf16.mxu0 0
        %2905 = vmatmul.mubr.bf16.gmra.mrb[0].mxu0 %v653
        %v2906 = vpop.f32.mrb[0].mxu0
        %v2907 = vadd.f32 0.0, %v2906
        %v2908 = vpop.f32.mrb[0].mxu0
        %v2909 = vpop.f32.mrb[0].mxu0
        %v2910 = vadd.f32 0.0, %v2909
        %v2911 = vpop.f32.mrb[0].mxu0
        %2912 = vmatprep.mubr.bf16.mxu0 0
        %2913 = vmatmul.mubr.bf16.gmra.mrb[0].mxu0 %v661
        %v2914 = vpop.f32.mrb[0].mxu0
        %v2915 = vadd.f32 0.0, %v2914
        %v2916 = vpop.f32.mrb[0].mxu0
        %v2917 = vpop.f32.mrb[0].mxu0
        %v2918 = vadd.f32 0.0, %v2917
        %v2919 = vpop.f32.mrb[0].mxu0
        %2920 = vmatprep.mubr.bf16.mxu0 0
        %2921 = vmatmul.mubr.bf16.gmra.mrb[0].mxu0 %v669
        %v2922 = vpop.f32.mrb[0].mxu0
        %v2923 = vadd.f32 0.0, %v2922
        %v2924 = vpop.f32.mrb[0].mxu0
        %v2925 = vpop.f32.mrb[0].mxu0
        %v2926 = vadd.f32 0.0, %v2925
        %v2927 = vpop.f32.mrb[0].mxu0
        %2928 = vmatprep.mubr.bf16.mxu0 0
        %2929 = vmatmul.mubr.bf16.gmra.mrb[0].mxu0 %v677
        %v2930 = vpop.f32.mrb[0].mxu0
        %v2931 = vadd.f32 0.0, %v2930
        %v2932 = vpop.f32.mrb[0].mxu0
        %v2933 = vpop.f32.mrb[0].mxu0
        %v2934 = vadd.f32 0.0, %v2933
        %v2935 = vpop.f32.mrb[0].mxu0
        %2936 = vmatprep.mubr.bf16.mxu0 0
        %2937 = vmatmul.mubr.bf16.gmra.mrb[0].mxu0 %v685
        %v2938 = vpop.f32.mrb[0].mxu0
        %v2939 = vadd.f32 0.0, %v2938
        %v2940 = vpop.f32.mrb[0].mxu0
        %v2941 = vpop.f32.mrb[0].mxu0
        %v2942 = vadd.f32 0.0, %v2941
        %v2943 = vpop.f32.mrb[0].mxu0
        %2944 = vmatprep.mubr.bf16.mxu0 0
        %2945 = vmatmul.mubr.bf16.gmra.mrb[0].mxu0 %v693
        %v2946 = vpop.f32.mrb[0].mxu0
        %v2947 = vadd.f32 0.0, %v2946
        %v2948 = vpop.f32.mrb[0].mxu0
        %v2949 = vpop.f32.mrb[0].mxu0
        %v2950 = vadd.f32 0.0, %v2949
        %v2951 = vpop.f32.mrb[0].mxu0
        %2952 = vmatprep.mubr.bf16.mxu0 0
        %2953 = vmatmul.mubr.bf16.gmra.mrb[0].mxu0 %v701
        %v2954 = vpop.f32.mrb[0].mxu0
        %v2955 = vadd.f32 0.0, %v2954
        %v2956 = vpop.f32.mrb[0].mxu0
        %v2957 = vpop.f32.mrb[0].mxu0
        %v2958 = vadd.f32 0.0, %v2957
        %v2959 = vpop.f32.mrb[0].mxu0
        %2960 = vmatprep.mubr.bf16.mxu0 0
        %2961 = vmatmul.mubr.bf16.gmra.mrb[0].mxu0 %v709
        %v2962 = vpop.f32.mrb[0].mxu0
        %v2963 = vadd.f32 0.0, %v2962
        %v2964 = vpop.f32.mrb[0].mxu0
        %v2965 = vpop.f32.mrb[0].mxu0
        %v2966 = vadd.f32 0.0, %v2965
        %v2967 = vpop.f32.mrb[0].mxu0
        %2968 = vmatprep.mubr.bf16.mxu0 0
        %2969 = vmatmul.mubr.bf16.gmra.mrb[0].mxu0 %v2761
        %v2970 = vpop.f32.mrb[0].mxu0
        %v2971 = vadd.f32 0.0, %v2970
        %v2972 = vpop.f32.mrb[0].mxu0
        %v2973 = vpop.f32.mrb[0].mxu0
        %v2974 = vadd.f32 0.0, %v2973
        %v2975 = vpop.f32.mrb[0].mxu0
        %2976 = vmatprep.mubr.bf16.mxu0 0
        %2977 = vmatmul.mubr.bf16.gmra.mrb[0].mxu0 %v2769
        %v2978 = vpop.f32.mrb[0].mxu0
        %v2979 = vadd.f32 0.0, %v2978
        %v2980 = vpop.f32.mrb[0].mxu0
        %v2981 = vpop.f32.mrb[0].mxu0
        %v2982 = vadd.f32 0.0, %v2981
        %v2983 = vpop.f32.mrb[0].mxu0
        %2984 = vmatprep.mubr.bf16.mxu0 0
        %2985 = vmatmul.mubr.bf16.gmra.mrb[0].mxu0 %v2777
        %v2986 = vpop.f32.mrb[0].mxu0
        %v2987 = vadd.f32 0.0, %v2986
        %v2988 = vpop.f32.mrb[0].mxu0
        %v2989 = vpop.f32.mrb[0].mxu0
        %v2990 = vadd.f32 0.0, %v2989
        %v2991 = vpop.f32.mrb[0].mxu0
        %2992 = vmatprep.mubr.bf16.mxu0 0
        %2993 = vmatmul.mubr.bf16.gmra.mrb[0].mxu0 %v2785
        %v2994 = vpop.f32.mrb[0].mxu0
        %v2995 = vadd.f32 0.0, %v2994
        %v2996 = vpop.f32.mrb[0].mxu0
        %v2997 = vpop.f32.mrb[0].mxu0
        %v2998 = vadd.f32 0.0, %v2997
        %v2999 = vpop.f32.mrb[0].mxu0
        %3000 = vmatprep.mubr.bf16.mxu0 0
        %3001 = vmatmul.mubr.bf16.gmra.mrb[0].mxu0 %v2793
        %v3002 = vpop.f32.mrb[0].mxu0
        %v3003 = vadd.f32 0.0, %v3002
        %v3004 = vpop.f32.mrb[0].mxu0
        %v3005 = vpop.f32.mrb[0].mxu0
        %v3006 = vadd.f32 0.0, %v3005
        %v3007 = vpop.f32.mrb[0].mxu0
        %3008 = vmatprep.mubr.bf16.mxu0 0
        %3009 = vmatmul.mubr.bf16.gmra.mrb[0].mxu0 %v2801
        %v3010 = vpop.f32.mrb[0].mxu0
        %v3011 = vadd.f32 0.0, %v3010
        %v3012 = vpop.f32.mrb[0].mxu0
        %v3013 = vpop.f32.mrb[0].mxu0
        %v3014 = vadd.f32 0.0, %v3013
        %v3015 = vpop.f32.mrb[0].mxu0
        %3016 = vdwg.mxu0
        %v3017 = vadd.f32 %v2708, %v2891
        %v3018 = vadd.f32 %v2709, %v2894
        %v3019 = vadd.f32 %v2710, %v2899
        %v3020 = vadd.f32 %v2711, %v2902
        %v3021 = vadd.f32 %v2712, %v2907
        %v3022 = vadd.f32 %v2713, %v2910
        %v3023 = vadd.f32 %v2714, %v2915
        %v3024 = vadd.f32 %v2715, %v2918
        %v3025 = vadd.f32 %v2716, %v2923
        %v3026 = vadd.f32 %v2717, %v2926
        %v3027 = vadd.f32 %v2718, %v2931
        %v3028 = vadd.f32 %v2719, %v2934
        %v3029 = vadd.f32 %v2720, %v2939
        %v3030 = vadd.f32 %v2721, %v2942
        %v3031 = vadd.f32 %v2722, %v2947
        %v3032 = vadd.f32 %v2723, %v2950
        %v3033 = vadd.f32 %v2724, %v2955
        %v3034 = vadd.f32 %v2725, %v2958
        %v3035 = vadd.f32 %v2726, %v2963
        %v3036 = vadd.f32 %v2727, %v2966
        %v3037 = vadd.f32 %v2728, %v2971
        %v3038 = vadd.f32 %v2729, %v2974
        %v3039 = vadd.f32 %v2730, %v2979
        %v3040 = vadd.f32 %v2731, %v2982
        %v3041 = vadd.f32 %v2732, %v2987
        %v3042 = vadd.f32 %v2733, %v2990
        %v3043 = vadd.f32 %v2734, %v2995
        %v3044 = vadd.f32 %v2735, %v2998
        %v3045 = vadd.f32 %v2736, %v3003
        %v3046 = vadd.f32 %v2737, %v3006
        %v3047 = vadd.f32 %v2738, %v3011
        %v3048 = vadd.f32 %v2739, %v3014
        %v3049 = vld [vmem:[#allocation7 + $0x200] sm:$0xf]
        %v3050 = vld [vmem:[#allocation7 + $0x204] sm:$0xf]
        %v3051 = vld [vmem:[#allocation7 + $0x208] sm:$0xf]
        %v3052 = vld [vmem:[#allocation7 + $0x20c] sm:$0xf]
        %v3053 = vld [vmem:[#allocation7 + $0x210] sm:$0xf]
        %v3054 = vld [vmem:[#allocation7 + $0x214] sm:$0xf]
        %v3055 = vld [vmem:[#allocation7 + $0x218] sm:$0xf]
        %v3056 = vld [vmem:[#allocation7 + $0x21c] sm:$0xf]
        %v3057 = vld [vmem:[#allocation7 + $0x220] sm:$0xf]
        %v3058 = vld [vmem:[#allocation7 + $0x224] sm:$0xf]
        %v3059 = vld [vmem:[#allocation7 + $0x228] sm:$0xf]
        %v3060 = vld [vmem:[#allocation7 + $0x22c] sm:$0xf]
        %v3061 = vld [vmem:[#allocation7 + $0x230] sm:$0xf]
        %v3062 = vld [vmem:[#allocation7 + $0x234] sm:$0xf]
        %v3063 = vld [vmem:[#allocation7 + $0x238] sm:$0xf]
        %v3064 = vld [vmem:[#allocation7 + $0x23c] sm:$0xf]
        %v3071 = vrot.slane %v2478, 1
        %v3072 = vsel %vm1185, %v1215, %v3071
        %v3073 = vrot.slane %v2479, 1
        %v3074 = vsel %vm1185, %v3071, %v3073
        %v3075 = vrot.slane %v2480, 1
        %v3076 = vsel %vm1185, %v3073, %v3075
        %v3077 = vrot.slane %v2481, 1
        %v3078 = vsel %vm1185, %v3075, %v3077
        %v3079 = vrot.slane %v2482, 1
        %v3080 = vsel %vm1185, %v3077, %v3079
        %v3081 = vrot.slane %v2740, 1
        %v3082 = vsel %vm1185, %v3079, %v3081
        %v3105 = vunpack.c.l.b16 %v3049
        %v3106 = vunpack.c.l.b16 %v3050
        %v3107 = vunpack.c.l.b16 %v3051
        %v3108 = vunpack.c.l.b16 %v3052
        %v3109 = vunpack.c.l.b16 %v3053
        %v3110 = vunpack.c.l.b16 %v3054
        %v3111 = vunpack.c.l.b16 %v3055
        %v3112 = vunpack.c.l.b16 %v3056
        %v3113 = vunpack.c.l.b16 %v3057
        %v3114 = vunpack.c.l.b16 %v3058
        %v3115 = vunpack.c.l.b16 %v3059
        %v3116 = vunpack.c.l.b16 %v3060
        %v3117 = vunpack.c.l.b16 %v3061
        %v3118 = vunpack.c.l.b16 %v3062
        %v3119 = vunpack.c.l.b16 %v3063
        %v3120 = vunpack.c.l.b16 %v3064
        %v3121 = vpack.c.b16 %v3106, %v3105
        %v3122 = vpack.c.b16 %v3108, %v3107
        %v3123 = vpack.c.b16 %v3110, %v3109
        %v3124 = vpack.c.b16 %v3112, %v3111
        %v3125 = vpack.c.b16 %v3114, %v3113
        %v3126 = vpack.c.b16 %v3116, %v3115
        %v3127 = vpack.c.b16 %v3118, %v3117
        %v3128 = vpack.c.b16 %v3120, %v3119
        %3137 = vmatprep.subr.bf16.mxu0 0
        %3138 = vmatpush1.bf16.msra.mxu0 %v3121
        %3139 = vmatprep.subr.bf16.mxu0 0
        %3140 = vmatpush1.bf16.msra.mxu0 %v3122
        %3141 = vmatprep.subr.bf16.mxu0 0
        %3142 = vmatpush1.bf16.msra.mxu0 %v3123
        %3143 = vmatprep.subr.bf16.mxu0 0
        %3144 = vmatpush1.bf16.msra.mxu0 %v3124
        %3145 = vmatprep.subr.bf16.mxu0 0
        %3146 = vmatpush1.bf16.msra.mxu0 %v3125
        %3147 = vmatprep.subr.bf16.mxu0 0
        %3148 = vmatpush1.bf16.msra.mxu0 %v3126
        %3149 = vmatprep.subr.bf16.mxu0 0
        %3150 = vmatpush1.bf16.msra.mxu0 %v3127
        %3151 = vmatprep.subr.bf16.mxu0 0
        %3152 = vmatpush1.bf16.msra.mxu0 %v3128
        %3153 = vmatprep.subr.bf16.mxu0 0
        %3154 = vmatpush1.bf16.msra.mxu0 0
        %3155 = vmatprep.subr.bf16.mxu0 0
        %3156 = vmatpush1.bf16.msra.mxu0 0
        %3157 = vmatprep.subr.bf16.mxu0 0
        %3158 = vmatpush1.bf16.msra.mxu0 0
        %3159 = vmatprep.subr.bf16.mxu0 0
        %3160 = vmatpush1.bf16.msra.mxu0 0
        %3161 = vmatprep.subr.bf16.mxu0 0
        %3162 = vmatpush1.bf16.msra.mxu0 0
        %3163 = vmatprep.subr.bf16.mxu0 0
        %3164 = vmatpush1.bf16.msra.mxu0 0
        %3165 = vmatprep.subr.bf16.mxu0 0
        %3166 = vmatpush1.bf16.msra.mxu0 0
        %3167 = vmatprep.subr.bf16.mxu0 0
        %3168 = vmatpush1.bf16.msra.mxu0 0
        %3169 = vmatprep.mubr.bf16.mxu0 0
        %3170 = vmatmul.mubr.bf16.gmra.mrb[0].mxu0 %v1198
        %v3171 = vpop.f32.mrb[0].mxu0
        %v3172 = vadd.f32 0.0, %v3171
        %v3173 = vpop.f32.mrb[0].mxu0
        %v3174 = vpop.f32.mrb[0].mxu0
        %v3175 = vadd.f32 0.0, %v3174
        %v3176 = vpop.f32.mrb[0].mxu0
        %3177 = vmatprep.mubr.bf16.mxu0 0
        %3178 = vmatmul.mubr.bf16.gmra.mrb[0].mxu0 %v1200
        %v3179 = vpop.f32.mrb[0].mxu0
        %v3180 = vadd.f32 0.0, %v3179
        %v3181 = vpop.f32.mrb[0].mxu0
        %v3182 = vpop.f32.mrb[0].mxu0
        %v3183 = vadd.f32 0.0, %v3182
        %v3184 = vpop.f32.mrb[0].mxu0
        %3185 = vmatprep.mubr.bf16.mxu0 0
        %3186 = vmatmul.mubr.bf16.gmra.mrb[0].mxu0 %v1202
        %v3187 = vpop.f32.mrb[0].mxu0
        %v3188 = vadd.f32 0.0, %v3187
        %v3189 = vpop.f32.mrb[0].mxu0
        %v3190 = vpop.f32.mrb[0].mxu0
        %v3191 = vadd.f32 0.0, %v3190
        %v3192 = vpop.f32.mrb[0].mxu0
        %3193 = vmatprep.mubr.bf16.mxu0 0
        %3194 = vmatmul.mubr.bf16.gmra.mrb[0].mxu0 %v1204
        %v3195 = vpop.f32.mrb[0].mxu0
        %v3196 = vadd.f32 0.0, %v3195
        %v3197 = vpop.f32.mrb[0].mxu0
        %v3198 = vpop.f32.mrb[0].mxu0
        %v3199 = vadd.f32 0.0, %v3198
        %v3200 = vpop.f32.mrb[0].mxu0
        %3201 = vmatprep.mubr.bf16.mxu0 0
        %3202 = vmatmul.mubr.bf16.gmra.mrb[0].mxu0 %v1206
        %v3203 = vpop.f32.mrb[0].mxu0
        %v3204 = vadd.f32 0.0, %v3203
        %v3205 = vpop.f32.mrb[0].mxu0
        %v3206 = vpop.f32.mrb[0].mxu0
        %v3207 = vadd.f32 0.0, %v3206
        %v3208 = vpop.f32.mrb[0].mxu0
        %3209 = vmatprep.mubr.bf16.mxu0 0
        %3210 = vmatmul.mubr.bf16.gmra.mrb[0].mxu0 %v1208
        %v3211 = vpop.f32.mrb[0].mxu0
        %v3212 = vadd.f32 0.0, %v3211
        %v3213 = vpop.f32.mrb[0].mxu0
        %v3214 = vpop.f32.mrb[0].mxu0
        %v3215 = vadd.f32 0.0, %v3214
        %v3216 = vpop.f32.mrb[0].mxu0
        %3217 = vmatprep.mubr.bf16.mxu0 0
        %3218 = vmatmul.mubr.bf16.gmra.mrb[0].mxu0 %v1210
        %v3219 = vpop.f32.mrb[0].mxu0
        %v3220 = vadd.f32 0.0, %v3219
        %v3221 = vpop.f32.mrb[0].mxu0
        %v3222 = vpop.f32.mrb[0].mxu0
        %v3223 = vadd.f32 0.0, %v3222
        %v3224 = vpop.f32.mrb[0].mxu0
        %3225 = vmatprep.mubr.bf16.mxu0 0
        %3226 = vmatmul.mubr.bf16.gmra.mrb[0].mxu0 %v1212
        %v3227 = vpop.f32.mrb[0].mxu0
        %v3228 = vadd.f32 0.0, %v3227
        %v3229 = vpop.f32.mrb[0].mxu0
        %v3230 = vpop.f32.mrb[0].mxu0
        %v3231 = vadd.f32 0.0, %v3230
        %v3232 = vpop.f32.mrb[0].mxu0
        %3233 = vmatprep.mubr.bf16.mxu0 0
        %3234 = vmatmul.mubr.bf16.gmra.mrb[0].mxu0 %v1214
        %v3235 = vpop.f32.mrb[0].mxu0
        %v3236 = vadd.f32 0.0, %v3235
        %v3237 = vpop.f32.mrb[0].mxu0
        %v3238 = vpop.f32.mrb[0].mxu0
        %v3239 = vadd.f32 0.0, %v3238
        %v3240 = vpop.f32.mrb[0].mxu0
        %3241 = vmatprep.mubr.bf16.mxu0 0
        %3242 = vmatmul.mubr.bf16.gmra.mrb[0].mxu0 %v1216
        %v3243 = vpop.f32.mrb[0].mxu0
        %v3244 = vadd.f32 0.0, %v3243
        %v3245 = vpop.f32.mrb[0].mxu0
        %v3246 = vpop.f32.mrb[0].mxu0
        %v3247 = vadd.f32 0.0, %v3246
        %v3248 = vpop.f32.mrb[0].mxu0
        %3249 = vmatprep.mubr.bf16.mxu0 0
        %3250 = vmatmul.mubr.bf16.gmra.mrb[0].mxu0 %v3072
        %v3251 = vpop.f32.mrb[0].mxu0
        %v3252 = vadd.f32 0.0, %v3251
        %v3253 = vpop.f32.mrb[0].mxu0
        %v3254 = vpop.f32.mrb[0].mxu0
        %v3255 = vadd.f32 0.0, %v3254
        %v3256 = vpop.f32.mrb[0].mxu0
        %3257 = vmatprep.mubr.bf16.mxu0 0
        %3258 = vmatmul.mubr.bf16.gmra.mrb[0].mxu0 %v3074
        %v3259 = vpop.f32.mrb[0].mxu0
        %v3260 = vadd.f32 0.0, %v3259
        %v3261 = vpop.f32.mrb[0].mxu0
        %v3262 = vpop.f32.mrb[0].mxu0
        %v3263 = vadd.f32 0.0, %v3262
        %v3264 = vpop.f32.mrb[0].mxu0
        %3265 = vmatprep.mubr.bf16.mxu0 0
        %3266 = vmatmul.mubr.bf16.gmra.mrb[0].mxu0 %v3076
        %v3267 = vpop.f32.mrb[0].mxu0
        %v3268 = vadd.f32 0.0, %v3267
        %v3269 = vpop.f32.mrb[0].mxu0
        %v3270 = vpop.f32.mrb[0].mxu0
        %v3271 = vadd.f32 0.0, %v3270
        %v3272 = vpop.f32.mrb[0].mxu0
        %3273 = vmatprep.mubr.bf16.mxu0 0
        %3274 = vmatmul.mubr.bf16.gmra.mrb[0].mxu0 %v3078
        %v3275 = vpop.f32.mrb[0].mxu0
        %v3276 = vadd.f32 0.0, %v3275
        %v3277 = vpop.f32.mrb[0].mxu0
        %v3278 = vpop.f32.mrb[0].mxu0
        %v3279 = vadd.f32 0.0, %v3278
        %v3280 = vpop.f32.mrb[0].mxu0
        %3281 = vmatprep.mubr.bf16.mxu0 0
        %3282 = vmatmul.mubr.bf16.gmra.mrb[0].mxu0 %v3080
        %v3283 = vpop.f32.mrb[0].mxu0
        %v3284 = vadd.f32 0.0, %v3283
        %v3285 = vpop.f32.mrb[0].mxu0
        %v3286 = vpop.f32.mrb[0].mxu0
        %v3287 = vadd.f32 0.0, %v3286
        %v3288 = vpop.f32.mrb[0].mxu0
        %3289 = vmatprep.mubr.bf16.mxu0 0
        %3290 = vmatmul.mubr.bf16.gmra.mrb[0].mxu0 %v3082
        %v3291 = vpop.f32.mrb[0].mxu0
        %v3292 = vadd.f32 0.0, %v3291
        %v3293 = vpop.f32.mrb[0].mxu0
        %v3294 = vpop.f32.mrb[0].mxu0
        %v3295 = vadd.f32 0.0, %v3294
        %v3296 = vpop.f32.mrb[0].mxu0
        %3297 = vdwg.mxu0
        %v3298 = vadd.f32 %v3017, %v3172
        %v3299 = vadd.f32 %v3018, %v3175
        %v3300 = vadd.f32 %v3019, %v3180
        %v3301 = vadd.f32 %v3020, %v3183
        %v3302 = vadd.f32 %v3021, %v3188
        %v3303 = vadd.f32 %v3022, %v3191
        %v3304 = vadd.f32 %v3023, %v3196
        %v3305 = vadd.f32 %v3024, %v3199
        %v3306 = vadd.f32 %v3025, %v3204
        %v3307 = vadd.f32 %v3026, %v3207
        %v3308 = vadd.f32 %v3027, %v3212
        %v3309 = vadd.f32 %v3028, %v3215
        %v3310 = vadd.f32 %v3029, %v3220
        %v3311 = vadd.f32 %v3030, %v3223
        %v3312 = vadd.f32 %v3031, %v3228
        %v3313 = vadd.f32 %v3032, %v3231
        %v3314 = vadd.f32 %v3033, %v3236
        %v3315 = vadd.f32 %v3034, %v3239
        %v3316 = vadd.f32 %v3035, %v3244
        %v3317 = vadd.f32 %v3036, %v3247
        %v3318 = vadd.f32 %v3037, %v3252
        %v3319 = vadd.f32 %v3038, %v3255
        %v3320 = vadd.f32 %v3039, %v3260
        %v3321 = vadd.f32 %v3040, %v3263
        %v3322 = vadd.f32 %v3041, %v3268
        %v3323 = vadd.f32 %v3042, %v3271
        %v3324 = vadd.f32 %v3043, %v3276
        %v3325 = vadd.f32 %v3044, %v3279
        %v3326 = vadd.f32 %v3045, %v3284
        %v3327 = vadd.f32 %v3046, %v3287
        %v3328 = vadd.f32 %v3047, %v3292
        %v3329 = vadd.f32 %v3048, %v3295
        %v3330 = vld [vmem:[%s314] sm:$0x1]
        %v3332 = vlaneseq
        %v3333 = vshrl.u32 %v3332, 7
        %v3334 = vsub.s32 0, %v3333
        %v3335 = vrot.slane %v3330, %v3334
        %v3337 = vadd.f32 %v3298, %v3335
        %v3338 = vadd.f32 %v3299, %v3335
        %v3339 = vadd.f32 %v3300, %v3335
        %v3340 = vadd.f32 %v3301, %v3335
        %v3341 = vadd.f32 %v3302, %v3335
        %v3342 = vadd.f32 %v3303, %v3335
        %v3343 = vadd.f32 %v3304, %v3335
        %v3344 = vadd.f32 %v3305, %v3335
        %v3345 = vadd.f32 %v3306, %v3335
        %v3346 = vadd.f32 %v3307, %v3335
        %v3347 = vadd.f32 %v3308, %v3335
        %v3348 = vadd.f32 %v3309, %v3335
        %v3349 = vadd.f32 %v3310, %v3335
        %v3350 = vadd.f32 %v3311, %v3335
        %v3351 = vadd.f32 %v3312, %v3335
        %v3352 = vadd.f32 %v3313, %v3335
        %v3353 = vadd.f32 %v3314, %v3335
        %v3354 = vadd.f32 %v3315, %v3335
        %v3355 = vadd.f32 %v3316, %v3335
        %v3356 = vadd.f32 %v3317, %v3335
        %v3357 = vadd.f32 %v3318, %v3335
        %v3358 = vadd.f32 %v3319, %v3335
        %v3359 = vadd.f32 %v3320, %v3335
        %v3360 = vadd.f32 %v3321, %v3335
        %v3361 = vadd.f32 %v3322, %v3335
        %v3362 = vadd.f32 %v3323, %v3335
        %v3363 = vadd.f32 %v3324, %v3335
        %v3364 = vadd.f32 %v3325, %v3335
        %v3365 = vadd.f32 %v3326, %v3335
        %v3366 = vadd.f32 %v3327, %v3335
        %v3367 = vadd.f32 %v3328, %v3335
        %v3368 = vadd.f32 %v3329, %v3335
        %v3369 = vmax.f32 %v3337, 0.0
        %v3370 = vmax.f32 %v3338, 0.0
        %v3371 = vmax.f32 %v3339, 0.0
        %v3372 = vmax.f32 %v3340, 0.0
        %v3373 = vmax.f32 %v3341, 0.0
        %v3374 = vmax.f32 %v3342, 0.0
        %v3375 = vmax.f32 %v3343, 0.0
        %v3376 = vmax.f32 %v3344, 0.0
        %v3377 = vmax.f32 %v3345, 0.0
        %v3378 = vmax.f32 %v3346, 0.0
        %v3379 = vmax.f32 %v3347, 0.0
        %v3380 = vmax.f32 %v3348, 0.0
        %v3381 = vmax.f32 %v3349, 0.0
        %v3382 = vmax.f32 %v3350, 0.0
        %v3383 = vmax.f32 %v3351, 0.0
        %v3384 = vmax.f32 %v3352, 0.0
        %v3385 = vmax.f32 %v3353, 0.0
        %v3386 = vmax.f32 %v3354, 0.0
        %v3387 = vmax.f32 %v3355, 0.0
        %v3388 = vmax.f32 %v3356, 0.0
        %v3389 = vmax.f32 %v3357, 0.0
        %v3390 = vmax.f32 %v3358, 0.0
        %v3391 = vmax.f32 %v3359, 0.0
        %v3392 = vmax.f32 %v3360, 0.0
        %v3393 = vmax.f32 %v3361, 0.0
        %v3394 = vmax.f32 %v3362, 0.0
        %v3395 = vmax.f32 %v3363, 0.0
        %v3396 = vmax.f32 %v3364, 0.0
        %v3397 = vmax.f32 %v3365, 0.0
        %v3398 = vmax.f32 %v3366, 0.0
        %v3399 = vmax.f32 %v3367, 0.0
        %v3400 = vmax.f32 %v3368, 0.0
        %v3401 = vpack.c.bf16 %v3370, %v3369
        %v3402 = vpack.c.bf16 %v3372, %v3371
        %v3403 = vpack.c.bf16 %v3374, %v3373
        %v3404 = vpack.c.bf16 %v3376, %v3375
        %v3405 = vpack.c.bf16 %v3378, %v3377
        %v3406 = vpack.c.bf16 %v3380, %v3379
        %v3407 = vpack.c.bf16 %v3382, %v3381
        %v3408 = vpack.c.bf16 %v3384, %v3383
        %v3409 = vpack.c.bf16 %v3386, %v3385
        %v3410 = vpack.c.bf16 %v3388, %v3387
        %v3411 = vpack.c.bf16 %v3390, %v3389
        %v3412 = vpack.c.bf16 %v3392, %v3391
        %v3413 = vpack.c.bf16 %v3394, %v3393
        %v3414 = vpack.c.bf16 %v3396, %v3395
        %v3415 = vpack.c.bf16 %v3398, %v3397
        %v3416 = vpack.c.bf16 %v3400, %v3399
        %v3433 = vunpack.c.l.b16 %v3401
        %v3434 = vunpack.c.h.b16 %v3401
        %v3435 = vunpack.c.l.b16 %v3402
        %v3436 = vunpack.c.h.b16 %v3402
        %v3437 = vunpack.c.l.b16 %v3403
        %v3438 = vunpack.c.h.b16 %v3403
        %v3439 = vunpack.c.l.b16 %v3404
        %v3440 = vunpack.c.h.b16 %v3404
        %v3441 = vunpack.c.l.b16 %v3405
        %v3442 = vunpack.c.h.b16 %v3405
        %v3443 = vunpack.c.l.b16 %v3406
        %v3444 = vunpack.c.h.b16 %v3406
        %v3445 = vunpack.c.l.b16 %v3407
        %v3446 = vunpack.c.h.b16 %v3407
        %v3447 = vunpack.c.l.b16 %v3408
        %v3448 = vunpack.c.h.b16 %v3408
        %v3449 = vunpack.c.l.b16 %v3409
        %v3450 = vunpack.c.h.b16 %v3409
        %v3451 = vunpack.c.l.b16 %v3410
        %v3452 = vunpack.c.h.b16 %v3410
        %v3453 = vunpack.c.l.b16 %v3411
        %v3454 = vunpack.c.h.b16 %v3411
        %v3455 = vunpack.c.l.b16 %v3412
        %v3456 = vunpack.c.h.b16 %v3412
        %v3457 = vunpack.c.l.b16 %v3413
        %v3458 = vunpack.c.h.b16 %v3413
        %v3459 = vunpack.c.l.b16 %v3414
        %v3460 = vunpack.c.h.b16 %v3414
        %v3461 = vunpack.c.l.b16 %v3415
        %v3462 = vunpack.c.h.b16 %v3415
        %v3463 = vunpack.c.l.b16 %v3416
        %v3464 = vunpack.c.h.b16 %v3416
        %v3465 = vpack.c.b16 %v3433, %v3433
        %v3466 = vpack.c.b16 %v3434, %v3434
        %v3467 = vpack.c.b16 %v3435, %v3435
        %v3468 = vpack.c.b16 %v3436, %v3436
        %v3469 = vpack.c.b16 %v3437, %v3437
        %v3470 = vpack.c.b16 %v3438, %v3438
        %v3471 = vpack.c.b16 %v3439, %v3439
        %v3472 = vpack.c.b16 %v3440, %v3440
        %v3473 = vpack.c.b16 %v3441, %v3441
        %v3474 = vpack.c.b16 %v3442, %v3442
        %v3475 = vpack.c.b16 %v3443, %v3443
        %v3476 = vpack.c.b16 %v3444, %v3444
        %v3477 = vpack.c.b16 %v3445, %v3445
        %v3478 = vpack.c.b16 %v3446, %v3446
        %v3479 = vpack.c.b16 %v3447, %v3447
        %v3480 = vpack.c.b16 %v3448, %v3448
        %v3481 = vpack.c.b16 %v3449, %v3449
        %v3482 = vpack.c.b16 %v3450, %v3450
        %v3483 = vpack.c.b16 %v3451, %v3451
        %v3484 = vpack.c.b16 %v3452, %v3452
        %v3485 = vpack.c.b16 %v3453, %v3453
        %v3486 = vpack.c.b16 %v3454, %v3454
        %v3487 = vpack.c.b16 %v3455, %v3455
        %v3488 = vpack.c.b16 %v3456, %v3456
        %v3489 = vpack.c.b16 %v3457, %v3457
        %v3490 = vpack.c.b16 %v3458, %v3458
        %v3491 = vpack.c.b16 %v3459, %v3459
        %v3492 = vpack.c.b16 %v3460, %v3460
        %v3493 = vpack.c.b16 %v3461, %v3461
        %v3494 = vpack.c.b16 %v3462, %v3462
        %v3495 = vpack.c.b16 %v3463, %v3463
        %v3496 = vpack.c.b16 %v3464, %v3464
        %3529 = vst [vmem:[%s307] sm:$0xf] %v3465
        %3530 = vst [vmem:[%s307 + $0x4] sm:$0xf] %v3466
        %3531 = vst [vmem:[%s307 + $0x8] sm:$0xf] %v3467
        %3532 = vst [vmem:[%s307 + $0xc] sm:$0xf] %v3468
        %3533 = vst [vmem:[%s307 + $0x10] sm:$0xf] %v3469
        %3534 = vst [vmem:[%s307 + $0x14] sm:$0xf] %v3470
        %3535 = vst [vmem:[%s307 + $0x18] sm:$0xf] %v3471
        %3536 = vst [vmem:[%s307 + $0x1c] sm:$0xf] %v3472
        %3537 = vst [vmem:[%s307 + $0x20] sm:$0xf] %v3473
        %3538 = vst [vmem:[%s307 + $0x24] sm:$0xf] %v3474
        %3539 = vst [vmem:[%s307 + $0x28] sm:$0xf] %v3475
        %3540 = vst [vmem:[%s307 + $0x2c] sm:$0xf] %v3476
        %3541 = vst [vmem:[%s307 + $0x30] sm:$0xf] %v3477
        %3542 = vst [vmem:[%s307 + $0x34] sm:$0xf] %v3478
        %3543 = vst [vmem:[%s307 + $0x38] sm:$0xf] %v3479
        %3544 = vst [vmem:[%s307 + $0x3c] sm:$0xf] %v3480
        %3545 = vst [vmem:[%s307 + $0x40] sm:$0xf] %v3481
        %3546 = vst [vmem:[%s307 + $0x44] sm:$0xf] %v3482
        %3547 = vst [vmem:[%s307 + $0x48] sm:$0xf] %v3483
        %3548 = vst [vmem:[%s307 + $0x4c] sm:$0xf] %v3484
        %3549 = vst [vmem:[%s307 + $0x50] sm:$0xf] %v3485
        %3550 = vst [vmem:[%s307 + $0x54] sm:$0xf] %v3486
        %3551 = vst [vmem:[%s307 + $0x58] sm:$0xf] %v3487
        %3552 = vst [vmem:[%s307 + $0x5c] sm:$0xf] %v3488
        %3553 = vst [vmem:[%s307 + $0x60] sm:$0xf] %v3489
        %3554 = vst [vmem:[%s307 + $0x64] sm:$0xf] %v3490
        %3555 = vst [vmem:[%s307 + $0x68] sm:$0xf] %v3491
        %3556 = vst [vmem:[%s307 + $0x6c] sm:$0xf] %v3492
        %3557 = vst [vmem:[%s307 + $0x70] sm:$0xf] %v3493
        %3558 = vst [vmem:[%s307 + $0x74] sm:$0xf] %v3494
        %3559 = vst [vmem:[%s307 + $0x78] sm:$0xf] %v3495
        %3560 = vst [vmem:[%s307 + $0x7c] sm:$0xf] %v3496
        %s3561 = sand.u32 %s154, 1
        %s3562 = scalar_lea.sflag [#allocation4], %s3561
        %s3563 = sand.u32 %s154, 1
        %s3564 = smul.addr %s3563, 128
        %s3565 = scalar_lea.vmem [#allocation8], %s3564
        // Predicated region
        $region49: #{tpu_custom_call.1} parent=35 // pred_check
          %p3566 = pneg %p164
        $region50: #{tpu_custom_call.1} parent=35 // pred_check_branch
          %3568 = sbr.rel (%p3566) target = $region52
        $region51: #{tpu_custom_call.1} parent=35 // pred_region
          %s3569 = smul.u32 32, %s28
          %s3571 = ssub.s32 2048, 2048
          %3572 = vsyncadd %s3562, %s3571
          %s3573 = sadd.s32 %s29, %s3569
          %s3574 = smul.addr %s3573, 64
          %s3575 = scalar_lea.hbm %s4, %s3574
          %s3576 = sshll.u32 %s3565, 4
          %s3577 = int_to_ptr.vmem [resolvable:$true] %s3576
          %3582 = dma.vmem_to_hbm [thread:$0]  %s3577, 2048, %s3575, %s3562, 64, 64, 4
        $region52: #{tpu_custom_call.1} parent=35 // pred_fallthru
          _
      $region36: #{tpu_custom_call.1} parent=5 // pred_fallthru
        _
      %p3583 = scmp.le.s32.totalorder 2, %s19
      // Predicated region
      $region53: #{tpu_custom_call.1} parent=5 // pred_check
        %p3584 = pneg %p3583
      $region54: #{tpu_custom_call.1} parent=5 // pred_check_branch
        %3586 = sbr.rel (%p3584) target = $region56
      $region55: #{tpu_custom_call.1} parent=5 // pred_region
        %s3587 = ssub.s32 %s19, 2
        // Predicated region
        $region57: #{tpu_custom_call.1} parent=55 // pred_check
          %p3588 = pneg %p170
        $region58: #{tpu_custom_call.1} parent=55 // pred_check_branch
          %3590 = sbr.rel (%p3588) target = $region60
        $region59: #{tpu_custom_call.1} parent=55 // pred_region
          %s3591 = sand.u32 %s155, 1
          %s3592 = scalar_lea.sflag [#allocation4], %s3591
          %s3593 = sand.u32 %s155, 1
          %s3594 = smul.addr %s3593, 128
          %s3595 = scalar_lea.vmem [#allocation8], %s3594
          %3596 = dma.done %s3592, 2048
        $region60: #{tpu_custom_call.1} parent=55 // pred_fallthru
          _
      $region56: #{tpu_custom_call.1} parent=5 // pred_fallthru
        _
    $region6: #{tpu_custom_call.1} parent=1 // loop_footer
      %s23 = sadd.s32 1, %s19
    $region7: #{tpu_custom_call.1} parent=1 // loop_footer_branch
      %18 = sbr.rel target = $region3
    $region8: #{tpu_custom_call.1} parent=1 // loop_exit
      _
    %3597 = vsyncpa [#allocation3], 1
    %s3598 = scalar_lea.sflag [#allocation3], 1
    %3599 = vsyncpa %s3598, 1
    %3600 = vsyncpa [#allocation6], 1
    %s3601 = scalar_lea.sflag [#allocation6], 1
    %3602 = vsyncpa %s3601, 1
    %3603 = vsyncpa [#allocation4], 1
    %s3604 = scalar_lea.sflag [#allocation4], 1
    %3605 = vsyncpa %s3604, 1

</llo_original>
